<compile_context>
chip_gen: v5e
topology: v5e:2x2
jax: 0.10.0
libtpu: 0.0.40
codegen_flags: <defaults>
</compile_context>

<pallas_src>
import jax
import jax.numpy as jnp
from jax.experimental import pallas as pl
from jax.experimental.pallas import tpu as pltpu

LEAKY_SLOPE = 0.01            # F.leaky_relu default negative_slope
BN_EPS = 1e-5                 # nn.BatchNorm2d default eps
LANE = 128
VMEM_LIMIT = 32 * 1024 * 1024  # safe on v5e/v6e/v7x


def _ceil_to(v, m):
    return -(-v // m) * m


def _largest_divisor_leq(n, cap):
    cap = max(1, min(n, cap))
    for d in range(cap, 0, -1):
        if n % d == 0:
            return d
    return 1


# ---------------------------------------------------------------------------
# Padded, phase-decomposed NHWC input (XLA; only used for the tiny stage-1 x)
# ---------------------------------------------------------------------------

def _phase_pad(x_nhwc, stride):
    """(n,h,w,c) -> (n, s*s, hq, wq, c) bf16 so every 3x3 tap is an unstrided window."""
    n, h, w, c = x_nhwc.shape
    s = stride
    hq = _ceil_to(h + 2, s) // s
    wq = _ceil_to(w + 2, s) // s
    xp = jnp.pad(x_nhwc, ((0, 0), (1, hq * s - h - 1), (1, wq * s - w - 1), (0, 0)))
    xph = xp.reshape(n, hq, s, wq, s, c).transpose(0, 2, 4, 1, 3, 5)
    return xph.reshape(n, s * s, hq, wq, c).astype(jnp.bfloat16)


# ---------------------------------------------------------------------------
# Fused conv3x3 (stride 1 or 2, pad 1) + partial BatchNorm statistics
# ---------------------------------------------------------------------------

def _conv3x3_bn_stats(xph, w_oihw, *, stride, c_pad, out_h, out_w,
                      max_rows_per_step=1024):
    """3x3 conv (pad=1) of a phase-decomposed padded NHWC input.

    Returns
      y    : (n, ho, wo, c_pad) bf16 pre-BN conv output (conv bias omitted)
      psum : (num_tiles, 1, c_pad) f32 per-tile partial sums of y
      psq  : (num_tiles, 1, c_pad) f32 per-tile partial sums of y*y
    """
    n, phases, hq, wq, c_in = xph.shape
    s = stride
    assert phases == s * s
    ho, wo = out_h, out_w
    halo = (3 - 1) // s
    assert ho + halo <= hq and wo + halo <= wq

    c_out = w_oihw.shape[0]
    k = 9 * c_in

    # Weights -> (9*c_in, c_pad) bf16: rows ordered (kh, kw, c_in) to match the
    # tap concatenation below; in-channels zero-padded up to c_in, out-channels
    # zero-padded up to c_pad (padded channels stay exactly 0 downstream).
    wt = jnp.pad(w_oihw, ((0, 0), (0, c_in - w_oihw.shape[1]), (0, 0), (0, 0)))
    wt = wt.transpose(2, 3, 1, 0).reshape(k, c_out)
    wt = jnp.pad(wt, ((0, 0), (0, c_pad - c_out))).astype(jnp.bfloat16)

    # Tile selection: bound rows per step (VMEM), keep even division of n and ho.
    tho = _largest_divisor_leq(ho, max(1, max_rows_per_step // wo))
    nt = _largest_divisor_leq(n, max(1, max_rows_per_step // (tho * wo)))
    rows = nt * tho * wo
    gi, gj = n // nt, ho // tho

    def kernel(x_ref, w_ref, y_ref, sum_ref, sq_ref):
        row0 = pl.program_id(1) * tho
        if tho % 8 == 0:
            row0 = pl.multiple_of(row0, 8)

        taps = []
        for kh in range(3):
            for kw in range(3):
                ph, dh = kh % s, kh // s
                pw, dw = kw % s, kw // s
                taps.append(
                    x_ref[:, ph * s + pw, pl.ds(row0 + dh, tho), dw:dw + wo, :])

        # Fused-K LHS: (rows, 9*c_in) bf16.  One f32 round-trip per block is the
        # relayout-safe way to collapse (nt, tho, wo) into MXU rows.
        if c_in % LANE == 0:
            lhs = jnp.concatenate(taps, axis=-1)          # lane-aligned bf16 concat
            lhs = lhs.astype(jnp.float32).reshape(rows, k).astype(jnp.bfloat16)
        else:
            # narrow taps (c_in < lane width): assemble in f32, single cast back
            lhs = jnp.concatenate([t.astype(jnp.float32) for t in taps], axis=-1)
            lhs = lhs.reshape(rows, k).astype(jnp.bfloat16)

        acc = jnp.dot(lhs, w_ref[...], preferred_element_type=jnp.float32)

        y_ref[...] = acc.reshape(nt, tho, wo, c_pad).astype(y_ref.dtype)
        # Per-tile partial BatchNorm statistics (reduced outside the kernel);
        # keeps both grid axes "parallel".
        sum_ref[...] = jnp.sum(acc, axis=0, keepdims=True).reshape(1, 1, c_pad)
        sq_ref[...] = jnp.sum(acc * acc, axis=0, keepdims=True).reshape(1, 1, c_pad)

    y, psum, psq = pl.pallas_call(
        kernel,
        out_shape=(
            jax.ShapeDtypeStruct((n, ho, wo, c_pad), jnp.bfloat16),
            jax.ShapeDtypeStruct((gi * gj, 1, c_pad), jnp.float32),
            jax.ShapeDtypeStruct((gi * gj, 1, c_pad), jnp.float32),
        ),
        grid=(gi, gj),
        in_specs=[
            # Padded input stays hq-resident per batch tile (index_map ignores j,
            # so it is fetched once per batch tile); rows are sliced in-kernel.
            pl.BlockSpec((nt, s * s, hq, wq, c_in), lambda i, j: (i, 0, 0, 0, 0)),
            pl.BlockSpec((k, c_pad), lambda i, j: (0, 0)),
        ],
        out_specs=(
            pl.BlockSpec((nt, tho, wo, c_pad), lambda i, j: (i, j, 0, 0)),
            pl.BlockSpec((1, 1, c_pad), lambda i, j: (i * gj + j, 0, 0)),
            pl.BlockSpec((1, 1, c_pad), lambda i, j: (i * gj + j, 0, 0)),
        ),
        compiler_params=pltpu.CompilerParams(
            dimension_semantics=("parallel", "parallel"),
            vmem_limit_bytes=VMEM_LIMIT),
    )(xph, wt)
    return y, psum, psq


# ---------------------------------------------------------------------------
# BatchNorm scale/shift from partial statistics (tiny XLA op)
# ---------------------------------------------------------------------------

def _bn_scale_shift(psum, psq, count, gamma, beta, c_pad):
    ssum = jnp.sum(psum, axis=(0, 1))
    ssq = jnp.sum(psq, axis=(0, 1))
    mean = ssum / count
    var = jnp.maximum(ssq / count - mean * mean, 0.0)   # clamp guards fp cancellation
    g = jnp.pad(gamma, (0, c_pad - gamma.shape[0]))
    b = jnp.pad(beta, (0, c_pad - beta.shape[0]))
    scale = g * jax.lax.rsqrt(var + BN_EPS)
    shift = b - mean * scale
    return (scale.reshape(1, c_pad).astype(jnp.float32),
            shift.reshape(1, c_pad).astype(jnp.float32))


# ---------------------------------------------------------------------------
# BN affine + LeakyReLU, written directly in the next conv's padded layout
# ---------------------------------------------------------------------------

def _bn_lrelu_pad(y, scale, shift):
    """y (n,ho,wo,c) bf16 -> (n, 1, ho+2, wo+2, c) bf16 with zero 1-pixel border.

    Output is exactly the stride-1 phase-decomposed padded layout the stage-2
    conv consumes, so no separate XLA pad pass over the activation is needed.
    """
    n, ho, wo, c = y.shape

    def kernel(y_ref, scale_ref, shift_ref, o_ref):
        o_ref[...] = jnp.zeros_like(o_ref)               # zero border (+ padded channels)
        a = y_ref[...].astype(jnp.float32) * scale_ref[...] + shift_ref[...]
        a = jnp.where(a >= 0, a, LEAKY_SLOPE * a).astype(o_ref.dtype)
        o_ref[:, :, 1:1 + ho, 1:1 + wo, :] = a[:, None]

    # TODO(synk): for very large images, row-tile this kernel as well.
    return pl.pallas_call(
        kernel,
        out_shape=jax.ShapeDtypeStruct((n, 1, ho + 2, wo + 2, c), jnp.bfloat16),
        grid=(n,),
        in_specs=[
            pl.BlockSpec((1, ho, wo, c), lambda b: (b, 0, 0, 0)),
            pl.BlockSpec((1, c), lambda b: (0, 0)),
            pl.BlockSpec((1, c), lambda b: (0, 0)),
        ],
        out_specs=pl.BlockSpec((1, 1, ho + 2, wo + 2, c), lambda b: (b, 0, 0, 0, 0)),
        compiler_params=pltpu.CompilerParams(dimension_semantics=("parallel",)),
    )(y, scale, shift)


def _bn_lrelu_final(y2d, scale, shift, *, out_dtype=jnp.float32, cap=2048):
    """Elementwise BN affine + LeakyReLU on a flattened (m, c) bf16 input."""
    m, c = y2d.shape
    tm = m if m <= cap else (cap // 8) * 8               # bounded, 8-aligned row tile

    def kernel(y_ref, scale_ref, shift_ref, o_ref):
        a = y_ref[...].astype(jnp.float32) * scale_ref[...] + shift_ref[...]
        o_ref[...] = jnp.where(a >= 0, a, LEAKY_SLOPE * a).astype(o_ref.dtype)

    return pl.pallas_call(
        kernel,
        out_shape=jax.ShapeDtypeStruct((m, c), out_dtype),
        grid=(pl.cdiv(m, tm),),
        in_specs=[
            pl.BlockSpec((tm, c), lambda i: (i, 0)),
            pl.BlockSpec((1, c), lambda i: (0, 0)),
            pl.BlockSpec((1, c), lambda i: (0, 0)),
        ],
        out_specs=pl.BlockSpec((tm, c), lambda i: (i, 0)),
        compiler_params=pltpu.CompilerParams(dimension_semantics=("parallel",)),
    )(y2d, scale, shift)


# ---------------------------------------------------------------------------
# Full ConvCell forward
# ---------------------------------------------------------------------------

@jax.jit
def conv_cell_forward(x_nchw, params):
    """x_nchw: (N, C_in, H, W) f32 (PyTorch layout). Returns (N, C_out, H//2, W//2) f32."""
    w1, b1, g1, be1, w2, b2, g2, be2 = params
    del b1, b2  # per-channel conv bias is exactly absorbed by batch-statistics BN
    n, _, h, w = x_nchw.shape
    c_out = w1.shape[0]
    c_pad = _ceil_to(max(c_out, LANE), LANE)
    ho1, wo1 = (h - 1) // 2 + 1, (w - 1) // 2 + 1
    ho2, wo2 = ho1, wo1

    x = jnp.transpose(x_nchw, (0, 2, 3, 1))              # NCHW -> NHWC (boundary only)

    # stage 1: conv3x3 s2 p1 (+ fused partial BN stats) -> BN + LeakyReLU (padded write)
    xph = _phase_pad(x, stride=2)
    y1, p1s, p1q = _conv3x3_bn_stats(xph, w1, stride=2, c_pad=c_pad,
                                     out_h=ho1, out_w=wo1)
    sc1, sh1 = _bn_scale_shift(p1s, p1q, n * ho1 * wo1, g1, be1, c_pad)
    a1p = _bn_lrelu_pad(y1, sc1, sh1)                    # (n,1,ho1+2,wo1+2,c_pad) bf16

    # stage 2: conv3x3 s1 'same' (+ fused partial BN stats) -> BN + LeakyReLU -> f32
    y2, p2s, p2q = _conv3x3_bn_stats(a1p, w2, stride=1, c_pad=c_pad,
                                     out_h=ho2, out_w=wo2)
    sc2, sh2 = _bn_scale_shift(p2s, p2q, n * ho2 * wo2, g2, be2, c_pad)
    a2 = _bn_lrelu_final(y2.reshape(n * ho2 * wo2, c_pad), sc2, sh2)

    out = a2.reshape(n, ho2, wo2, c_pad)[..., :c_out]
    return jnp.transpose(out, (0, 3, 1, 2))              # NHWC -> NCHW (boundary only)


# ------------------------------ reference (JAX) ------------------------------

def _reference(x, params):
    w1, b1, g1, be1, w2, b2, g2, be2 = params

    def conv(x, w, b, stride, pad):
        y = jax.lax.conv_general_dilated(
            x, w, window_strides=(stride, stride),
            padding=((pad, pad), (pad, pad)),
            dimension_numbers=("NCHW", "OIHW", "NCHW"))
        return y + b.reshape(1, -1, 1, 1)

    def bn_lrelu(x, g, be):
        mean = jnp.mean(x, axis=(0, 2, 3), keepdims=True)
        var = jnp.var(x, axis=(0, 2, 3), keepdims=True)
        y = (x - mean) * jax.lax.rsqrt(var + BN_EPS) * g.reshape(1, -1, 1, 1) \
            + be.reshape(1, -1, 1, 1)
        return jnp.where(y >= 0, y, LEAKY_SLOPE * y)

    x = bn_lrelu(conv(x, w1, b1, 2, 1), g1, be1)
    x = bn_lrelu(conv(x, w2, b2, 1, 1), g2, be2)
    return x


# ---------------------------------- main -------------------------------------

if __name__ == "__main__":
    N, C_IN, C_OUT, H, W = 2, 4, 8, 16, 16

    key = jax.random.PRNGKey(0)
    k_x, k_w1, k_b1, k_w2, k_b2 = jax.random.split(key, 5)

    x = jax.random.normal(k_x, (N, C_IN, H, W), dtype=jnp.float32)

    # Deterministic synthetic parameters (same shapes as the nn.Module's).
    w1 = 0.1 * jax.random.normal(k_w1, (C_OUT, C_IN, 3, 3), dtype=jnp.float32)
    b1 = 0.1 * jax.random.normal(k_b1, (C_OUT,), dtype=jnp.float32)
    g1 = jnp.ones((C_OUT,), jnp.float32)
    be1 = jnp.zeros((C_OUT,), jnp.float32)
    w2 = 0.1 * jax.random.normal(k_w2, (C_OUT, C_OUT, 3, 3), dtype=jnp.float32)
    b2 = 0.1 * jax.random.normal(k_b2, (C_OUT,), dtype=jnp.float32)
    g2 = jnp.ones((C_OUT,), jnp.float32)
    be2 = jnp.zeros((C_OUT,), jnp.float32)

    params = (w1, b1, g1, be1, w2, b2, g2, be2)

    out = jax.block_until_ready(conv_cell_forward(x, params))
    assert out.shape == (N, C_OUT, H // 2, W // 2), out.shape

    ref = jax.block_until_ready(_reference(x, params))
    err = jnp.abs(out - ref)
    # bf16 MXU operands / bf16 y intermediates with f32 accumulation & f32 BN stats.
    assert float(jnp.max(err)) < 1e-1, float(jnp.max(err))
    assert float(jnp.mean(err)) < 2e-2, float(jnp.mean(err))

    print("KERNEL_OK")
</pallas_src>

<mosaic_0001>
module attributes {stable_mosaic.version = 11 : i64} {
  func.func @kernel(%arg0: i32, %arg1: i32, %arg2: memref<2x4x9x9x4xbf16, #tpu.memory_space<vmem>>, %arg3: memref<36x128xbf16, #tpu.memory_space<vmem>>, %arg4: memref<2x8x8x128xbf16, #tpu.memory_space<vmem>>, %arg5: memref<1x1x128xf32, #tpu.memory_space<vmem>>, %arg6: memref<1x1x128xf32, #tpu.memory_space<vmem>>) attributes {dimension_semantics = [#tpu.dimension_semantics<parallel>, #tpu.dimension_semantics<parallel>], iteration_bounds = array<i64: 1, 1>, scalar_prefetch = 0 : i64, scratch_operands = 0 : i64, tpu.core_type = #tpu.core_type<tc>, window_params = [{transform_indices = @transform_0, window_bounds = array<i64: 2, 4, 9, 9, 4>}, {pipeline_mode = #tpu.pipeline_mode<synchronous>, transform_indices = @transform_1, window_bounds = array<i64: 36, 128>}, {transform_indices = @transform_2, window_bounds = array<i64: 2, 8, 8, 128>}, {transform_indices = @transform_3, window_bounds = array<i64: 1, 1, 128>}, {transform_indices = @transform_4, window_bounds = array<i64: 1, 1, 128>}]} {
    %c8_i32 = arith.constant 8 : i32
    %0 = arith.muli %arg1, %c8_i32 : i32
    %1 = tpu.assume_multiple %0, 8 : i32
    %c0_i32 = arith.constant 0 : i32
    %2 = arith.addi %1, %c0_i32 : i32
    %c0 = arith.constant 0 : index
    %c0_0 = arith.constant 0 : index
    %3 = arith.index_cast %2 : i32 to index
    %c0_1 = arith.constant 0 : index
    %c0_2 = arith.constant 0 : index
    %4 = vector.load %arg2[%c0, %c0_0, %3, %c0_1, %c0_2] : memref<2x4x9x9x4xbf16, #tpu.memory_space<vmem>>, vector<2x1x8x8x4xbf16>
    %5 = vector.shape_cast %4 : vector<2x1x8x8x4xbf16> to vector<2x8x8x4xbf16>
    %c0_i32_3 = arith.constant 0 : i32
    %6 = arith.addi %1, %c0_i32_3 : i32
    %c0_4 = arith.constant 0 : index
    %c1 = arith.constant 1 : index
    %7 = arith.index_cast %6 : i32 to index
    %c0_5 = arith.constant 0 : index
    %c0_6 = arith.constant 0 : index
    %8 = vector.load %arg2[%c0_4, %c1, %7, %c0_5, %c0_6] : memref<2x4x9x9x4xbf16, #tpu.memory_space<vmem>>, vector<2x1x8x8x4xbf16>
    %9 = vector.shape_cast %8 : vector<2x1x8x8x4xbf16> to vector<2x8x8x4xbf16>
    %c0_i32_7 = arith.constant 0 : i32
    %10 = arith.addi %1, %c0_i32_7 : i32
    %c0_8 = arith.constant 0 : index
    %c0_9 = arith.constant 0 : index
    %11 = arith.index_cast %10 : i32 to index
    %c1_10 = arith.constant 1 : index
    %c0_11 = arith.constant 0 : index
    %12 = vector.load %arg2[%c0_8, %c0_9, %11, %c1_10, %c0_11] : memref<2x4x9x9x4xbf16, #tpu.memory_space<vmem>>, vector<2x1x8x8x4xbf16>
    %13 = vector.shape_cast %12 : vector<2x1x8x8x4xbf16> to vector<2x8x8x4xbf16>
    %c0_i32_12 = arith.constant 0 : i32
    %14 = arith.addi %1, %c0_i32_12 : i32
    %c0_13 = arith.constant 0 : index
    %c2 = arith.constant 2 : index
    %15 = arith.index_cast %14 : i32 to index
    %c0_14 = arith.constant 0 : index
    %c0_15 = arith.constant 0 : index
    %16 = vector.load %arg2[%c0_13, %c2, %15, %c0_14, %c0_15] : memref<2x4x9x9x4xbf16, #tpu.memory_space<vmem>>, vector<2x1x8x8x4xbf16>
    %17 = vector.shape_cast %16 : vector<2x1x8x8x4xbf16> to vector<2x8x8x4xbf16>
    %c0_i32_16 = arith.constant 0 : i32
    %18 = arith.addi %1, %c0_i32_16 : i32
    %c0_17 = arith.constant 0 : index
    %c3 = arith.constant 3 : index
    %19 = arith.index_cast %18 : i32 to index
    %c0_18 = arith.constant 0 : index
    %c0_19 = arith.constant 0 : index
    %20 = vector.load %arg2[%c0_17, %c3, %19, %c0_18, %c0_19] : memref<2x4x9x9x4xbf16, #tpu.memory_space<vmem>>, vector<2x1x8x8x4xbf16>
    %21 = vector.shape_cast %20 : vector<2x1x8x8x4xbf16> to vector<2x8x8x4xbf16>
    %c0_i32_20 = arith.constant 0 : i32
    %22 = arith.addi %1, %c0_i32_20 : i32
    %c0_21 = arith.constant 0 : index
    %c2_22 = arith.constant 2 : index
    %23 = arith.index_cast %22 : i32 to index
    %c1_23 = arith.constant 1 : index
    %c0_24 = arith.constant 0 : index
    %24 = vector.load %arg2[%c0_21, %c2_22, %23, %c1_23, %c0_24] : memref<2x4x9x9x4xbf16, #tpu.memory_space<vmem>>, vector<2x1x8x8x4xbf16>
    %25 = vector.shape_cast %24 : vector<2x1x8x8x4xbf16> to vector<2x8x8x4xbf16>
    %c1_i32 = arith.constant 1 : i32
    %26 = arith.addi %1, %c1_i32 : i32
    %c0_25 = arith.constant 0 : index
    %c0_26 = arith.constant 0 : index
    %27 = arith.index_cast %26 : i32 to index
    %c0_27 = arith.constant 0 : index
    %c0_28 = arith.constant 0 : index
    %28 = vector.load %arg2[%c0_25, %c0_26, %27, %c0_27, %c0_28] : memref<2x4x9x9x4xbf16, #tpu.memory_space<vmem>>, vector<2x1x8x8x4xbf16>
    %29 = vector.shape_cast %28 : vector<2x1x8x8x4xbf16> to vector<2x8x8x4xbf16>
    %c1_i32_29 = arith.constant 1 : i32
    %30 = arith.addi %1, %c1_i32_29 : i32
    %c0_30 = arith.constant 0 : index
    %c1_31 = arith.constant 1 : index
    %31 = arith.index_cast %30 : i32 to index
    %c0_32 = arith.constant 0 : index
    %c0_33 = arith.constant 0 : index
    %32 = vector.load %arg2[%c0_30, %c1_31, %31, %c0_32, %c0_33] : memref<2x4x9x9x4xbf16, #tpu.memory_space<vmem>>, vector<2x1x8x8x4xbf16>
    %33 = vector.shape_cast %32 : vector<2x1x8x8x4xbf16> to vector<2x8x8x4xbf16>
    %c1_i32_34 = arith.constant 1 : i32
    %34 = arith.addi %1, %c1_i32_34 : i32
    %c0_35 = arith.constant 0 : index
    %c0_36 = arith.constant 0 : index
    %35 = arith.index_cast %34 : i32 to index
    %c1_37 = arith.constant 1 : index
    %c0_38 = arith.constant 0 : index
    %36 = vector.load %arg2[%c0_35, %c0_36, %35, %c1_37, %c0_38] : memref<2x4x9x9x4xbf16, #tpu.memory_space<vmem>>, vector<2x1x8x8x4xbf16>
    %37 = vector.shape_cast %36 : vector<2x1x8x8x4xbf16> to vector<2x8x8x4xbf16>
    %38 = arith.extf %5 : vector<2x8x8x4xbf16> to vector<2x8x8x4xf32>
    %39 = arith.extf %9 : vector<2x8x8x4xbf16> to vector<2x8x8x4xf32>
    %40 = arith.extf %13 : vector<2x8x8x4xbf16> to vector<2x8x8x4xf32>
    %41 = arith.extf %17 : vector<2x8x8x4xbf16> to vector<2x8x8x4xf32>
    %42 = arith.extf %21 : vector<2x8x8x4xbf16> to vector<2x8x8x4xf32>
    %43 = arith.extf %25 : vector<2x8x8x4xbf16> to vector<2x8x8x4xf32>
    %44 = arith.extf %29 : vector<2x8x8x4xbf16> to vector<2x8x8x4xf32>
    %45 = arith.extf %33 : vector<2x8x8x4xbf16> to vector<2x8x8x4xf32>
    %46 = arith.extf %37 : vector<2x8x8x4xbf16> to vector<2x8x8x4xf32>
    %47 = tpu.concatenate %38, %39, %40, %41, %42, %43, %44, %45, %46 in 3 : vector<2x8x8x4xf32>, vector<2x8x8x4xf32>, vector<2x8x8x4xf32>, vector<2x8x8x4xf32>, vector<2x8x8x4xf32>, vector<2x8x8x4xf32>, vector<2x8x8x4xf32>, vector<2x8x8x4xf32>, vector<2x8x8x4xf32> -> vector<2x8x8x36xf32>
    %48 = vector.shape_cast %47 : vector<2x8x8x36xf32> to vector<128x36xf32>
    %49 = arith.truncf %48 : vector<128x36xf32> to vector<128x36xbf16>
    %c0_39 = arith.constant 0 : index
    %c0_40 = arith.constant 0 : index
    %50 = vector.load %arg3[%c0_39, %c0_40] : memref<36x128xbf16, #tpu.memory_space<vmem>>, vector<36x128xbf16>
    %cst = arith.constant dense<0.000000e+00> : vector<128x128xf32>
    %51 = tpu.matmul %49, %50, %cst {dimension_numbers = #tpu.dot_dimension_numbers<[1], [0], [0], [1], [0, 0, 1, 1], [], []>} : vector<128x36xbf16>, vector<36x128xbf16>, vector<128x128xf32> -> vector<128x128xf32>
    %52 = vector.shape_cast %51 : vector<128x128xf32> to vector<2x8x8x128xf32>
    %53 = arith.truncf %52 : vector<2x8x8x128xf32> to vector<2x8x8x128xbf16>
    %c0_41 = arith.constant 0 : index
    %c0_42 = arith.constant 0 : index
    %c0_43 = arith.constant 0 : index
    %c0_44 = arith.constant 0 : index
    %54 = vector.load %arg4[%c0_41, %c0_42, %c0_43, %c0_44] : memref<2x8x8x128xbf16, #tpu.memory_space<vmem>>, vector<2x8x8x128xbf16>
    tpu.vector_store %arg4[%c0_41, %c0_42, %c0_43, %c0_44], %53 {strides = array<i32>} : memref<2x8x8x128xbf16, #tpu.memory_space<vmem>>, vector<2x8x8x128xbf16>,
    %cst_45 = arith.constant dense<0.000000e+00> : vector<128xf32>
    %55 = vector.multi_reduction <add>, %51, %cst_45 [0] : vector<128x128xf32> to vector<128xf32>
    %56 = vector.shape_cast %55 : vector<128xf32> to vector<1x128xf32>
    %57 = vector.shape_cast %56 : vector<1x128xf32> to vector<1x1x128xf32>
    %c0_46 = arith.constant 0 : index
    %c0_47 = arith.constant 0 : index
    %c0_48 = arith.constant 0 : index
    %58 = vector.load %arg5[%c0_46, %c0_47, %c0_48] : memref<1x1x128xf32, #tpu.memory_space<vmem>>, vector<1x1x128xf32>
    tpu.vector_store %arg5[%c0_46, %c0_47, %c0_48], %57 {strides = array<i32>} : memref<1x1x128xf32, #tpu.memory_space<vmem>>, vector<1x1x128xf32>,
    %59 = arith.mulf %51, %51 : vector<128x128xf32>
    %cst_49 = arith.constant dense<0.000000e+00> : vector<128xf32>
    %60 = vector.multi_reduction <add>, %59, %cst_49 [0] : vector<128x128xf32> to vector<128xf32>
    %61 = vector.shape_cast %60 : vector<128xf32> to vector<1x128xf32>
    %62 = vector.shape_cast %61 : vector<1x128xf32> to vector<1x1x128xf32>
    %c0_50 = arith.constant 0 : index
    %c0_51 = arith.constant 0 : index
    %c0_52 = arith.constant 0 : index
    %63 = vector.load %arg6[%c0_50, %c0_51, %c0_52] : memref<1x1x128xf32, #tpu.memory_space<vmem>>, vector<1x1x128xf32>
    tpu.vector_store %arg6[%c0_50, %c0_51, %c0_52], %62 {strides = array<i32>} : memref<1x1x128xf32, #tpu.memory_space<vmem>>, vector<1x1x128xf32>,
    return
  }
  func.func @transform_0(%arg0: i32, %arg1: i32) -> (i32, i32, i32, i32, i32) {
    %c0_i32 = arith.constant 0 : i32
    %c0_i32_0 = arith.constant 0 : i32
    %c0_i32_1 = arith.constant 0 : i32
    %c0_i32_2 = arith.constant 0 : i32
    %c0_i32_3 = arith.constant 0 : i32
    return %arg0, %c0_i32, %c0_i32_0, %c0_i32_1, %c0_i32_2 : i32, i32, i32, i32, i32
  }
  func.func @transform_1(%arg0: i32, %arg1: i32) -> (i32, i32) {
    %c0_i32 = arith.constant 0 : i32
    %c0_i32_0 = arith.constant 0 : i32
    %c0_i32_1 = arith.constant 0 : i32
    return %c0_i32, %c0_i32_0 : i32, i32
  }
  func.func @transform_2(%arg0: i32, %arg1: i32) -> (i32, i32, i32, i32) {
    %c0_i32 = arith.constant 0 : i32
    %c0_i32_0 = arith.constant 0 : i32
    %c0_i32_1 = arith.constant 0 : i32
    return %arg0, %arg1, %c0_i32, %c0_i32_0 : i32, i32, i32, i32
  }
  func.func @transform_3(%arg0: i32, %arg1: i32) -> (i32, i32, i32) {
    %c1_i32 = arith.constant 1 : i32
    %0 = arith.muli %arg0, %c1_i32 : i32
    %1 = arith.addi %0, %arg1 : i32
    %c0_i32 = arith.constant 0 : i32
    %c0_i32_0 = arith.constant 0 : i32
    %c0_i32_1 = arith.constant 0 : i32
    return %1, %c0_i32, %c0_i32_0 : i32, i32, i32
  }
  func.func @transform_4(%arg0: i32, %arg1: i32) -> (i32, i32, i32) {
    %c1_i32 = arith.constant 1 : i32
    %0 = arith.muli %arg0, %c1_i32 : i32
    %1 = arith.addi %0, %arg1 : i32
    %c0_i32 = arith.constant 0 : i32
    %c0_i32_0 = arith.constant 0 : i32
    %c0_i32_1 = arith.constant 0 : i32
    return %1, %c0_i32, %c0_i32_0 : i32, i32, i32
  }
}

module attributes {stable_mosaic.version = 11 : i64} {
  func.func @kernel(%arg0: i32, %arg1: memref<1x8x8x128xbf16, #tpu.memory_space<vmem>>, %arg2: memref<1x128xf32, #tpu.memory_space<vmem>>, %arg3: memref<1x128xf32, #tpu.memory_space<vmem>>, %arg4: memref<1x1x10x10x128xbf16, #tpu.memory_space<vmem>>) attributes {dimension_semantics = [#tpu.dimension_semantics<parallel>], iteration_bounds = array<i64: 2>, scalar_prefetch = 0 : i64, scratch_operands = 0 : i64, tpu.core_type = #tpu.core_type<tc>, window_params = [{transform_indices = @transform_0, window_bounds = array<i64: 1, 8, 8, 128>}, {pipeline_mode = #tpu.pipeline_mode<synchronous>, transform_indices = @transform_1, window_bounds = array<i64: 1, 128>}, {pipeline_mode = #tpu.pipeline_mode<synchronous>, transform_indices = @transform_2, window_bounds = array<i64: 1, 128>}, {transform_indices = @transform_3, window_bounds = array<i64: 1, 1, 10, 10, 128>}]} {
    %cst = arith.constant 0.000000e+00 : bf16
    %0 = vector.broadcast %cst : bf16 to vector<1x1x10x10x128xbf16>
    %c0 = arith.constant 0 : index
    %c0_0 = arith.constant 0 : index
    %c0_1 = arith.constant 0 : index
    %c0_2 = arith.constant 0 : index
    %c0_3 = arith.constant 0 : index
    %1 = vector.load %arg4[%c0, %c0_0, %c0_1, %c0_2, %c0_3] : memref<1x1x10x10x128xbf16, #tpu.memory_space<vmem>>, vector<1x1x10x10x128xbf16>
    tpu.vector_store %arg4[%c0, %c0_0, %c0_1, %c0_2, %c0_3], %0 {strides = array<i32>} : memref<1x1x10x10x128xbf16, #tpu.memory_space<vmem>>, vector<1x1x10x10x128xbf16>,
    %c0_4 = arith.constant 0 : index
    %c0_5 = arith.constant 0 : index
    %c0_6 = arith.constant 0 : index
    %c0_7 = arith.constant 0 : index
    %2 = vector.load %arg1[%c0_4, %c0_5, %c0_6, %c0_7] : memref<1x8x8x128xbf16, #tpu.memory_space<vmem>>, vector<1x8x8x128xbf16>
    %3 = arith.extf %2 : vector<1x8x8x128xbf16> to vector<1x8x8x128xf32>
    %c0_8 = arith.constant 0 : index
    %c0_9 = arith.constant 0 : index
    %4 = vector.load %arg2[%c0_8, %c0_9] : memref<1x128xf32, #tpu.memory_space<vmem>>, vector<1x128xf32>
    %5 = vector.shape_cast %4 : vector<1x128xf32> to vector<1x1x1x128xf32>
    %6 = vector.broadcast %5 : vector<1x1x1x128xf32> to vector<1x8x8x128xf32>
    %7 = arith.mulf %3, %6 : vector<1x8x8x128xf32>
    %c0_10 = arith.constant 0 : index
    %c0_11 = arith.constant 0 : index
    %8 = vector.load %arg3[%c0_10, %c0_11] : memref<1x128xf32, #tpu.memory_space<vmem>>, vector<1x128xf32>
    %9 = vector.shape_cast %8 : vector<1x128xf32> to vector<1x1x1x128xf32>
    %10 = vector.broadcast %9 : vector<1x1x1x128xf32> to vector<1x8x8x128xf32>
    %11 = arith.addf %7, %10 : vector<1x8x8x128xf32>
    %cst_12 = arith.constant 0.000000e+00 : f32
    %12 = vector.broadcast %cst_12 : f32 to vector<1x8x8x128xf32>
    %13 = arith.cmpf oge, %11, %12 : vector<1x8x8x128xf32>
    %cst_13 = arith.constant 0.00999999977 : f32
    %14 = vector.broadcast %cst_13 : f32 to vector<1x8x8x128xf32>
    %15 = arith.mulf %14, %11 : vector<1x8x8x128xf32>
    %16 = arith.select %13, %11, %15 : vector<1x8x8x128xi1>, vector<1x8x8x128xf32>
    %17 = arith.truncf %16 : vector<1x8x8x128xf32> to vector<1x8x8x128xbf16>
    %18 = vector.shape_cast %17 : vector<1x8x8x128xbf16> to vector<1x1x8x8x128xbf16>
    %c0_14 = arith.constant 0 : index
    %c0_15 = arith.constant 0 : index
    %c1 = arith.constant 1 : index
    %c1_16 = arith.constant 1 : index
    %c0_17 = arith.constant 0 : index
    %19 = vector.load %arg4[%c0_14, %c0_15, %c1, %c1_16, %c0_17] : memref<1x1x10x10x128xbf16, #tpu.memory_space<vmem>>, vector<1x1x8x8x128xbf16>
    tpu.vector_store %arg4[%c0_14, %c0_15, %c1, %c1_16, %c0_17], %18 {strides = array<i32>} : memref<1x1x10x10x128xbf16, #tpu.memory_space<vmem>>, vector<1x1x8x8x128xbf16>,
    return
  }
  func.func @transform_0(%arg0: i32) -> (i32, i32, i32, i32) {
    %c0_i32 = arith.constant 0 : i32
    %c0_i32_0 = arith.constant 0 : i32
    %c0_i32_1 = arith.constant 0 : i32
    %c0_i32_2 = arith.constant 0 : i32
    return %arg0, %c0_i32, %c0_i32_0, %c0_i32_1 : i32, i32, i32, i32
  }
  func.func @transform_1(%arg0: i32) -> (i32, i32) {
    %c0_i32 = arith.constant 0 : i32
    %c0_i32_0 = arith.constant 0 : i32
    %c0_i32_1 = arith.constant 0 : i32
    return %c0_i32, %c0_i32_0 : i32, i32
  }
  func.func @transform_2(%arg0: i32) -> (i32, i32) {
    %c0_i32 = arith.constant 0 : i32
    %c0_i32_0 = arith.constant 0 : i32
    %c0_i32_1 = arith.constant 0 : i32
    return %c0_i32, %c0_i32_0 : i32, i32
  }
  func.func @transform_3(%arg0: i32) -> (i32, i32, i32, i32, i32) {
    %c0_i32 = arith.constant 0 : i32
    %c0_i32_0 = arith.constant 0 : i32
    %c0_i32_1 = arith.constant 0 : i32
    %c0_i32_2 = arith.constant 0 : i32
    %c0_i32_3 = arith.constant 0 : i32
    return %arg0, %c0_i32, %c0_i32_0, %c0_i32_1, %c0_i32_2 : i32, i32, i32, i32, i32
  }
}

module attributes {stable_mosaic.version = 11 : i64} {
  func.func @kernel(%arg0: i32, %arg1: memref<128x128xbf16, #tpu.memory_space<vmem>>, %arg2: memref<1x128xf32, #tpu.memory_space<vmem>>, %arg3: memref<1x128xf32, #tpu.memory_space<vmem>>, %arg4: memref<128x128xf32, #tpu.memory_space<vmem>>) attributes {dimension_semantics = [#tpu.dimension_semantics<parallel>], iteration_bounds = array<i64: 1>, scalar_prefetch = 0 : i64, scratch_operands = 0 : i64, tpu.core_type = #tpu.core_type<tc>, window_params = [{transform_indices = @transform_0, window_bounds = array<i64: 128, 128>}, {pipeline_mode = #tpu.pipeline_mode<synchronous>, transform_indices = @transform_1, window_bounds = array<i64: 1, 128>}, {pipeline_mode = #tpu.pipeline_mode<synchronous>, transform_indices = @transform_2, window_bounds = array<i64: 1, 128>}, {transform_indices = @transform_3, window_bounds = array<i64: 128, 128>}]} {
    %c0 = arith.constant 0 : index
    %c0_0 = arith.constant 0 : index
    %0 = vector.load %arg1[%c0, %c0_0] : memref<128x128xbf16, #tpu.memory_space<vmem>>, vector<128x128xbf16>
    %1 = arith.extf %0 : vector<128x128xbf16> to vector<128x128xf32>
    %c0_1 = arith.constant 0 : index
    %c0_2 = arith.constant 0 : index
    %2 = vector.load %arg2[%c0_1, %c0_2] : memref<1x128xf32, #tpu.memory_space<vmem>>, vector<1x128xf32>
    %3 = vector.broadcast %2 : vector<1x128xf32> to vector<128x128xf32>
    %4 = arith.mulf %1, %3 : vector<128x128xf32>
    %c0_3 = arith.constant 0 : index
    %c0_4 = arith.constant 0 : index
    %5 = vector.load %arg3[%c0_3, %c0_4] : memref<1x128xf32, #tpu.memory_space<vmem>>, vector<1x128xf32>
    %6 = vector.broadcast %5 : vector<1x128xf32> to vector<128x128xf32>
    %7 = arith.addf %4, %6 : vector<128x128xf32>
    %cst = arith.constant 0.000000e+00 : f32
    %8 = vector.broadcast %cst : f32 to vector<128x128xf32>
    %9 = arith.cmpf oge, %7, %8 : vector<128x128xf32>
    %cst_5 = arith.constant 0.00999999977 : f32
    %10 = vector.broadcast %cst_5 : f32 to vector<128x128xf32>
    %11 = arith.mulf %10, %7 : vector<128x128xf32>
    %12 = arith.select %9, %7, %11 : vector<128x128xi1>, vector<128x128xf32>
    %c0_6 = arith.constant 0 : index
    %c0_7 = arith.constant 0 : index
    %13 = vector.load %arg4[%c0_6, %c0_7] : memref<128x128xf32, #tpu.memory_space<vmem>>, vector<128x128xf32>
    tpu.vector_store %arg4[%c0_6, %c0_7], %12 {strides = array<i32>} : memref<128x128xf32, #tpu.memory_space<vmem>>, vector<128x128xf32>,
    return
  }
  func.func @transform_0(%arg0: i32) -> (i32, i32) {
    %c0_i32 = arith.constant 0 : i32
    %c0_i32_0 = arith.constant 0 : i32
    return %arg0, %c0_i32 : i32, i32
  }
  func.func @transform_1(%arg0: i32) -> (i32, i32) {
    %c0_i32 = arith.constant 0 : i32
    %c0_i32_0 = arith.constant 0 : i32
    %c0_i32_1 = arith.constant 0 : i32
    return %c0_i32, %c0_i32_0 : i32, i32
  }
  func.func @transform_2(%arg0: i32) -> (i32, i32) {
    %c0_i32 = arith.constant 0 : i32
    %c0_i32_0 = arith.constant 0 : i32
    %c0_i32_1 = arith.constant 0 : i32
    return %c0_i32, %c0_i32_0 : i32, i32
  }
  func.func @transform_3(%arg0: i32) -> (i32, i32) {
    %c0_i32 = arith.constant 0 : i32
    %c0_i32_0 = arith.constant 0 : i32
    return %arg0, %c0_i32 : i32, i32
  }
}

module attributes {stable_mosaic.version = 11 : i64} {
  func.func @kernel(%arg0: i32, %arg1: i32, %arg2: memref<2x1x10x10x128xbf16, #tpu.memory_space<vmem>>, %arg3: memref<1152x128xbf16, #tpu.memory_space<vmem>>, %arg4: memref<2x8x8x128xbf16, #tpu.memory_space<vmem>>, %arg5: memref<1x1x128xf32, #tpu.memory_space<vmem>>, %arg6: memref<1x1x128xf32, #tpu.memory_space<vmem>>) attributes {dimension_semantics = [#tpu.dimension_semantics<parallel>, #tpu.dimension_semantics<parallel>], iteration_bounds = array<i64: 1, 1>, scalar_prefetch = 0 : i64, scratch_operands = 0 : i64, tpu.core_type = #tpu.core_type<tc>, window_params = [{transform_indices = @transform_0, window_bounds = array<i64: 2, 1, 10, 10, 128>}, {pipeline_mode = #tpu.pipeline_mode<synchronous>, transform_indices = @transform_1, window_bounds = array<i64: 1152, 128>}, {transform_indices = @transform_2, window_bounds = array<i64: 2, 8, 8, 128>}, {transform_indices = @transform_3, window_bounds = array<i64: 1, 1, 128>}, {transform_indices = @transform_4, window_bounds = array<i64: 1, 1, 128>}]} {
    %c8_i32 = arith.constant 8 : i32
    %0 = arith.muli %arg1, %c8_i32 : i32
    %1 = tpu.assume_multiple %0, 8 : i32
    %c0_i32 = arith.constant 0 : i32
    %2 = arith.addi %1, %c0_i32 : i32
    %c0 = arith.constant 0 : index
    %c0_0 = arith.constant 0 : index
    %3 = arith.index_cast %2 : i32 to index
    %c0_1 = arith.constant 0 : index
    %c0_2 = arith.constant 0 : index
    %4 = vector.load %arg2[%c0, %c0_0, %3, %c0_1, %c0_2] : memref<2x1x10x10x128xbf16, #tpu.memory_space<vmem>>, vector<2x1x8x8x128xbf16>
    %5 = vector.shape_cast %4 : vector<2x1x8x8x128xbf16> to vector<2x8x8x128xbf16>
    %c0_i32_3 = arith.constant 0 : i32
    %6 = arith.addi %1, %c0_i32_3 : i32
    %c0_4 = arith.constant 0 : index
    %c0_5 = arith.constant 0 : index
    %7 = arith.index_cast %6 : i32 to index
    %c1 = arith.constant 1 : index
    %c0_6 = arith.constant 0 : index
    %8 = vector.load %arg2[%c0_4, %c0_5, %7, %c1, %c0_6] : memref<2x1x10x10x128xbf16, #tpu.memory_space<vmem>>, vector<2x1x8x8x128xbf16>
    %9 = vector.shape_cast %8 : vector<2x1x8x8x128xbf16> to vector<2x8x8x128xbf16>
    %c0_i32_7 = arith.constant 0 : i32
    %10 = arith.addi %1, %c0_i32_7 : i32
    %c0_8 = arith.constant 0 : index
    %c0_9 = arith.constant 0 : index
    %11 = arith.index_cast %10 : i32 to index
    %c2 = arith.constant 2 : index
    %c0_10 = arith.constant 0 : index
    %12 = vector.load %arg2[%c0_8, %c0_9, %11, %c2, %c0_10] : memref<2x1x10x10x128xbf16, #tpu.memory_space<vmem>>, vector<2x1x8x8x128xbf16>
    %13 = vector.shape_cast %12 : vector<2x1x8x8x128xbf16> to vector<2x8x8x128xbf16>
    %c1_i32 = arith.constant 1 : i32
    %14 = arith.addi %1, %c1_i32 : i32
    %c0_11 = arith.constant 0 : index
    %c0_12 = arith.constant 0 : index
    %15 = arith.index_cast %14 : i32 to index
    %c0_13 = arith.constant 0 : index
    %c0_14 = arith.constant 0 : index
    %16 = vector.load %arg2[%c0_11, %c0_12, %15, %c0_13, %c0_14] : memref<2x1x10x10x128xbf16, #tpu.memory_space<vmem>>, vector<2x1x8x8x128xbf16>
    %17 = vector.shape_cast %16 : vector<2x1x8x8x128xbf16> to vector<2x8x8x128xbf16>
    %c1_i32_15 = arith.constant 1 : i32
    %18 = arith.addi %1, %c1_i32_15 : i32
    %c0_16 = arith.constant 0 : index
    %c0_17 = arith.constant 0 : index
    %19 = arith.index_cast %18 : i32 to index
    %c1_18 = arith.constant 1 : index
    %c0_19 = arith.constant 0 : index
    %20 = vector.load %arg2[%c0_16, %c0_17, %19, %c1_18, %c0_19] : memref<2x1x10x10x128xbf16, #tpu.memory_space<vmem>>, vector<2x1x8x8x128xbf16>
    %21 = vector.shape_cast %20 : vector<2x1x8x8x128xbf16> to vector<2x8x8x128xbf16>
    %c1_i32_20 = arith.constant 1 : i32
    %22 = arith.addi %1, %c1_i32_20 : i32
    %c0_21 = arith.constant 0 : index
    %c0_22 = arith.constant 0 : index
    %23 = arith.index_cast %22 : i32 to index
    %c2_23 = arith.constant 2 : index
    %c0_24 = arith.constant 0 : index
    %24 = vector.load %arg2[%c0_21, %c0_22, %23, %c2_23, %c0_24] : memref<2x1x10x10x128xbf16, #tpu.memory_space<vmem>>, vector<2x1x8x8x128xbf16>
    %25 = vector.shape_cast %24 : vector<2x1x8x8x128xbf16> to vector<2x8x8x128xbf16>
    %c2_i32 = arith.constant 2 : i32
    %26 = arith.addi %1, %c2_i32 : i32
    %c0_25 = arith.constant 0 : index
    %c0_26 = arith.constant 0 : index
    %27 = arith.index_cast %26 : i32 to index
    %c0_27 = arith.constant 0 : index
    %c0_28 = arith.constant 0 : index
    %28 = vector.load %arg2[%c0_25, %c0_26, %27, %c0_27, %c0_28] : memref<2x1x10x10x128xbf16, #tpu.memory_space<vmem>>, vector<2x1x8x8x128xbf16>
    %29 = vector.shape_cast %28 : vector<2x1x8x8x128xbf16> to vector<2x8x8x128xbf16>
    %c2_i32_29 = arith.constant 2 : i32
    %30 = arith.addi %1, %c2_i32_29 : i32
    %c0_30 = arith.constant 0 : index
    %c0_31 = arith.constant 0 : index
    %31 = arith.index_cast %30 : i32 to index
    %c1_32 = arith.constant 1 : index
    %c0_33 = arith.constant 0 : index
    %32 = vector.load %arg2[%c0_30, %c0_31, %31, %c1_32, %c0_33] : memref<2x1x10x10x128xbf16, #tpu.memory_space<vmem>>, vector<2x1x8x8x128xbf16>
    %33 = vector.shape_cast %32 : vector<2x1x8x8x128xbf16> to vector<2x8x8x128xbf16>
    %c2_i32_34 = arith.constant 2 : i32
    %34 = arith.addi %1, %c2_i32_34 : i32
    %c0_35 = arith.constant 0 : index
    %c0_36 = arith.constant 0 : index
    %35 = arith.index_cast %34 : i32 to index
    %c2_37 = arith.constant 2 : index
    %c0_38 = arith.constant 0 : index
    %36 = vector.load %arg2[%c0_35, %c0_36, %35, %c2_37, %c0_38] : memref<2x1x10x10x128xbf16, #tpu.memory_space<vmem>>, vector<2x1x8x8x128xbf16>
    %37 = vector.shape_cast %36 : vector<2x1x8x8x128xbf16> to vector<2x8x8x128xbf16>
    %38 = tpu.concatenate %5, %9, %13, %17, %21, %25, %29, %33, %37 in 3 : vector<2x8x8x128xbf16>, vector<2x8x8x128xbf16>, vector<2x8x8x128xbf16>, vector<2x8x8x128xbf16>, vector<2x8x8x128xbf16>, vector<2x8x8x128xbf16>, vector<2x8x8x128xbf16>, vector<2x8x8x128xbf16>, vector<2x8x8x128xbf16> -> vector<2x8x8x1152xbf16>
    %39 = arith.extf %38 : vector<2x8x8x1152xbf16> to vector<2x8x8x1152xf32>
    %40 = vector.shape_cast %39 : vector<2x8x8x1152xf32> to vector<128x1152xf32>
    %41 = arith.truncf %40 : vector<128x1152xf32> to vector<128x1152xbf16>
    %c0_39 = arith.constant 0 : index
    %c0_40 = arith.constant 0 : index
    %42 = vector.load %arg3[%c0_39, %c0_40] : memref<1152x128xbf16, #tpu.memory_space<vmem>>, vector<1152x128xbf16>
    %cst = arith.constant dense<0.000000e+00> : vector<128x128xf32>
    %43 = tpu.matmul %41, %42, %cst {dimension_numbers = #tpu.dot_dimension_numbers<[1], [0], [0], [1], [0, 0, 1, 1], [], []>} : vector<128x1152xbf16>, vector<1152x128xbf16>, vector<128x128xf32> -> vector<128x128xf32>
    %44 = vector.shape_cast %43 : vector<128x128xf32> to vector<2x8x8x128xf32>
    %45 = arith.truncf %44 : vector<2x8x8x128xf32> to vector<2x8x8x128xbf16>
    %c0_41 = arith.constant 0 : index
    %c0_42 = arith.constant 0 : index
    %c0_43 = arith.constant 0 : index
    %c0_44 = arith.constant 0 : index
    %46 = vector.load %arg4[%c0_41, %c0_42, %c0_43, %c0_44] : memref<2x8x8x128xbf16, #tpu.memory_space<vmem>>, vector<2x8x8x128xbf16>
    tpu.vector_store %arg4[%c0_41, %c0_42, %c0_43, %c0_44], %45 {strides = array<i32>} : memref<2x8x8x128xbf16, #tpu.memory_space<vmem>>, vector<2x8x8x128xbf16>,
    %cst_45 = arith.constant dense<0.000000e+00> : vector<128xf32>
    %47 = vector.multi_reduction <add>, %43, %cst_45 [0] : vector<128x128xf32> to vector<128xf32>
    %48 = vector.shape_cast %47 : vector<128xf32> to vector<1x128xf32>
    %49 = vector.shape_cast %48 : vector<1x128xf32> to vector<1x1x128xf32>
    %c0_46 = arith.constant 0 : index
    %c0_47 = arith.constant 0 : index
    %c0_48 = arith.constant 0 : index
    %50 = vector.load %arg5[%c0_46, %c0_47, %c0_48] : memref<1x1x128xf32, #tpu.memory_space<vmem>>, vector<1x1x128xf32>
    tpu.vector_store %arg5[%c0_46, %c0_47, %c0_48], %49 {strides = array<i32>} : memref<1x1x128xf32, #tpu.memory_space<vmem>>, vector<1x1x128xf32>,
    %51 = arith.mulf %43, %43 : vector<128x128xf32>
    %cst_49 = arith.constant dense<0.000000e+00> : vector<128xf32>
    %52 = vector.multi_reduction <add>, %51, %cst_49 [0] : vector<128x128xf32> to vector<128xf32>
    %53 = vector.shape_cast %52 : vector<128xf32> to vector<1x128xf32>
    %54 = vector.shape_cast %53 : vector<1x128xf32> to vector<1x1x128xf32>
    %c0_50 = arith.constant 0 : index
    %c0_51 = arith.constant 0 : index
    %c0_52 = arith.constant 0 : index
    %55 = vector.load %arg6[%c0_50, %c0_51, %c0_52] : memref<1x1x128xf32, #tpu.memory_space<vmem>>, vector<1x1x128xf32>
    tpu.vector_store %arg6[%c0_50, %c0_51, %c0_52], %54 {strides = array<i32>} : memref<1x1x128xf32, #tpu.memory_space<vmem>>, vector<1x1x128xf32>,
    return
  }
  func.func @transform_0(%arg0: i32, %arg1: i32) -> (i32, i32, i32, i32, i32) {
    %c0_i32 = arith.constant 0 : i32
    %c0_i32_0 = arith.constant 0 : i32
    %c0_i32_1 = arith.constant 0 : i32
    %c0_i32_2 = arith.constant 0 : i32
    %c0_i32_3 = arith.constant 0 : i32
    return %arg0, %c0_i32, %c0_i32_0, %c0_i32_1, %c0_i32_2 : i32, i32, i32, i32, i32
  }
  func.func @transform_1(%arg0: i32, %arg1: i32) -> (i32, i32) {
    %c0_i32 = arith.constant 0 : i32
    %c0_i32_0 = arith.constant 0 : i32
    %c0_i32_1 = arith.constant 0 : i32
    return %c0_i32, %c0_i32_0 : i32, i32
  }
  func.func @transform_2(%arg0: i32, %arg1: i32) -> (i32, i32, i32, i32) {
    %c0_i32 = arith.constant 0 : i32
    %c0_i32_0 = arith.constant 0 : i32
    %c0_i32_1 = arith.constant 0 : i32
    return %arg0, %arg1, %c0_i32, %c0_i32_0 : i32, i32, i32, i32
  }
  func.func @transform_3(%arg0: i32, %arg1: i32) -> (i32, i32, i32) {
    %c1_i32 = arith.constant 1 : i32
    %0 = arith.muli %arg0, %c1_i32 : i32
    %1 = arith.addi %0, %arg1 : i32
    %c0_i32 = arith.constant 0 : i32
    %c0_i32_0 = arith.constant 0 : i32
    %c0_i32_1 = arith.constant 0 : i32
    return %1, %c0_i32, %c0_i32_0 : i32, i32, i32
  }
  func.func @transform_4(%arg0: i32, %arg1: i32) -> (i32, i32, i32) {
    %c1_i32 = arith.constant 1 : i32
    %0 = arith.muli %arg0, %c1_i32 : i32
    %1 = arith.addi %0, %arg1 : i32
    %c0_i32 = arith.constant 0 : i32
    %c0_i32_0 = arith.constant 0 : i32
    %c0_i32_1 = arith.constant 0 : i32
    return %1, %c0_i32, %c0_i32_0 : i32, i32, i32
  }
}

</mosaic_0001>

<llo_original>
// kernel: conv_cell_forward.5
$region0: #{conv_cell_forward.5}
  #allocation0 [shape = 'u32[]', space=smem, size = 0x4, offset = 0x4, fixed_abs, tag = 'smem constant byte address 0x4 - core index']
  #allocation1 [shape = 'u32[72,128]{1,0:T(1,128)}', space=vmem, size = 0x9000, scoped, tag = 'internal scratch']
  %s0 = inlined_call_operand.vmem [shape: bf16[2,8,8,128], index: 0, kind: input, shape index: {}]
  %s1 = inlined_call_operand.vmem [shape: f32[1,128], index: 1, kind: input, shape index: {}]
  %s2 = inlined_call_operand.vmem [shape: f32[1,128], index: 2, kind: input, shape index: {}]
  %s3 = inlined_call_operand.vmem [shape: bf16[2,1,10,10,128], index: 3, kind: output, shape index: {}]
  %s4 = sld [smem:[#allocation0]]
  $region45: #{conv_cell_forward.5} parent=0
    _
  %s6 = ssub.s32 1, %s4
  %s7 = scalar_select 0, %s6, %s4
  loop: start=0, step=1, limit=4
  $region2: #{conv_cell_forward.5} parent=0 // loop_pre_header
    _
  $region3: #{conv_cell_forward.5} parent=0 // loop_header
    %s9 = sphi 0, %s13
    %p10 = scmp.ge.s32.totalorder %s9, 4
    %s19 = sphi 0, %s21
    %s22 = sphi 0, %s19
    %s23 = sphi 0, %s22
    %s39 = sphi 0, %s23
    %s43 = sphi 0, %s43
    %s45 = sphi 0, %s43
    %s46 = sphi 0, %s45
    %s60 = sphi 0, %s46
    %s64 = sphi 0, %s64
    %s66 = sphi 0, %s64
    %s67 = sphi 0, %s66
    %s81 = sphi 0, %s67
    %s87 = sphi 0, %s89
    %s90 = sphi 0, %s87
    %s91 = sphi 0, %s90
    %s107 = sphi 0, %s91
  $region4: #{conv_cell_forward.5} parent=0 // loop_header_branch
    %12 = sbr.rel (%p10) target = $region8
  $region5: #{conv_cell_forward.5} parent=0 // loop_body
    %s14 = ssub.s32 %s9, 1
    %s15 = ssub.s32 %s9, 2
    %s16 = sadd.s32 %s9, 1
    %s17 = ssub.s32 %s9, %s16
    %p18 = scmp.eq.s32.totalorder %s17, 0
    %s20 = sadd.s32 %s19, 1
    %s21 = scalar_select %p18, %s19, %s20
    %p24 = pneg %p18
    %p25 = scmp.eq.s32.totalorder %s9, 1
    %p26 = por %p24, %p25
    %p27 = scmp.ne.s32.totalorder %s19, %s22
    %p28 = scmp.eq.s32.totalorder %s9, 0
    %p29 = por %p27, %p28
    %p30 = scmp.ne.s32.totalorder %s19, %s22
    %p31 = scmp.eq.s32.totalorder %s14, 1
    %p32 = por %p30, %p31
    %p33 = scmp.ne.s32.totalorder %s22, %s23
    %p34 = scmp.eq.s32.totalorder %s14, 0
    %p35 = por %p33, %p34
    %p36 = scmp.ne.s32.totalorder %s22, %s23
    %p37 = scmp.eq.s32.totalorder %s15, 1
    %p38 = por %p36, %p37
    %p40 = scmp.ne.s32.totalorder %s23, %s39
    %p41 = scmp.eq.s32.totalorder %s15, 0
    %p42 = por %p40, %p41
    %s44 = sadd.s32 %s43, 1
    %p47 = scmp.eq.s32.totalorder %s9, 1
    %p48 = scmp.ne.s32.totalorder %s43, %s45
    %p49 = scmp.eq.s32.totalorder %s9, 0
    %p50 = por %p48, %p49
    %p51 = scmp.ne.s32.totalorder %s43, %s45
    %p52 = scmp.eq.s32.totalorder %s14, 1
    %p53 = por %p51, %p52
    %p54 = scmp.ne.s32.totalorder %s45, %s46
    %p55 = scmp.eq.s32.totalorder %s14, 0
    %p56 = por %p54, %p55
    %p57 = scmp.ne.s32.totalorder %s45, %s46
    %p58 = scmp.eq.s32.totalorder %s15, 1
    %p59 = por %p57, %p58
    %p61 = scmp.ne.s32.totalorder %s46, %s60
    %p62 = scmp.eq.s32.totalorder %s15, 0
    %p63 = por %p61, %p62
    %s65 = sadd.s32 %s64, 1
    %p68 = scmp.eq.s32.totalorder %s9, 1
    %p69 = scmp.ne.s32.totalorder %s64, %s66
    %p70 = scmp.eq.s32.totalorder %s9, 0
    %p71 = por %p69, %p70
    %p72 = scmp.ne.s32.totalorder %s64, %s66
    %p73 = scmp.eq.s32.totalorder %s14, 1
    %p74 = por %p72, %p73
    %p75 = scmp.ne.s32.totalorder %s66, %s67
    %p76 = scmp.eq.s32.totalorder %s14, 0
    %p77 = por %p75, %p76
    %p78 = scmp.ne.s32.totalorder %s66, %s67
    %p79 = scmp.eq.s32.totalorder %s15, 1
    %p80 = por %p78, %p79
    %p82 = scmp.ne.s32.totalorder %s67, %s81
    %p83 = scmp.eq.s32.totalorder %s15, 0
    %p84 = por %p82, %p83
    %s85 = ssub.s32 %s9, %s16
    %p86 = scmp.eq.s32.totalorder %s85, 0
    %s88 = sadd.s32 %s87, 1
    %s89 = scalar_select %p86, %s87, %s88
    %p92 = pneg %p86
    %p93 = scmp.eq.s32.totalorder %s9, 1
    %p94 = por %p92, %p93
    %p95 = scmp.ne.s32.totalorder %s87, %s90
    %p96 = scmp.eq.s32.totalorder %s9, 0
    %p97 = por %p95, %p96
    %p98 = scmp.ne.s32.totalorder %s87, %s90
    %p99 = scmp.eq.s32.totalorder %s14, 1
    %p100 = por %p98, %p99
    %p101 = scmp.ne.s32.totalorder %s90, %s91
    %p102 = scmp.eq.s32.totalorder %s14, 0
    %p103 = por %p101, %p102
    %p104 = scmp.ne.s32.totalorder %s90, %s91
    %p105 = scmp.eq.s32.totalorder %s15, 1
    %p106 = por %p104, %p105
    %p108 = scmp.ne.s32.totalorder %s91, %s107
    %p109 = scmp.eq.s32.totalorder %s15, 0
    %p110 = por %p108, %p109
    %p111 = scmp.le.s32.totalorder 1, %s9
    %p112 = scmp.lt.s32.totalorder %s9, 3
    %p113 = pnand %p111, %p112
    %p114 = pneg %p113
    // Predicated region
    $region9: #{conv_cell_forward.5} parent=5 // pred_check
      _
    $region10: #{conv_cell_forward.5} parent=5 // pred_check_branch
      %116 = sbr.rel (%p113) target = $region12
    $region11: #{conv_cell_forward.5} parent=5 // pred_region
      %s117 = ssub.s32 %s9, 1
      // Predicated region
      $region13: #{conv_cell_forward.5} parent=11 // pred_check
        %p118 = pneg %p56
      $region14: #{conv_cell_forward.5} parent=11 // pred_check_branch
        %120 = sbr.rel (%p118) target = $region16
      $region15: #{conv_cell_forward.5} parent=11 // pred_region
        _
      $region16: #{conv_cell_forward.5} parent=11 // pred_fallthru
        _
      // Predicated region
      $region17: #{conv_cell_forward.5} parent=11 // pred_check
        %p121 = pneg %p77
      $region18: #{conv_cell_forward.5} parent=11 // pred_check_branch
        %123 = sbr.rel (%p121) target = $region20
      $region19: #{conv_cell_forward.5} parent=11 // pred_region
        _
      $region20: #{conv_cell_forward.5} parent=11 // pred_fallthru
        _
    $region12: #{conv_cell_forward.5} parent=5 // pred_fallthru
      _
    %p124 = scmp.lt.s32.totalorder %s9, 2
    // Predicated region
    $region21: #{conv_cell_forward.5} parent=5 // pred_check
      %p125 = pneg %p124
    $region22: #{conv_cell_forward.5} parent=5 // pred_check_branch
      %127 = sbr.rel (%p125) target = $region24
    $region23: #{conv_cell_forward.5} parent=5 // pred_region
      // Predicated region
      $region25: #{conv_cell_forward.5} parent=23 // pred_check
        %p128 = pneg %p29
      $region26: #{conv_cell_forward.5} parent=23 // pred_check_branch
        %130 = sbr.rel (%p128) target = $region28
      $region27: #{conv_cell_forward.5} parent=23 // pred_region
        %p131 = scmp.lt.s32.totalorder %s9, 1
        %s132 = scalar_select %p131, %s9, 1
        %s133 = smul.addr %s132, 8
        %s134 = smul.addr %s133, 4
        %s135 = scalar_lea.vmem %s0, %s134
      $region28: #{conv_cell_forward.5} parent=23 // pred_fallthru
        _
    $region24: #{conv_cell_forward.5} parent=5 // pred_fallthru
      _
    %p136 = scmp.le.s32.totalorder 1, %s9
    %p137 = scmp.lt.s32.totalorder %s9, 3
    %p138 = pnand %p136, %p137
    %p139 = pneg %p138
    // Predicated region
    $region29: #{conv_cell_forward.5} parent=5 // pred_check
      _
    $region30: #{conv_cell_forward.5} parent=5 // pred_check_branch
      %141 = sbr.rel (%p138) target = $region32
    $region31: #{conv_cell_forward.5} parent=5 // pred_region
      %s142 = ssub.s32 %s9, 1
      %p143 = scmp.lt.s32.totalorder %s14, 1
      %s144 = scalar_select %p143, %s14, 1
      %s145 = smul.addr %s144, 8
      %s146 = smul.addr %s145, 4
      %s147 = scalar_lea.vmem %s0, %s146
      %p148 = pneg %p35
      %p149 = pneg %p32
      %p150 = pneg %p56
      %p151 = pneg %p53
      %p152 = pneg %p77
      %p153 = pneg %p74
      %p154 = pneg %p103
      %p155 = pneg %p100
      %p156 = scmp.lt.s32.totalorder %s14, 1
      %s157 = scalar_select %p156, %s14, 1
      %s158 = smul.addr %s157, 20
      %s159 = smul.addr %s158, 4
      %s160 = scalar_lea.vmem %s3, %s159
      %p161 = scmp.lt.s32.totalorder %s14, 1
      %s162 = scalar_select %p161, %s14, 1
      %s163 = smul.addr %s162, 8
      %s164 = smul.addr %s163, 4
      %s165 = scalar_lea.vmem %s0, %s164
      %p166 = scmp.lt.s32.totalorder %s14, 1
      %s167 = scalar_select %p166, %s14, 1
      %s168 = smul.addr %s167, 20
      %s169 = smul.addr %s168, 4
      %s170 = scalar_lea.vmem %s3, %s169
      %172 = vst [vmem:[%s170] sm:$0xf] 0
      %173 = vst [vmem:[%s170 + $0x4] sm:$0x1] 0
      %174 = vst [vmem:[%s170 + $0x8] sm:$0xf] 0
      %175 = vst [vmem:[%s170 + $0xc] sm:$0x1] 0
      %176 = vst [vmem:[%s170 + $0x10] sm:$0xf] 0
      %177 = vst [vmem:[%s170 + $0x14] sm:$0x1] 0
      %178 = vst [vmem:[%s170 + $0x18] sm:$0xf] 0
      %179 = vst [vmem:[%s170 + $0x1c] sm:$0x1] 0
      %180 = vst [vmem:[%s170 + $0x20] sm:$0xf] 0
      %181 = vst [vmem:[%s170 + $0x24] sm:$0x1] 0
      %182 = vst [vmem:[%s170 + $0x28] sm:$0xf] 0
      %183 = vst [vmem:[%s170 + $0x2c] sm:$0x1] 0
      %184 = vst [vmem:[%s170 + $0x30] sm:$0xf] 0
      %185 = vst [vmem:[%s170 + $0x34] sm:$0x1] 0
      %186 = vst [vmem:[%s170 + $0x38] sm:$0xf] 0
      %187 = vst [vmem:[%s170 + $0x3c] sm:$0x1] 0
      %188 = vst [vmem:[%s170 + $0x40] sm:$0xf] 0
      %189 = vst [vmem:[%s170 + $0x44] sm:$0x1] 0
      %190 = vst [vmem:[%s170 + $0x48] sm:$0xf] 0
      %191 = vst [vmem:[%s170 + $0x4c] sm:$0x1] 0
      %v192 = vld [vmem:[%s165] sm:$0xf]
      %v193 = vld [vmem:[%s165 + $0x4] sm:$0xf]
      %v194 = vld [vmem:[%s165 + $0x8] sm:$0xf]
      %v195 = vld [vmem:[%s165 + $0xc] sm:$0xf]
      %v196 = vld [vmem:[%s165 + $0x10] sm:$0xf]
      %v197 = vld [vmem:[%s165 + $0x14] sm:$0xf]
      %v198 = vld [vmem:[%s165 + $0x18] sm:$0xf]
      %v199 = vld [vmem:[%s165 + $0x1c] sm:$0xf]
      %v200 = vunpack.c.l.bf16 %v192
      %v201 = vunpack.c.l.bf16 %v193
      %v202 = vunpack.c.l.bf16 %v194
      %v203 = vunpack.c.l.bf16 %v195
      %v204 = vunpack.c.l.bf16 %v196
      %v205 = vunpack.c.l.bf16 %v197
      %v206 = vunpack.c.l.bf16 %v198
      %v207 = vunpack.c.l.bf16 %v199
      %v208 = vld [vmem:[%s1] sm:$0x1]
      %v210 = vperm.slane %v208, 0
      %v212 = vmul.f32 %v200, %v210
      %v213 = vmul.f32 %v201, %v210
      %v214 = vmul.f32 %v202, %v210
      %v215 = vmul.f32 %v203, %v210
      %v216 = vmul.f32 %v204, %v210
      %v217 = vmul.f32 %v205, %v210
      %v218 = vmul.f32 %v206, %v210
      %v219 = vmul.f32 %v207, %v210
      %v220 = vld [vmem:[%s2] sm:$0x1]
      %v222 = vperm.slane %v220, 0
      %v224 = vadd.f32 %v212, %v222
      %v225 = vadd.f32 %v213, %v222
      %v226 = vadd.f32 %v214, %v222
      %v227 = vadd.f32 %v215, %v222
      %v228 = vadd.f32 %v216, %v222
      %v229 = vadd.f32 %v217, %v222
      %v230 = vadd.f32 %v218, %v222
      %v231 = vadd.f32 %v219, %v222
      %vm232 = vcmp.ge.f32.partialorder %v224, 0.0
      %vm233 = vcmp.ge.f32.partialorder %v225, 0.0
      %vm234 = vcmp.ge.f32.partialorder %v226, 0.0
      %vm235 = vcmp.ge.f32.partialorder %v227, 0.0
      %vm236 = vcmp.ge.f32.partialorder %v228, 0.0
      %vm237 = vcmp.ge.f32.partialorder %v229, 0.0
      %vm238 = vcmp.ge.f32.partialorder %v230, 0.0
      %vm239 = vcmp.ge.f32.partialorder %v231, 0.0
      %v240 = vmul.f32 %v224, 0.01
      %v241 = vmul.f32 %v225, 0.01
      %v242 = vmul.f32 %v226, 0.01
      %v243 = vmul.f32 %v227, 0.01
      %v244 = vmul.f32 %v228, 0.01
      %v245 = vmul.f32 %v229, 0.01
      %v246 = vmul.f32 %v230, 0.01
      %v247 = vmul.f32 %v231, 0.01
      %v248 = vsel %vm232, %v224, %v240
      %v249 = vsel %vm233, %v225, %v241
      %v250 = vsel %vm234, %v226, %v242
      %v251 = vsel %vm235, %v227, %v243
      %v252 = vsel %vm236, %v228, %v244
      %v253 = vsel %vm237, %v229, %v245
      %v254 = vsel %vm238, %v230, %v246
      %v255 = vsel %vm239, %v231, %v247
      %v256 = vpack.c.bf16 %v248, %v248
      %v257 = vpack.c.bf16 %v249, %v249
      %v258 = vpack.c.bf16 %v250, %v250
      %v259 = vpack.c.bf16 %v251, %v251
      %v260 = vpack.c.bf16 %v252, %v252
      %v261 = vpack.c.bf16 %v253, %v253
      %v262 = vpack.c.bf16 %v254, %v254
      %v263 = vpack.c.bf16 %v255, %v255
      %v265 = vshrl.u32 %v256, 16
      %v267 = vrot.slane %v265, 7
      %v268 = vshll.u32 %v256, 16
      %v270 = vor.u32 %v267, %v268
      %v271 = vrot.slane %v267, 4
      %v273 = vshrl.u32 %v257, 16
      %v275 = vrot.slane %v273, 7
      %v276 = vshll.u32 %v257, 16
      %v278 = vor.u32 %v275, %v276
      %v279 = vrot.slane %v275, 4
      %v281 = vshrl.u32 %v258, 16
      %v283 = vrot.slane %v281, 7
      %v284 = vshll.u32 %v258, 16
      %v286 = vor.u32 %v283, %v284
      %v287 = vrot.slane %v283, 4
      %v289 = vshrl.u32 %v259, 16
      %v291 = vrot.slane %v289, 7
      %v292 = vshll.u32 %v259, 16
      %v294 = vor.u32 %v291, %v292
      %v295 = vrot.slane %v291, 4
      %v297 = vshrl.u32 %v260, 16
      %v299 = vrot.slane %v297, 7
      %v300 = vshll.u32 %v260, 16
      %v302 = vor.u32 %v299, %v300
      %v303 = vrot.slane %v299, 4
      %v305 = vshrl.u32 %v261, 16
      %v307 = vrot.slane %v305, 7
      %v308 = vshll.u32 %v261, 16
      %v310 = vor.u32 %v307, %v308
      %v311 = vrot.slane %v307, 4
      %v313 = vshrl.u32 %v262, 16
      %v315 = vrot.slane %v313, 7
      %v316 = vshll.u32 %v262, 16
      %v318 = vor.u32 %v315, %v316
      %v319 = vrot.slane %v315, 4
      %v321 = vshrl.u32 %v263, 16
      %v323 = vrot.slane %v321, 7
      %v324 = vshll.u32 %v263, 16
      %v326 = vor.u32 %v323, %v324
      %v327 = vrot.slane %v323, 4
      %s344 = scalar_lea.vmem %s170, 8
      %vm345 = vcmask 1043456
      %vm346 = vsmask.f32 7938
      %vm347 = vmand %vm345, %vm346
      %v348 = vld [vmem:[%s344] sm:$0xf]
      %v349 = vsel %vm347, %v270, %v348
      %350 = vst [vmem:[%s344] sm:$0xf] %v349
      %vm351 = vcmask 1040384
      %vm352 = vsmask.f32 256
      %vm353 = vmand %vm351, %vm352
      %v354 = vld [vmem:[%s344 + $0x4] sm:$0x1]
      %v355 = vsel %vm353, %v271, %v354
      %356 = vst [vmem:[%s344 + $0x4] sm:$0x1] %v355
      %v357 = vld [vmem:[%s344 + $0x8] sm:$0xf]
      %v358 = vsel %vm347, %v278, %v357
      %359 = vst [vmem:[%s344 + $0x8] sm:$0xf] %v358
      %v360 = vld [vmem:[%s344 + $0xc] sm:$0x1]
      %v361 = vsel %vm353, %v279, %v360
      %362 = vst [vmem:[%s344 + $0xc] sm:$0x1] %v361
      %v363 = vld [vmem:[%s344 + $0x10] sm:$0xf]
      %v364 = vsel %vm347, %v286, %v363
      %365 = vst [vmem:[%s344 + $0x10] sm:$0xf] %v364
      %v366 = vld [vmem:[%s344 + $0x14] sm:$0x1]
      %v367 = vsel %vm353, %v287, %v366
      %368 = vst [vmem:[%s344 + $0x14] sm:$0x1] %v367
      %v369 = vld [vmem:[%s344 + $0x18] sm:$0xf]
      %v370 = vsel %vm347, %v294, %v369
      %371 = vst [vmem:[%s344 + $0x18] sm:$0xf] %v370
      %v372 = vld [vmem:[%s344 + $0x1c] sm:$0x1]
      %v373 = vsel %vm353, %v295, %v372
      %374 = vst [vmem:[%s344 + $0x1c] sm:$0x1] %v373
      %v375 = vld [vmem:[%s344 + $0x20] sm:$0xf]
      %v376 = vsel %vm347, %v302, %v375
      %377 = vst [vmem:[%s344 + $0x20] sm:$0xf] %v376
      %v378 = vld [vmem:[%s344 + $0x24] sm:$0x1]
      %v379 = vsel %vm353, %v303, %v378
      %380 = vst [vmem:[%s344 + $0x24] sm:$0x1] %v379
      %v381 = vld [vmem:[%s344 + $0x28] sm:$0xf]
      %v382 = vsel %vm347, %v310, %v381
      %383 = vst [vmem:[%s344 + $0x28] sm:$0xf] %v382
      %v384 = vld [vmem:[%s344 + $0x2c] sm:$0x1]
      %v385 = vsel %vm353, %v311, %v384
      %386 = vst [vmem:[%s344 + $0x2c] sm:$0x1] %v385
      %v387 = vld [vmem:[%s344 + $0x30] sm:$0xf]
      %v388 = vsel %vm347, %v318, %v387
      %389 = vst [vmem:[%s344 + $0x30] sm:$0xf] %v388
      %v390 = vld [vmem:[%s344 + $0x34] sm:$0x1]
      %v391 = vsel %vm353, %v319, %v390
      %392 = vst [vmem:[%s344 + $0x34] sm:$0x1] %v391
      %v393 = vld [vmem:[%s344 + $0x38] sm:$0xf]
      %v394 = vsel %vm347, %v326, %v393
      %395 = vst [vmem:[%s344 + $0x38] sm:$0xf] %v394
      %v396 = vld [vmem:[%s344 + $0x3c] sm:$0x1]
      %v397 = vsel %vm353, %v327, %v396
      %398 = vst [vmem:[%s344 + $0x3c] sm:$0x1] %v397
      %p399 = scmp.lt.s32.totalorder %s14, 1
      %s400 = scalar_select %p399, %s14, 1
      %s401 = smul.addr %s400, 20
      %s402 = smul.addr %s401, 4
      %s403 = scalar_lea.vmem %s3, %s402
      // Predicated region
      $region33: #{conv_cell_forward.5} parent=31 // pred_check
        %p404 = pneg %p100
      $region34: #{conv_cell_forward.5} parent=31 // pred_check_branch
        %406 = sbr.rel (%p404) target = $region36
      $region35: #{conv_cell_forward.5} parent=31 // pred_region
        _
      $region36: #{conv_cell_forward.5} parent=31 // pred_fallthru
        _
    $region32: #{conv_cell_forward.5} parent=5 // pred_fallthru
      _
    %p407 = scmp.le.s32.totalorder 2, %s9
    // Predicated region
    $region37: #{conv_cell_forward.5} parent=5 // pred_check
      %p408 = pneg %p407
    $region38: #{conv_cell_forward.5} parent=5 // pred_check_branch
      %410 = sbr.rel (%p408) target = $region40
    $region39: #{conv_cell_forward.5} parent=5 // pred_region
      %s411 = ssub.s32 %s9, 2
      // Predicated region
      $region41: #{conv_cell_forward.5} parent=39 // pred_check
        %p412 = pneg %p106
      $region42: #{conv_cell_forward.5} parent=39 // pred_check_branch
        %414 = sbr.rel (%p412) target = $region44
      $region43: #{conv_cell_forward.5} parent=39 // pred_region
        %p415 = scmp.lt.s32.totalorder %s15, 1
        %s416 = scalar_select %p415, %s15, 1
        %s417 = smul.addr %s416, 20
        %s418 = smul.addr %s417, 4
        %s419 = scalar_lea.vmem %s3, %s418
      $region44: #{conv_cell_forward.5} parent=39 // pred_fallthru
        _
    $region40: #{conv_cell_forward.5} parent=5 // pred_fallthru
      _
  $region6: #{conv_cell_forward.5} parent=0 // loop_footer
    %s13 = sadd.s32 1, %s9
  $region7: #{conv_cell_forward.5} parent=0 // loop_footer_branch
    %8 = sbr.rel target = $region3
  $region8: #{conv_cell_forward.5} parent=0 // loop_exit
    _

// kernel: conv_cell_forward.4
$region0: #{conv_cell_forward.4}
  #allocation0 [shape = 'u32[]', space=smem, size = 0x4, offset = 0x4, fixed_abs, tag = 'smem constant byte address 0x4 - core index']
  #allocation1 [shape = 'u32[72,128]{1,0:T(1,128)}', space=vmem, size = 0x9000, scoped, tag = 'internal scratch']
  %s0 = inlined_call_operand.vmem [shape: bf16[2,4,9,9,4], index: 0, kind: input, shape index: {}]
  %s1 = inlined_call_operand.vmem [shape: bf16[36,128], index: 1, kind: input, shape index: {}]
  %s2 = inlined_call_operand.vmem [shape: bf16[2,8,8,128], index: 2, kind: output, shape index: {0}]
  %s3 = inlined_call_operand.vmem [shape: f32[1,1,128], index: 3, kind: output, shape index: {1}]
  %s4 = inlined_call_operand.vmem [shape: f32[1,1,128], index: 4, kind: output, shape index: {2}]
  %5 = xla_tuple %s2, %s3, %s4
  %s6 = sld [smem:[#allocation0]]
  $region34: #{conv_cell_forward.4} parent=0
    _
  %s8 = ssub.s32 1, %s6
  %s9 = scalar_select 0, %s8, %s6
  // Predicated region
  $region2: #{conv_cell_forward.4} parent=0 // pred_check
    _
  $region3: #{conv_cell_forward.4} parent=0 // pred_check_branch
    %11 = sbr.rel (0) target = $region5
  $region4: #{conv_cell_forward.4} parent=0 // pred_region
    _
  $region5: #{conv_cell_forward.4} parent=0 // pred_fallthru
    _
  // Predicated region
  $region6: #{conv_cell_forward.4} parent=0 // pred_check
    _
  $region7: #{conv_cell_forward.4} parent=0 // pred_check_branch
    %13 = sbr.rel (0) target = $region9
  $region8: #{conv_cell_forward.4} parent=0 // pred_region
    _
  $region9: #{conv_cell_forward.4} parent=0 // pred_fallthru
    _
  %s14 = sadd.s32 0, 0
  %p15 = scmp.lt.s32.totalorder %s14, 0
  %s16 = scalar_select %p15, %s14, 0
  %s17 = scalar_lea.vmem %s3, %s16
  %s18 = sadd.s32 0, 0
  %p19 = scmp.lt.s32.totalorder %s18, 0
  %s20 = scalar_select %p19, %s18, 0
  %s21 = scalar_lea.vmem %s4, %s20
  %s22 = sadd.s32 0, 0
  %p23 = scmp.lt.s32.totalorder %s22, 0
  %s24 = scalar_select %p23, %s22, 0
  %s25 = scalar_lea.vmem %s3, %s24
  %s26 = sadd.s32 0, 0
  %s27 = sadd.s32 0, 0
  %p28 = scmp.lt.s32.totalorder %s27, 0
  %s29 = scalar_select %p28, %s27, 0
  %s30 = scalar_lea.vmem %s4, %s29
  %s31 = sadd.s32 0, 0
  %s33 = smul.u32 0, 8
  %s34 = smul.u32 %s33, 2
  %s35 = smul.addr %s34, 4
  %s36 = scalar_lea.vmem %s0, %s35
  %v37 = vld [vmem:[%s36] sm:$0xf]
  %v38 = vld [vmem:[%s36 + $0x8] sm:$0xf]
  %v39 = vld [vmem:[%s36 + $0x10] sm:$0xf]
  %v40 = vld [vmem:[%s36 + $0x18] sm:$0xf]
  %v41 = vld [vmem:[%s36 + $0x20] sm:$0xf]
  %v42 = vld [vmem:[%s36 + $0x28] sm:$0xf]
  %v43 = vld [vmem:[%s36 + $0x30] sm:$0xf]
  %v44 = vld [vmem:[%s36 + $0x38] sm:$0xf]
  %v45 = vld [vmem:[%s36 + $0x120] sm:$0xf]
  %v46 = vld [vmem:[%s36 + $0x128] sm:$0xf]
  %v47 = vld [vmem:[%s36 + $0x130] sm:$0xf]
  %v48 = vld [vmem:[%s36 + $0x138] sm:$0xf]
  %v49 = vld [vmem:[%s36 + $0x140] sm:$0xf]
  %v50 = vld [vmem:[%s36 + $0x148] sm:$0xf]
  %v51 = vld [vmem:[%s36 + $0x150] sm:$0xf]
  %v52 = vld [vmem:[%s36 + $0x158] sm:$0xf]
  %s53 = sadd.s32 %s34, 18
  %s54 = smul.addr %s53, 4
  %s55 = scalar_lea.vmem %s0, %s54
  %v56 = vld [vmem:[%s55] sm:$0xf]
  %v57 = vld [vmem:[%s55 + $0x8] sm:$0xf]
  %v58 = vld [vmem:[%s55 + $0x10] sm:$0xf]
  %v59 = vld [vmem:[%s55 + $0x18] sm:$0xf]
  %v60 = vld [vmem:[%s55 + $0x20] sm:$0xf]
  %v61 = vld [vmem:[%s55 + $0x28] sm:$0xf]
  %v62 = vld [vmem:[%s55 + $0x30] sm:$0xf]
  %v63 = vld [vmem:[%s55 + $0x38] sm:$0xf]
  %v64 = vld [vmem:[%s55 + $0x120] sm:$0xf]
  %v65 = vld [vmem:[%s55 + $0x128] sm:$0xf]
  %v66 = vld [vmem:[%s55 + $0x130] sm:$0xf]
  %v67 = vld [vmem:[%s55 + $0x138] sm:$0xf]
  %v68 = vld [vmem:[%s55 + $0x140] sm:$0xf]
  %v69 = vld [vmem:[%s55 + $0x148] sm:$0xf]
  %v70 = vld [vmem:[%s55 + $0x150] sm:$0xf]
  %v71 = vld [vmem:[%s55 + $0x158] sm:$0xf]
  %v72 = vld [vmem:[%s36 + $0x4] sm:$0x1]
  %v73 = vld [vmem:[%s36 + $0xc] sm:$0x1]
  %v74 = vld [vmem:[%s36 + $0x14] sm:$0x1]
  %v75 = vld [vmem:[%s36 + $0x1c] sm:$0x1]
  %v76 = vld [vmem:[%s36 + $0x24] sm:$0x1]
  %v77 = vld [vmem:[%s36 + $0x2c] sm:$0x1]
  %v78 = vld [vmem:[%s36 + $0x34] sm:$0x1]
  %v79 = vld [vmem:[%s36 + $0x3c] sm:$0x1]
  %v80 = vld [vmem:[%s36 + $0x124] sm:$0x1]
  %v81 = vld [vmem:[%s36 + $0x12c] sm:$0x1]
  %v82 = vld [vmem:[%s36 + $0x134] sm:$0x1]
  %v83 = vld [vmem:[%s36 + $0x13c] sm:$0x1]
  %v84 = vld [vmem:[%s36 + $0x144] sm:$0x1]
  %v85 = vld [vmem:[%s36 + $0x14c] sm:$0x1]
  %v86 = vld [vmem:[%s36 + $0x154] sm:$0x1]
  %v87 = vld [vmem:[%s36 + $0x15c] sm:$0x1]
  %s88 = sadd.s32 %s34, 36
  %s89 = smul.addr %s88, 4
  %s90 = scalar_lea.vmem %s0, %s89
  %v91 = vld [vmem:[%s90] sm:$0xf]
  %v92 = vld [vmem:[%s90 + $0x8] sm:$0xf]
  %v93 = vld [vmem:[%s90 + $0x10] sm:$0xf]
  %v94 = vld [vmem:[%s90 + $0x18] sm:$0xf]
  %v95 = vld [vmem:[%s90 + $0x20] sm:$0xf]
  %v96 = vld [vmem:[%s90 + $0x28] sm:$0xf]
  %v97 = vld [vmem:[%s90 + $0x30] sm:$0xf]
  %v98 = vld [vmem:[%s90 + $0x38] sm:$0xf]
  %v99 = vld [vmem:[%s90 + $0x120] sm:$0xf]
  %v100 = vld [vmem:[%s90 + $0x128] sm:$0xf]
  %v101 = vld [vmem:[%s90 + $0x130] sm:$0xf]
  %v102 = vld [vmem:[%s90 + $0x138] sm:$0xf]
  %v103 = vld [vmem:[%s90 + $0x140] sm:$0xf]
  %v104 = vld [vmem:[%s90 + $0x148] sm:$0xf]
  %v105 = vld [vmem:[%s90 + $0x150] sm:$0xf]
  %v106 = vld [vmem:[%s90 + $0x158] sm:$0xf]
  %s107 = sadd.s32 %s34, 54
  %s108 = smul.addr %s107, 4
  %s109 = scalar_lea.vmem %s0, %s108
  %v110 = vld [vmem:[%s109] sm:$0xf]
  %v111 = vld [vmem:[%s109 + $0x8] sm:$0xf]
  %v112 = vld [vmem:[%s109 + $0x10] sm:$0xf]
  %v113 = vld [vmem:[%s109 + $0x18] sm:$0xf]
  %v114 = vld [vmem:[%s109 + $0x20] sm:$0xf]
  %v115 = vld [vmem:[%s109 + $0x28] sm:$0xf]
  %v116 = vld [vmem:[%s109 + $0x30] sm:$0xf]
  %v117 = vld [vmem:[%s109 + $0x38] sm:$0xf]
  %v118 = vld [vmem:[%s109 + $0x120] sm:$0xf]
  %v119 = vld [vmem:[%s109 + $0x128] sm:$0xf]
  %v120 = vld [vmem:[%s109 + $0x130] sm:$0xf]
  %v121 = vld [vmem:[%s109 + $0x138] sm:$0xf]
  %v122 = vld [vmem:[%s109 + $0x140] sm:$0xf]
  %v123 = vld [vmem:[%s109 + $0x148] sm:$0xf]
  %v124 = vld [vmem:[%s109 + $0x150] sm:$0xf]
  %v125 = vld [vmem:[%s109 + $0x158] sm:$0xf]
  %v126 = vld [vmem:[%s90 + $0x4] sm:$0x1]
  %v127 = vld [vmem:[%s90 + $0xc] sm:$0x1]
  %v128 = vld [vmem:[%s90 + $0x14] sm:$0x1]
  %v129 = vld [vmem:[%s90 + $0x1c] sm:$0x1]
  %v130 = vld [vmem:[%s90 + $0x24] sm:$0x1]
  %v131 = vld [vmem:[%s90 + $0x2c] sm:$0x1]
  %v132 = vld [vmem:[%s90 + $0x34] sm:$0x1]
  %v133 = vld [vmem:[%s90 + $0x3c] sm:$0x1]
  %v134 = vld [vmem:[%s90 + $0x124] sm:$0x1]
  %v135 = vld [vmem:[%s90 + $0x12c] sm:$0x1]
  %v136 = vld [vmem:[%s90 + $0x134] sm:$0x1]
  %v137 = vld [vmem:[%s90 + $0x13c] sm:$0x1]
  %v138 = vld [vmem:[%s90 + $0x144] sm:$0x1]
  %v139 = vld [vmem:[%s90 + $0x14c] sm:$0x1]
  %v140 = vld [vmem:[%s90 + $0x154] sm:$0x1]
  %v141 = vld [vmem:[%s90 + $0x15c] sm:$0x1]
  %s142 = sadd.s32 %s33, 1
  %s143 = smul.u32 %s142, 2
  %s144 = smul.addr %s143, 4
  %s145 = scalar_lea.vmem %s0, %s144
  %v146 = vld [vmem:[%s145] sm:$0xf]
  %v147 = vld [vmem:[%s145 + $0x8] sm:$0xf]
  %v148 = vld [vmem:[%s145 + $0x10] sm:$0xf]
  %v149 = vld [vmem:[%s145 + $0x18] sm:$0xf]
  %v150 = vld [vmem:[%s145 + $0x20] sm:$0xf]
  %v151 = vld [vmem:[%s145 + $0x28] sm:$0xf]
  %v152 = vld [vmem:[%s145 + $0x30] sm:$0xf]
  %v153 = vld [vmem:[%s145 + $0x38] sm:$0xf]
  %v154 = vld [vmem:[%s145 + $0x120] sm:$0xf]
  %v155 = vld [vmem:[%s145 + $0x128] sm:$0xf]
  %v156 = vld [vmem:[%s145 + $0x130] sm:$0xf]
  %v157 = vld [vmem:[%s145 + $0x138] sm:$0xf]
  %v158 = vld [vmem:[%s145 + $0x140] sm:$0xf]
  %v159 = vld [vmem:[%s145 + $0x148] sm:$0xf]
  %v160 = vld [vmem:[%s145 + $0x150] sm:$0xf]
  %v161 = vld [vmem:[%s145 + $0x158] sm:$0xf]
  %s162 = sadd.s32 %s143, 18
  %s163 = smul.addr %s162, 4
  %s164 = scalar_lea.vmem %s0, %s163
  %v165 = vld [vmem:[%s164] sm:$0xf]
  %v166 = vld [vmem:[%s164 + $0x8] sm:$0xf]
  %v167 = vld [vmem:[%s164 + $0x10] sm:$0xf]
  %v168 = vld [vmem:[%s164 + $0x18] sm:$0xf]
  %v169 = vld [vmem:[%s164 + $0x20] sm:$0xf]
  %v170 = vld [vmem:[%s164 + $0x28] sm:$0xf]
  %v171 = vld [vmem:[%s164 + $0x30] sm:$0xf]
  %v172 = vld [vmem:[%s164 + $0x38] sm:$0xf]
  %v173 = vld [vmem:[%s164 + $0x120] sm:$0xf]
  %v174 = vld [vmem:[%s164 + $0x128] sm:$0xf]
  %v175 = vld [vmem:[%s164 + $0x130] sm:$0xf]
  %v176 = vld [vmem:[%s164 + $0x138] sm:$0xf]
  %v177 = vld [vmem:[%s164 + $0x140] sm:$0xf]
  %v178 = vld [vmem:[%s164 + $0x148] sm:$0xf]
  %v179 = vld [vmem:[%s164 + $0x150] sm:$0xf]
  %v180 = vld [vmem:[%s164 + $0x158] sm:$0xf]
  %v181 = vld [vmem:[%s145 + $0x4] sm:$0x1]
  %v182 = vld [vmem:[%s145 + $0xc] sm:$0x1]
  %v183 = vld [vmem:[%s145 + $0x14] sm:$0x1]
  %v184 = vld [vmem:[%s145 + $0x1c] sm:$0x1]
  %v185 = vld [vmem:[%s145 + $0x24] sm:$0x1]
  %v186 = vld [vmem:[%s145 + $0x2c] sm:$0x1]
  %v187 = vld [vmem:[%s145 + $0x34] sm:$0x1]
  %v188 = vld [vmem:[%s145 + $0x3c] sm:$0x1]
  %v189 = vld [vmem:[%s145 + $0x124] sm:$0x1]
  %v190 = vld [vmem:[%s145 + $0x12c] sm:$0x1]
  %v191 = vld [vmem:[%s145 + $0x134] sm:$0x1]
  %v192 = vld [vmem:[%s145 + $0x13c] sm:$0x1]
  %v193 = vld [vmem:[%s145 + $0x144] sm:$0x1]
  %v194 = vld [vmem:[%s145 + $0x14c] sm:$0x1]
  %v195 = vld [vmem:[%s145 + $0x154] sm:$0x1]
  %v196 = vld [vmem:[%s145 + $0x15c] sm:$0x1]
  %v197 = vunpack.c.l.bf16 %v37
  %v198 = vunpack.c.l.bf16 %v38
  %v199 = vunpack.c.l.bf16 %v39
  %v200 = vunpack.c.l.bf16 %v40
  %v201 = vunpack.c.l.bf16 %v41
  %v202 = vunpack.c.l.bf16 %v42
  %v203 = vunpack.c.l.bf16 %v43
  %v204 = vunpack.c.l.bf16 %v44
  %v205 = vunpack.c.l.bf16 %v45
  %v206 = vunpack.c.l.bf16 %v46
  %v207 = vunpack.c.l.bf16 %v47
  %v208 = vunpack.c.l.bf16 %v48
  %v209 = vunpack.c.l.bf16 %v49
  %v210 = vunpack.c.l.bf16 %v50
  %v211 = vunpack.c.l.bf16 %v51
  %v212 = vunpack.c.l.bf16 %v52
  %v213 = vunpack.c.l.bf16 %v56
  %v214 = vunpack.c.l.bf16 %v57
  %v215 = vunpack.c.l.bf16 %v58
  %v216 = vunpack.c.l.bf16 %v59
  %v217 = vunpack.c.l.bf16 %v60
  %v218 = vunpack.c.l.bf16 %v61
  %v219 = vunpack.c.l.bf16 %v62
  %v220 = vunpack.c.l.bf16 %v63
  %v221 = vunpack.c.l.bf16 %v64
  %v222 = vunpack.c.l.bf16 %v65
  %v223 = vunpack.c.l.bf16 %v66
  %v224 = vunpack.c.l.bf16 %v67
  %v225 = vunpack.c.l.bf16 %v68
  %v226 = vunpack.c.l.bf16 %v69
  %v227 = vunpack.c.l.bf16 %v70
  %v228 = vunpack.c.l.bf16 %v71
  %v229 = vunpack.c.l.bf16 %v72
  %v230 = vunpack.c.l.bf16 %v73
  %v231 = vunpack.c.l.bf16 %v74
  %v232 = vunpack.c.l.bf16 %v75
  %v233 = vunpack.c.l.bf16 %v76
  %v234 = vunpack.c.l.bf16 %v77
  %v235 = vunpack.c.l.bf16 %v78
  %v236 = vunpack.c.l.bf16 %v79
  %v237 = vunpack.c.l.bf16 %v80
  %v238 = vunpack.c.l.bf16 %v81
  %v239 = vunpack.c.l.bf16 %v82
  %v240 = vunpack.c.l.bf16 %v83
  %v241 = vunpack.c.l.bf16 %v84
  %v242 = vunpack.c.l.bf16 %v85
  %v243 = vunpack.c.l.bf16 %v86
  %v244 = vunpack.c.l.bf16 %v87
  %v245 = vunpack.c.l.bf16 %v91
  %v246 = vunpack.c.l.bf16 %v92
  %v247 = vunpack.c.l.bf16 %v93
  %v248 = vunpack.c.l.bf16 %v94
  %v249 = vunpack.c.l.bf16 %v95
  %v250 = vunpack.c.l.bf16 %v96
  %v251 = vunpack.c.l.bf16 %v97
  %v252 = vunpack.c.l.bf16 %v98
  %v253 = vunpack.c.l.bf16 %v99
  %v254 = vunpack.c.l.bf16 %v100
  %v255 = vunpack.c.l.bf16 %v101
  %v256 = vunpack.c.l.bf16 %v102
  %v257 = vunpack.c.l.bf16 %v103
  %v258 = vunpack.c.l.bf16 %v104
  %v259 = vunpack.c.l.bf16 %v105
  %v260 = vunpack.c.l.bf16 %v106
  %v261 = vunpack.c.l.bf16 %v110
  %v262 = vunpack.c.l.bf16 %v111
  %v263 = vunpack.c.l.bf16 %v112
  %v264 = vunpack.c.l.bf16 %v113
  %v265 = vunpack.c.l.bf16 %v114
  %v266 = vunpack.c.l.bf16 %v115
  %v267 = vunpack.c.l.bf16 %v116
  %v268 = vunpack.c.l.bf16 %v117
  %v269 = vunpack.c.l.bf16 %v118
  %v270 = vunpack.c.l.bf16 %v119
  %v271 = vunpack.c.l.bf16 %v120
  %v272 = vunpack.c.l.bf16 %v121
  %v273 = vunpack.c.l.bf16 %v122
  %v274 = vunpack.c.l.bf16 %v123
  %v275 = vunpack.c.l.bf16 %v124
  %v276 = vunpack.c.l.bf16 %v125
  %v277 = vunpack.c.l.bf16 %v126
  %v278 = vunpack.c.l.bf16 %v127
  %v279 = vunpack.c.l.bf16 %v128
  %v280 = vunpack.c.l.bf16 %v129
  %v281 = vunpack.c.l.bf16 %v130
  %v282 = vunpack.c.l.bf16 %v131
  %v283 = vunpack.c.l.bf16 %v132
  %v284 = vunpack.c.l.bf16 %v133
  %v285 = vunpack.c.l.bf16 %v134
  %v286 = vunpack.c.l.bf16 %v135
  %v287 = vunpack.c.l.bf16 %v136
  %v288 = vunpack.c.l.bf16 %v137
  %v289 = vunpack.c.l.bf16 %v138
  %v290 = vunpack.c.l.bf16 %v139
  %v291 = vunpack.c.l.bf16 %v140
  %v292 = vunpack.c.l.bf16 %v141
  %v293 = vunpack.c.l.bf16 %v146
  %v294 = vunpack.c.l.bf16 %v147
  %v295 = vunpack.c.l.bf16 %v148
  %v296 = vunpack.c.l.bf16 %v149
  %v297 = vunpack.c.l.bf16 %v150
  %v298 = vunpack.c.l.bf16 %v151
  %v299 = vunpack.c.l.bf16 %v152
  %v300 = vunpack.c.l.bf16 %v153
  %v301 = vunpack.c.l.bf16 %v154
  %v302 = vunpack.c.l.bf16 %v155
  %v303 = vunpack.c.l.bf16 %v156
  %v304 = vunpack.c.l.bf16 %v157
  %v305 = vunpack.c.l.bf16 %v158
  %v306 = vunpack.c.l.bf16 %v159
  %v307 = vunpack.c.l.bf16 %v160
  %v308 = vunpack.c.l.bf16 %v161
  %v309 = vunpack.c.l.bf16 %v165
  %v310 = vunpack.c.l.bf16 %v166
  %v311 = vunpack.c.l.bf16 %v167
  %v312 = vunpack.c.l.bf16 %v168
  %v313 = vunpack.c.l.bf16 %v169
  %v314 = vunpack.c.l.bf16 %v170
  %v315 = vunpack.c.l.bf16 %v171
  %v316 = vunpack.c.l.bf16 %v172
  %v317 = vunpack.c.l.bf16 %v173
  %v318 = vunpack.c.l.bf16 %v174
  %v319 = vunpack.c.l.bf16 %v175
  %v320 = vunpack.c.l.bf16 %v176
  %v321 = vunpack.c.l.bf16 %v177
  %v322 = vunpack.c.l.bf16 %v178
  %v323 = vunpack.c.l.bf16 %v179
  %v324 = vunpack.c.l.bf16 %v180
  %v325 = vunpack.c.l.bf16 %v181
  %v326 = vunpack.c.l.bf16 %v182
  %v327 = vunpack.c.l.bf16 %v183
  %v328 = vunpack.c.l.bf16 %v184
  %v329 = vunpack.c.l.bf16 %v185
  %v330 = vunpack.c.l.bf16 %v186
  %v331 = vunpack.c.l.bf16 %v187
  %v332 = vunpack.c.l.bf16 %v188
  %v333 = vunpack.c.l.bf16 %v189
  %v334 = vunpack.c.l.bf16 %v190
  %v335 = vunpack.c.l.bf16 %v191
  %v336 = vunpack.c.l.bf16 %v192
  %v337 = vunpack.c.l.bf16 %v193
  %v338 = vunpack.c.l.bf16 %v194
  %v339 = vunpack.c.l.bf16 %v195
  %v340 = vunpack.c.l.bf16 %v196
  %357 = vrot.lane.b32.xlu0 %v213, 4
  %v358 = vpop.permute.xlu0 %357
  %359 = vrot.lane.b32.xlu0 %v214, 4
  %v360 = vpop.permute.xlu0 %359
  %361 = vrot.lane.b32.xlu0 %v215, 4
  %v362 = vpop.permute.xlu0 %361
  %363 = vrot.lane.b32.xlu0 %v216, 4
  %v364 = vpop.permute.xlu0 %363
  %365 = vrot.lane.b32.xlu0 %v217, 4
  %v366 = vpop.permute.xlu0 %365
  %367 = vrot.lane.b32.xlu0 %v218, 4
  %v368 = vpop.permute.xlu0 %367
  %369 = vrot.lane.b32.xlu0 %v219, 4
  %v370 = vpop.permute.xlu0 %369
  %371 = vrot.lane.b32.xlu0 %v220, 4
  %v372 = vpop.permute.xlu0 %371
  %373 = vrot.lane.b32.xlu0 %v221, 4
  %v374 = vpop.permute.xlu0 %373
  %375 = vrot.lane.b32.xlu0 %v222, 4
  %v376 = vpop.permute.xlu0 %375
  %377 = vrot.lane.b32.xlu0 %v223, 4
  %v378 = vpop.permute.xlu0 %377
  %379 = vrot.lane.b32.xlu0 %v224, 4
  %v380 = vpop.permute.xlu0 %379
  %381 = vrot.lane.b32.xlu0 %v225, 4
  %v382 = vpop.permute.xlu0 %381
  %383 = vrot.lane.b32.xlu0 %v226, 4
  %v384 = vpop.permute.xlu0 %383
  %385 = vrot.lane.b32.xlu0 %v227, 4
  %v386 = vpop.permute.xlu0 %385
  %387 = vrot.lane.b32.xlu0 %v228, 4
  %v388 = vpop.permute.xlu0 %387
  %vm437 = vcmask 1046528
  %v438 = vrot.slane %v197, 1
  %v439 = vrot.slane %v229, 1
  %v440 = vsel %vm437, %v438, %v439
  %v441 = vrot.slane %v198, 1
  %v442 = vrot.slane %v230, 1
  %v443 = vsel %vm437, %v441, %v442
  %v444 = vrot.slane %v199, 1
  %v445 = vrot.slane %v231, 1
  %v446 = vsel %vm437, %v444, %v445
  %v447 = vrot.slane %v200, 1
  %v448 = vrot.slane %v232, 1
  %v449 = vsel %vm437, %v447, %v448
  %v450 = vrot.slane %v201, 1
  %v451 = vrot.slane %v233, 1
  %v452 = vsel %vm437, %v450, %v451
  %v453 = vrot.slane %v202, 1
  %v454 = vrot.slane %v234, 1
  %v455 = vsel %vm437, %v453, %v454
  %v456 = vrot.slane %v203, 1
  %v457 = vrot.slane %v235, 1
  %v458 = vsel %vm437, %v456, %v457
  %v459 = vrot.slane %v204, 1
  %v460 = vrot.slane %v236, 1
  %v461 = vsel %vm437, %v459, %v460
  %v462 = vrot.slane %v205, 1
  %v463 = vrot.slane %v237, 1
  %v464 = vsel %vm437, %v462, %v463
  %v465 = vrot.slane %v206, 1
  %v466 = vrot.slane %v238, 1
  %v467 = vsel %vm437, %v465, %v466
  %v468 = vrot.slane %v207, 1
  %v469 = vrot.slane %v239, 1
  %v470 = vsel %vm437, %v468, %v469
  %v471 = vrot.slane %v208, 1
  %v472 = vrot.slane %v240, 1
  %v473 = vsel %vm437, %v471, %v472
  %v474 = vrot.slane %v209, 1
  %v475 = vrot.slane %v241, 1
  %v476 = vsel %vm437, %v474, %v475
  %v477 = vrot.slane %v210, 1
  %v478 = vrot.slane %v242, 1
  %v479 = vsel %vm437, %v477, %v478
  %v480 = vrot.slane %v211, 1
  %v481 = vrot.slane %v243, 1
  %v482 = vsel %vm437, %v480, %v481
  %v483 = vrot.slane %v212, 1
  %v484 = vrot.slane %v244, 1
  %v485 = vsel %vm437, %v483, %v484
  %486 = vrot.lane.b32.xlu0 %v440, 8
  %v487 = vpop.permute.xlu0 %486
  %488 = vrot.lane.b32.xlu0 %v443, 8
  %v489 = vpop.permute.xlu0 %488
  %490 = vrot.lane.b32.xlu0 %v446, 8
  %v491 = vpop.permute.xlu0 %490
  %492 = vrot.lane.b32.xlu0 %v449, 8
  %v493 = vpop.permute.xlu0 %492
  %494 = vrot.lane.b32.xlu0 %v452, 8
  %v495 = vpop.permute.xlu0 %494
  %496 = vrot.lane.b32.xlu0 %v455, 8
  %v497 = vpop.permute.xlu0 %496
  %498 = vrot.lane.b32.xlu0 %v458, 8
  %v499 = vpop.permute.xlu0 %498
  %500 = vrot.lane.b32.xlu0 %v461, 8
  %v501 = vpop.permute.xlu0 %500
  %502 = vrot.lane.b32.xlu0 %v464, 8
  %v503 = vpop.permute.xlu0 %502
  %504 = vrot.lane.b32.xlu0 %v467, 8
  %v505 = vpop.permute.xlu0 %504
  %506 = vrot.lane.b32.xlu0 %v470, 8
  %v507 = vpop.permute.xlu0 %506
  %508 = vrot.lane.b32.xlu0 %v473, 8
  %v509 = vpop.permute.xlu0 %508
  %510 = vrot.lane.b32.xlu0 %v476, 8
  %v511 = vpop.permute.xlu0 %510
  %512 = vrot.lane.b32.xlu0 %v479, 8
  %v513 = vpop.permute.xlu0 %512
  %514 = vrot.lane.b32.xlu0 %v482, 8
  %v515 = vpop.permute.xlu0 %514
  %516 = vrot.lane.b32.xlu0 %v485, 8
  %v517 = vpop.permute.xlu0 %516
  %550 = vrot.lane.b32.xlu0 %v245, 12
  %v551 = vpop.permute.xlu0 %550
  %552 = vrot.lane.b32.xlu0 %v246, 12
  %v553 = vpop.permute.xlu0 %552
  %554 = vrot.lane.b32.xlu0 %v247, 12
  %v555 = vpop.permute.xlu0 %554
  %556 = vrot.lane.b32.xlu0 %v248, 12
  %v557 = vpop.permute.xlu0 %556
  %558 = vrot.lane.b32.xlu0 %v249, 12
  %v559 = vpop.permute.xlu0 %558
  %560 = vrot.lane.b32.xlu0 %v250, 12
  %v561 = vpop.permute.xlu0 %560
  %562 = vrot.lane.b32.xlu0 %v251, 12
  %v563 = vpop.permute.xlu0 %562
  %564 = vrot.lane.b32.xlu0 %v252, 12
  %v565 = vpop.permute.xlu0 %564
  %566 = vrot.lane.b32.xlu0 %v253, 12
  %v567 = vpop.permute.xlu0 %566
  %568 = vrot.lane.b32.xlu0 %v254, 12
  %v569 = vpop.permute.xlu0 %568
  %570 = vrot.lane.b32.xlu0 %v255, 12
  %v571 = vpop.permute.xlu0 %570
  %572 = vrot.lane.b32.xlu0 %v256, 12
  %v573 = vpop.permute.xlu0 %572
  %574 = vrot.lane.b32.xlu0 %v257, 12
  %v575 = vpop.permute.xlu0 %574
  %576 = vrot.lane.b32.xlu0 %v258, 12
  %v577 = vpop.permute.xlu0 %576
  %578 = vrot.lane.b32.xlu0 %v259, 12
  %v579 = vpop.permute.xlu0 %578
  %580 = vrot.lane.b32.xlu0 %v260, 12
  %v581 = vpop.permute.xlu0 %580
  %614 = vrot.lane.b32.xlu0 %v261, 16
  %v615 = vpop.permute.xlu0 %614
  %616 = vrot.lane.b32.xlu0 %v262, 16
  %v617 = vpop.permute.xlu0 %616
  %618 = vrot.lane.b32.xlu0 %v263, 16
  %v619 = vpop.permute.xlu0 %618
  %620 = vrot.lane.b32.xlu0 %v264, 16
  %v621 = vpop.permute.xlu0 %620
  %622 = vrot.lane.b32.xlu0 %v265, 16
  %v623 = vpop.permute.xlu0 %622
  %624 = vrot.lane.b32.xlu0 %v266, 16
  %v625 = vpop.permute.xlu0 %624
  %626 = vrot.lane.b32.xlu0 %v267, 16
  %v627 = vpop.permute.xlu0 %626
  %628 = vrot.lane.b32.xlu0 %v268, 16
  %v629 = vpop.permute.xlu0 %628
  %630 = vrot.lane.b32.xlu0 %v269, 16
  %v631 = vpop.permute.xlu0 %630
  %632 = vrot.lane.b32.xlu0 %v270, 16
  %v633 = vpop.permute.xlu0 %632
  %634 = vrot.lane.b32.xlu0 %v271, 16
  %v635 = vpop.permute.xlu0 %634
  %636 = vrot.lane.b32.xlu0 %v272, 16
  %v637 = vpop.permute.xlu0 %636
  %638 = vrot.lane.b32.xlu0 %v273, 16
  %v639 = vpop.permute.xlu0 %638
  %640 = vrot.lane.b32.xlu0 %v274, 16
  %v641 = vpop.permute.xlu0 %640
  %642 = vrot.lane.b32.xlu0 %v275, 16
  %v643 = vpop.permute.xlu0 %642
  %644 = vrot.lane.b32.xlu0 %v276, 16
  %v645 = vpop.permute.xlu0 %644
  %v678 = vrot.slane %v245, 1
  %v679 = vrot.slane %v277, 1
  %v680 = vsel %vm437, %v678, %v679
  %v681 = vrot.slane %v246, 1
  %v682 = vrot.slane %v278, 1
  %v683 = vsel %vm437, %v681, %v682
  %v684 = vrot.slane %v247, 1
  %v685 = vrot.slane %v279, 1
  %v686 = vsel %vm437, %v684, %v685
  %v687 = vrot.slane %v248, 1
  %v688 = vrot.slane %v280, 1
  %v689 = vsel %vm437, %v687, %v688
  %v690 = vrot.slane %v249, 1
  %v691 = vrot.slane %v281, 1
  %v692 = vsel %vm437, %v690, %v691
  %v693 = vrot.slane %v250, 1
  %v694 = vrot.slane %v282, 1
  %v695 = vsel %vm437, %v693, %v694
  %v696 = vrot.slane %v251, 1
  %v697 = vrot.slane %v283, 1
  %v698 = vsel %vm437, %v696, %v697
  %v699 = vrot.slane %v252, 1
  %v700 = vrot.slane %v284, 1
  %v701 = vsel %vm437, %v699, %v700
  %v702 = vrot.slane %v253, 1
  %v703 = vrot.slane %v285, 1
  %v704 = vsel %vm437, %v702, %v703
  %v705 = vrot.slane %v254, 1
  %v706 = vrot.slane %v286, 1
  %v707 = vsel %vm437, %v705, %v706
  %v708 = vrot.slane %v255, 1
  %v709 = vrot.slane %v287, 1
  %v710 = vsel %vm437, %v708, %v709
  %v711 = vrot.slane %v256, 1
  %v712 = vrot.slane %v288, 1
  %v713 = vsel %vm437, %v711, %v712
  %v714 = vrot.slane %v257, 1
  %v715 = vrot.slane %v289, 1
  %v716 = vsel %vm437, %v714, %v715
  %v717 = vrot.slane %v258, 1
  %v718 = vrot.slane %v290, 1
  %v719 = vsel %vm437, %v717, %v718
  %v720 = vrot.slane %v259, 1
  %v721 = vrot.slane %v291, 1
  %v722 = vsel %vm437, %v720, %v721
  %v723 = vrot.slane %v260, 1
  %v724 = vrot.slane %v292, 1
  %v725 = vsel %vm437, %v723, %v724
  %726 = vrot.lane.b32.xlu0 %v680, 20
  %v727 = vpop.permute.xlu0 %726
  %728 = vrot.lane.b32.xlu0 %v683, 20
  %v729 = vpop.permute.xlu0 %728
  %730 = vrot.lane.b32.xlu0 %v686, 20
  %v731 = vpop.permute.xlu0 %730
  %732 = vrot.lane.b32.xlu0 %v689, 20
  %v733 = vpop.permute.xlu0 %732
  %734 = vrot.lane.b32.xlu0 %v692, 20
  %v735 = vpop.permute.xlu0 %734
  %736 = vrot.lane.b32.xlu0 %v695, 20
  %v737 = vpop.permute.xlu0 %736
  %738 = vrot.lane.b32.xlu0 %v698, 20
  %v739 = vpop.permute.xlu0 %738
  %740 = vrot.lane.b32.xlu0 %v701, 20
  %v741 = vpop.permute.xlu0 %740
  %742 = vrot.lane.b32.xlu0 %v704, 20
  %v743 = vpop.permute.xlu0 %742
  %744 = vrot.lane.b32.xlu0 %v707, 20
  %v745 = vpop.permute.xlu0 %744
  %746 = vrot.lane.b32.xlu0 %v710, 20
  %v747 = vpop.permute.xlu0 %746
  %748 = vrot.lane.b32.xlu0 %v713, 20
  %v749 = vpop.permute.xlu0 %748
  %750 = vrot.lane.b32.xlu0 %v716, 20
  %v751 = vpop.permute.xlu0 %750
  %752 = vrot.lane.b32.xlu0 %v719, 20
  %v753 = vpop.permute.xlu0 %752
  %754 = vrot.lane.b32.xlu0 %v722, 20
  %v755 = vpop.permute.xlu0 %754
  %756 = vrot.lane.b32.xlu0 %v725, 20
  %v757 = vpop.permute.xlu0 %756
  %790 = vrot.lane.b32.xlu0 %v293, 24
  %v791 = vpop.permute.xlu0 %790
  %792 = vrot.lane.b32.xlu0 %v294, 24
  %v793 = vpop.permute.xlu0 %792
  %794 = vrot.lane.b32.xlu0 %v295, 24
  %v795 = vpop.permute.xlu0 %794
  %796 = vrot.lane.b32.xlu0 %v296, 24
  %v797 = vpop.permute.xlu0 %796
  %798 = vrot.lane.b32.xlu0 %v297, 24
  %v799 = vpop.permute.xlu0 %798
  %800 = vrot.lane.b32.xlu0 %v298, 24
  %v801 = vpop.permute.xlu0 %800
  %802 = vrot.lane.b32.xlu0 %v299, 24
  %v803 = vpop.permute.xlu0 %802
  %804 = vrot.lane.b32.xlu0 %v300, 24
  %v805 = vpop.permute.xlu0 %804
  %806 = vrot.lane.b32.xlu0 %v301, 24
  %v807 = vpop.permute.xlu0 %806
  %808 = vrot.lane.b32.xlu0 %v302, 24
  %v809 = vpop.permute.xlu0 %808
  %810 = vrot.lane.b32.xlu0 %v303, 24
  %v811 = vpop.permute.xlu0 %810
  %812 = vrot.lane.b32.xlu0 %v304, 24
  %v813 = vpop.permute.xlu0 %812
  %814 = vrot.lane.b32.xlu0 %v305, 24
  %v815 = vpop.permute.xlu0 %814
  %816 = vrot.lane.b32.xlu0 %v306, 24
  %v817 = vpop.permute.xlu0 %816
  %818 = vrot.lane.b32.xlu0 %v307, 24
  %v819 = vpop.permute.xlu0 %818
  %820 = vrot.lane.b32.xlu0 %v308, 24
  %v821 = vpop.permute.xlu0 %820
  %854 = vrot.lane.b32.xlu0 %v309, 28
  %v855 = vpop.permute.xlu0 %854
  %856 = vrot.lane.b32.xlu0 %v310, 28
  %v857 = vpop.permute.xlu0 %856
  %858 = vrot.lane.b32.xlu0 %v311, 28
  %v859 = vpop.permute.xlu0 %858
  %860 = vrot.lane.b32.xlu0 %v312, 28
  %v861 = vpop.permute.xlu0 %860
  %862 = vrot.lane.b32.xlu0 %v313, 28
  %v863 = vpop.permute.xlu0 %862
  %864 = vrot.lane.b32.xlu0 %v314, 28
  %v865 = vpop.permute.xlu0 %864
  %866 = vrot.lane.b32.xlu0 %v315, 28
  %v867 = vpop.permute.xlu0 %866
  %868 = vrot.lane.b32.xlu0 %v316, 28
  %v869 = vpop.permute.xlu0 %868
  %870 = vrot.lane.b32.xlu0 %v317, 28
  %v871 = vpop.permute.xlu0 %870
  %872 = vrot.lane.b32.xlu0 %v318, 28
  %v873 = vpop.permute.xlu0 %872
  %874 = vrot.lane.b32.xlu0 %v319, 28
  %v875 = vpop.permute.xlu0 %874
  %876 = vrot.lane.b32.xlu0 %v320, 28
  %v877 = vpop.permute.xlu0 %876
  %878 = vrot.lane.b32.xlu0 %v321, 28
  %v879 = vpop.permute.xlu0 %878
  %880 = vrot.lane.b32.xlu0 %v322, 28
  %v881 = vpop.permute.xlu0 %880
  %882 = vrot.lane.b32.xlu0 %v323, 28
  %v883 = vpop.permute.xlu0 %882
  %884 = vrot.lane.b32.xlu0 %v324, 28
  %v885 = vpop.permute.xlu0 %884
  %v918 = vrot.slane %v293, 1
  %v919 = vrot.slane %v325, 1
  %v920 = vsel %vm437, %v918, %v919
  %v921 = vrot.slane %v294, 1
  %v922 = vrot.slane %v326, 1
  %v923 = vsel %vm437, %v921, %v922
  %v924 = vrot.slane %v295, 1
  %v925 = vrot.slane %v327, 1
  %v926 = vsel %vm437, %v924, %v925
  %v927 = vrot.slane %v296, 1
  %v928 = vrot.slane %v328, 1
  %v929 = vsel %vm437, %v927, %v928
  %v930 = vrot.slane %v297, 1
  %v931 = vrot.slane %v329, 1
  %v932 = vsel %vm437, %v930, %v931
  %v933 = vrot.slane %v298, 1
  %v934 = vrot.slane %v330, 1
  %v935 = vsel %vm437, %v933, %v934
  %v936 = vrot.slane %v299, 1
  %v937 = vrot.slane %v331, 1
  %v938 = vsel %vm437, %v936, %v937
  %v939 = vrot.slane %v300, 1
  %v940 = vrot.slane %v332, 1
  %v941 = vsel %vm437, %v939, %v940
  %v942 = vrot.slane %v301, 1
  %v943 = vrot.slane %v333, 1
  %v944 = vsel %vm437, %v942, %v943
  %v945 = vrot.slane %v302, 1
  %v946 = vrot.slane %v334, 1
  %v947 = vsel %vm437, %v945, %v946
  %v948 = vrot.slane %v303, 1
  %v949 = vrot.slane %v335, 1
  %v950 = vsel %vm437, %v948, %v949
  %v951 = vrot.slane %v304, 1
  %v952 = vrot.slane %v336, 1
  %v953 = vsel %vm437, %v951, %v952
  %v954 = vrot.slane %v305, 1
  %v955 = vrot.slane %v337, 1
  %v956 = vsel %vm437, %v954, %v955
  %v957 = vrot.slane %v306, 1
  %v958 = vrot.slane %v338, 1
  %v959 = vsel %vm437, %v957, %v958
  %v960 = vrot.slane %v307, 1
  %v961 = vrot.slane %v339, 1
  %v962 = vsel %vm437, %v960, %v961
  %v963 = vrot.slane %v308, 1
  %v964 = vrot.slane %v340, 1
  %v965 = vsel %vm437, %v963, %v964
  %966 = vrot.lane.b32.xlu0 %v920, 32
  %v967 = vpop.permute.xlu0 %966
  %968 = vrot.lane.b32.xlu0 %v923, 32
  %v969 = vpop.permute.xlu0 %968
  %970 = vrot.lane.b32.xlu0 %v926, 32
  %v971 = vpop.permute.xlu0 %970
  %972 = vrot.lane.b32.xlu0 %v929, 32
  %v973 = vpop.permute.xlu0 %972
  %974 = vrot.lane.b32.xlu0 %v932, 32
  %v975 = vpop.permute.xlu0 %974
  %976 = vrot.lane.b32.xlu0 %v935, 32
  %v977 = vpop.permute.xlu0 %976
  %978 = vrot.lane.b32.xlu0 %v938, 32
  %v979 = vpop.permute.xlu0 %978
  %980 = vrot.lane.b32.xlu0 %v941, 32
  %v981 = vpop.permute.xlu0 %980
  %982 = vrot.lane.b32.xlu0 %v944, 32
  %v983 = vpop.permute.xlu0 %982
  %984 = vrot.lane.b32.xlu0 %v947, 32
  %v985 = vpop.permute.xlu0 %984
  %986 = vrot.lane.b32.xlu0 %v950, 32
  %v987 = vpop.permute.xlu0 %986
  %988 = vrot.lane.b32.xlu0 %v953, 32
  %v989 = vpop.permute.xlu0 %988
  %990 = vrot.lane.b32.xlu0 %v956, 32
  %v991 = vpop.permute.xlu0 %990
  %992 = vrot.lane.b32.xlu0 %v959, 32
  %v993 = vpop.permute.xlu0 %992
  %994 = vrot.lane.b32.xlu0 %v962, 32
  %v995 = vpop.permute.xlu0 %994
  %996 = vrot.lane.b32.xlu0 %v965, 32
  %v997 = vpop.permute.xlu0 %996
  %vm1014 = vcmask 31744
  %v1015 = vsel %vm1014, %v197, %v358
  %v1016 = vsel %vm1014, %v198, %v360
  %v1017 = vsel %vm1014, %v199, %v362
  %v1018 = vsel %vm1014, %v200, %v364
  %v1019 = vsel %vm1014, %v201, %v366
  %v1020 = vsel %vm1014, %v202, %v368
  %v1021 = vsel %vm1014, %v203, %v370
  %v1022 = vsel %vm1014, %v204, %v372
  %v1023 = vsel %vm1014, %v205, %v374
  %v1024 = vsel %vm1014, %v206, %v376
  %v1025 = vsel %vm1014, %v207, %v378
  %v1026 = vsel %vm1014, %v208, %v380
  %v1027 = vsel %vm1014, %v209, %v382
  %v1028 = vsel %vm1014, %v210, %v384
  %v1029 = vsel %vm1014, %v211, %v386
  %v1030 = vsel %vm1014, %v212, %v388
  %vm1031 = vcmask 64512
  %v1032 = vsel %vm1031, %v1015, %v487
  %v1033 = vsel %vm1031, %v1016, %v489
  %v1034 = vsel %vm1031, %v1017, %v491
  %v1035 = vsel %vm1031, %v1018, %v493
  %v1036 = vsel %vm1031, %v1019, %v495
  %v1037 = vsel %vm1031, %v1020, %v497
  %v1038 = vsel %vm1031, %v1021, %v499
  %v1039 = vsel %vm1031, %v1022, %v501
  %v1040 = vsel %vm1031, %v1023, %v503
  %v1041 = vsel %vm1031, %v1024, %v505
  %v1042 = vsel %vm1031, %v1025, %v507
  %v1043 = vsel %vm1031, %v1026, %v509
  %v1044 = vsel %vm1031, %v1027, %v511
  %v1045 = vsel %vm1031, %v1028, %v513
  %v1046 = vsel %vm1031, %v1029, %v515
  %v1047 = vsel %vm1031, %v1030, %v517
  %vm1048 = vcmask 97280
  %v1049 = vsel %vm1048, %v1032, %v551
  %v1050 = vsel %vm1048, %v1033, %v553
  %v1051 = vsel %vm1048, %v1034, %v555
  %v1052 = vsel %vm1048, %v1035, %v557
  %v1053 = vsel %vm1048, %v1036, %v559
  %v1054 = vsel %vm1048, %v1037, %v561
  %v1055 = vsel %vm1048, %v1038, %v563
  %v1056 = vsel %vm1048, %v1039, %v565
  %v1057 = vsel %vm1048, %v1040, %v567
  %v1058 = vsel %vm1048, %v1041, %v569
  %v1059 = vsel %vm1048, %v1042, %v571
  %v1060 = vsel %vm1048, %v1043, %v573
  %v1061 = vsel %vm1048, %v1044, %v575
  %v1062 = vsel %vm1048, %v1045, %v577
  %v1063 = vsel %vm1048, %v1046, %v579
  %v1064 = vsel %vm1048, %v1047, %v581
  %vm1065 = vcmask 130048
  %v1066 = vsel %vm1065, %v1049, %v615
  %v1067 = vsel %vm1065, %v1050, %v617
  %v1068 = vsel %vm1065, %v1051, %v619
  %v1069 = vsel %vm1065, %v1052, %v621
  %v1070 = vsel %vm1065, %v1053, %v623
  %v1071 = vsel %vm1065, %v1054, %v625
  %v1072 = vsel %vm1065, %v1055, %v627
  %v1073 = vsel %vm1065, %v1056, %v629
  %v1074 = vsel %vm1065, %v1057, %v631
  %v1075 = vsel %vm1065, %v1058, %v633
  %v1076 = vsel %vm1065, %v1059, %v635
  %v1077 = vsel %vm1065, %v1060, %v637
  %v1078 = vsel %vm1065, %v1061, %v639
  %v1079 = vsel %vm1065, %v1062, %v641
  %v1080 = vsel %vm1065, %v1063, %v643
  %v1081 = vsel %vm1065, %v1064, %v645
  %vm1082 = vcmask 162816
  %v1083 = vsel %vm1082, %v1066, %v727
  %v1084 = vsel %vm1082, %v1067, %v729
  %v1085 = vsel %vm1082, %v1068, %v731
  %v1086 = vsel %vm1082, %v1069, %v733
  %v1087 = vsel %vm1082, %v1070, %v735
  %v1088 = vsel %vm1082, %v1071, %v737
  %v1089 = vsel %vm1082, %v1072, %v739
  %v1090 = vsel %vm1082, %v1073, %v741
  %v1091 = vsel %vm1082, %v1074, %v743
  %v1092 = vsel %vm1082, %v1075, %v745
  %v1093 = vsel %vm1082, %v1076, %v747
  %v1094 = vsel %vm1082, %v1077, %v749
  %v1095 = vsel %vm1082, %v1078, %v751
  %v1096 = vsel %vm1082, %v1079, %v753
  %v1097 = vsel %vm1082, %v1080, %v755
  %v1098 = vsel %vm1082, %v1081, %v757
  %vm1099 = vcmask 195584
  %v1100 = vsel %vm1099, %v1083, %v791
  %v1101 = vsel %vm1099, %v1084, %v793
  %v1102 = vsel %vm1099, %v1085, %v795
  %v1103 = vsel %vm1099, %v1086, %v797
  %v1104 = vsel %vm1099, %v1087, %v799
  %v1105 = vsel %vm1099, %v1088, %v801
  %v1106 = vsel %vm1099, %v1089, %v803
  %v1107 = vsel %vm1099, %v1090, %v805
  %v1108 = vsel %vm1099, %v1091, %v807
  %v1109 = vsel %vm1099, %v1092, %v809
  %v1110 = vsel %vm1099, %v1093, %v811
  %v1111 = vsel %vm1099, %v1094, %v813
  %v1112 = vsel %vm1099, %v1095, %v815
  %v1113 = vsel %vm1099, %v1096, %v817
  %v1114 = vsel %vm1099, %v1097, %v819
  %v1115 = vsel %vm1099, %v1098, %v821
  %vm1116 = vcmask 228352
  %v1117 = vsel %vm1116, %v1100, %v855
  %v1118 = vsel %vm1116, %v1101, %v857
  %v1119 = vsel %vm1116, %v1102, %v859
  %v1120 = vsel %vm1116, %v1103, %v861
  %v1121 = vsel %vm1116, %v1104, %v863
  %v1122 = vsel %vm1116, %v1105, %v865
  %v1123 = vsel %vm1116, %v1106, %v867
  %v1124 = vsel %vm1116, %v1107, %v869
  %v1125 = vsel %vm1116, %v1108, %v871
  %v1126 = vsel %vm1116, %v1109, %v873
  %v1127 = vsel %vm1116, %v1110, %v875
  %v1128 = vsel %vm1116, %v1111, %v877
  %v1129 = vsel %vm1116, %v1112, %v879
  %v1130 = vsel %vm1116, %v1113, %v881
  %v1131 = vsel %vm1116, %v1114, %v883
  %v1132 = vsel %vm1116, %v1115, %v885
  %vm1133 = vcmask 261120
  %v1134 = vsel %vm1133, %v1117, %v967
  %v1135 = vsel %vm1133, %v1118, %v969
  %v1136 = vsel %vm1133, %v1119, %v971
  %v1137 = vsel %vm1133, %v1120, %v973
  %v1138 = vsel %vm1133, %v1121, %v975
  %v1139 = vsel %vm1133, %v1122, %v977
  %v1140 = vsel %vm1133, %v1123, %v979
  %v1141 = vsel %vm1133, %v1124, %v981
  %v1142 = vsel %vm1133, %v1125, %v983
  %v1143 = vsel %vm1133, %v1126, %v985
  %v1144 = vsel %vm1133, %v1127, %v987
  %v1145 = vsel %vm1133, %v1128, %v989
  %v1146 = vsel %vm1133, %v1129, %v991
  %v1147 = vsel %vm1133, %v1130, %v993
  %v1148 = vsel %vm1133, %v1131, %v995
  %v1149 = vsel %vm1133, %v1132, %v997
  %v1150 = vpack.c.bf16 %v1135, %v1134
  %v1151 = vpack.c.bf16 %v1137, %v1136
  %v1152 = vpack.c.bf16 %v1139, %v1138
  %v1153 = vpack.c.bf16 %v1141, %v1140
  %v1154 = vpack.c.bf16 %v1143, %v1142
  %v1155 = vpack.c.bf16 %v1145, %v1144
  %v1156 = vpack.c.bf16 %v1147, %v1146
  %v1157 = vpack.c.bf16 %v1149, %v1148
  %v1158 = vld [vmem:[%s1] sm:$0xf]
  %v1159 = vld [vmem:[%s1 + $0x4] sm:$0xf]
  %v1160 = vld [vmem:[%s1 + $0x8] sm:$0xf]
  %v1161 = vld [vmem:[%s1 + $0xc] sm:$0xf]
  %v1162 = vld [vmem:[%s1 + $0x10] sm:$0x3]
  %v1168 = vunpack.c.l.b16 %v1158
  %v1169 = vunpack.c.l.b16 %v1159
  %v1170 = vunpack.c.l.b16 %v1160
  %v1171 = vunpack.c.l.b16 %v1161
  %v1172 = vunpack.c.l.b16 %v1162
  %v1173 = vpack.c.b16 %v1169, %v1168
  %v1174 = vpack.c.b16 %v1171, %v1170
  %v1175 = vpack.c.b16 %v1172, %v1172
  %vm1178 = vcmask 293888
  %v1180 = vsel %vm1178, %v1150, 0
  %v1183 = vsel %vm1178, %v1151, 0
  %v1186 = vsel %vm1178, %v1152, 0
  %v1189 = vsel %vm1178, %v1153, 0
  %v1192 = vsel %vm1178, %v1154, 0
  %v1195 = vsel %vm1178, %v1155, 0
  %v1198 = vsel %vm1178, %v1156, 0
  %v1201 = vsel %vm1178, %v1157, 0
  %vm1203 = vcmask 1041408
  %v1205 = vsel %vm1203, %v1175, 0
  %1207 = vmatpush.bf16.msra.mxu0 0
  %1208 = vmatpush.bf16.msra.mxu0 0
  %1209 = vmatpush.bf16.msra.mxu0 0
  %1210 = vmatpush.bf16.msra.mxu0 0
  %1211 = vmatpush.bf16.msra.mxu0 0
  %1212 = vmatpush.bf16.msra.mxu0 %v1205
  %1213 = vmatpush.bf16.msra.mxu0 %v1174
  %1214 = vmatpush.bf16.msra.mxu0 %v1173
  %1215 = vmatmul.bf16.gmra.mxu0 %v1180
  %v1216 = vpop.f32.mrf.mxu0
  %v1217 = vadd.f32 0.0, %v1216
  %v1218 = vpop.f32.mrf.mxu0
  %v1219 = vadd.f32 0.0, %v1218
  %1220 = vmatmul.bf16.gmra.mxu0 %v1183
  %v1221 = vpop.f32.mrf.mxu0
  %v1222 = vadd.f32 0.0, %v1221
  %v1223 = vpop.f32.mrf.mxu0
  %v1224 = vadd.f32 0.0, %v1223
  %1225 = vmatmul.bf16.gmra.mxu0 %v1186
  %v1226 = vpop.f32.mrf.mxu0
  %v1227 = vadd.f32 0.0, %v1226
  %v1228 = vpop.f32.mrf.mxu0
  %v1229 = vadd.f32 0.0, %v1228
  %1230 = vmatmul.bf16.gmra.mxu0 %v1189
  %v1231 = vpop.f32.mrf.mxu0
  %v1232 = vadd.f32 0.0, %v1231
  %v1233 = vpop.f32.mrf.mxu0
  %v1234 = vadd.f32 0.0, %v1233
  %1235 = vmatmul.bf16.gmra.mxu0 %v1192
  %v1236 = vpop.f32.mrf.mxu0
  %v1237 = vadd.f32 0.0, %v1236
  %v1238 = vpop.f32.mrf.mxu0
  %v1239 = vadd.f32 0.0, %v1238
  %1240 = vmatmul.bf16.gmra.mxu0 %v1195
  %v1241 = vpop.f32.mrf.mxu0
  %v1242 = vadd.f32 0.0, %v1241
  %v1243 = vpop.f32.mrf.mxu0
  %v1244 = vadd.f32 0.0, %v1243
  %1245 = vmatmul.bf16.gmra.mxu0 %v1198
  %v1246 = vpop.f32.mrf.mxu0
  %v1247 = vadd.f32 0.0, %v1246
  %v1248 = vpop.f32.mrf.mxu0
  %v1249 = vadd.f32 0.0, %v1248
  %1250 = vmatmul.bf16.gmra.mxu0 %v1201
  %v1251 = vpop.f32.mrf.mxu0
  %v1252 = vadd.f32 0.0, %v1251
  %v1253 = vpop.f32.mrf.mxu0
  %v1254 = vadd.f32 0.0, %v1253
  %1255 = vdwg.mxu0
  %v1256 = vpack.c.bf16 %v1217, %v1217
  %v1257 = vpack.c.bf16 %v1219, %v1219
  %v1258 = vpack.c.bf16 %v1222, %v1222
  %v1259 = vpack.c.bf16 %v1224, %v1224
  %v1260 = vpack.c.bf16 %v1227, %v1227
  %v1261 = vpack.c.bf16 %v1229, %v1229
  %v1262 = vpack.c.bf16 %v1232, %v1232
  %v1263 = vpack.c.bf16 %v1234, %v1234
  %v1264 = vpack.c.bf16 %v1237, %v1237
  %v1265 = vpack.c.bf16 %v1239, %v1239
  %v1266 = vpack.c.bf16 %v1242, %v1242
  %v1267 = vpack.c.bf16 %v1244, %v1244
  %v1268 = vpack.c.bf16 %v1247, %v1247
  %v1269 = vpack.c.bf16 %v1249, %v1249
  %v1270 = vpack.c.bf16 %v1252, %v1252
  %v1271 = vpack.c.bf16 %v1254, %v1254
  %1272 = vst [vmem:[%s2] sm:$0xf] %v1256
  %1273 = vst [vmem:[%s2 + $0x4] sm:$0xf] %v1257
  %1274 = vst [vmem:[%s2 + $0x8] sm:$0xf] %v1258
  %1275 = vst [vmem:[%s2 + $0xc] sm:$0xf] %v1259
  %1276 = vst [vmem:[%s2 + $0x10] sm:$0xf] %v1260
  %1277 = vst [vmem:[%s2 + $0x14] sm:$0xf] %v1261
  %1278 = vst [vmem:[%s2 + $0x18] sm:$0xf] %v1262
  %1279 = vst [vmem:[%s2 + $0x1c] sm:$0xf] %v1263
  %1280 = vst [vmem:[%s2 + $0x20] sm:$0xf] %v1264
  %1281 = vst [vmem:[%s2 + $0x24] sm:$0xf] %v1265
  %1282 = vst [vmem:[%s2 + $0x28] sm:$0xf] %v1266
  %1283 = vst [vmem:[%s2 + $0x2c] sm:$0xf] %v1267
  %1284 = vst [vmem:[%s2 + $0x30] sm:$0xf] %v1268
  %1285 = vst [vmem:[%s2 + $0x34] sm:$0xf] %v1269
  %1286 = vst [vmem:[%s2 + $0x38] sm:$0xf] %v1270
  %1287 = vst [vmem:[%s2 + $0x3c] sm:$0xf] %v1271
  %v1288 = vadd.f32 %v1217, %v1219
  %v1289 = vadd.f32 %v1288, %v1222
  %v1290 = vadd.f32 %v1289, %v1224
  %v1291 = vadd.f32 %v1290, %v1227
  %v1292 = vadd.f32 %v1291, %v1229
  %v1293 = vadd.f32 %v1292, %v1232
  %v1294 = vadd.f32 %v1293, %v1234
  %v1295 = vadd.f32 %v1294, %v1237
  %v1296 = vadd.f32 %v1295, %v1239
  %v1297 = vadd.f32 %v1296, %v1242
  %v1298 = vadd.f32 %v1297, %v1244
  %v1299 = vadd.f32 %v1298, %v1247
  %v1300 = vadd.f32 %v1299, %v1249
  %v1301 = vadd.f32 %v1300, %v1252
  %v1302 = vadd.f32 %v1301, %v1254
  %v1303 = vrot.slane %v1302, 4
  %v1304 = vadd.f32 %v1302, %v1303
  %v1305 = vrot.slane %v1304, 2
  %v1306 = vadd.f32 %v1304, %v1305
  %v1307 = vrot.slane %v1306, 1
  %v1308 = vadd.f32 %v1306, %v1307
  %1309 = vst [vmem:[%s25] sm:$0x1] %v1308
  %v1310 = vmul.f32 %v1217, %v1217
  %v1311 = vmul.f32 %v1219, %v1219
  %v1312 = vmul.f32 %v1222, %v1222
  %v1313 = vmul.f32 %v1224, %v1224
  %v1314 = vmul.f32 %v1227, %v1227
  %v1315 = vmul.f32 %v1229, %v1229
  %v1316 = vmul.f32 %v1232, %v1232
  %v1317 = vmul.f32 %v1234, %v1234
  %v1318 = vmul.f32 %v1237, %v1237
  %v1319 = vmul.f32 %v1239, %v1239
  %v1320 = vmul.f32 %v1242, %v1242
  %v1321 = vmul.f32 %v1244, %v1244
  %v1322 = vmul.f32 %v1247, %v1247
  %v1323 = vmul.f32 %v1249, %v1249
  %v1324 = vmul.f32 %v1252, %v1252
  %v1325 = vmul.f32 %v1254, %v1254
  %v1326 = vadd.f32 %v1310, %v1311
  %v1327 = vadd.f32 %v1326, %v1312
  %v1328 = vadd.f32 %v1327, %v1313
  %v1329 = vadd.f32 %v1328, %v1314
  %v1330 = vadd.f32 %v1329, %v1315
  %v1331 = vadd.f32 %v1330, %v1316
  %v1332 = vadd.f32 %v1331, %v1317
  %v1333 = vadd.f32 %v1332, %v1318
  %v1334 = vadd.f32 %v1333, %v1319
  %v1335 = vadd.f32 %v1334, %v1320
  %v1336 = vadd.f32 %v1335, %v1321
  %v1337 = vadd.f32 %v1336, %v1322
  %v1338 = vadd.f32 %v1337, %v1323
  %v1339 = vadd.f32 %v1338, %v1324
  %v1340 = vadd.f32 %v1339, %v1325
  %v1341 = vrot.slane %v1340, 4
  %v1342 = vadd.f32 %v1340, %v1341
  %v1343 = vrot.slane %v1342, 2
  %v1344 = vadd.f32 %v1342, %v1343
  %v1345 = vrot.slane %v1344, 1
  %v1346 = vadd.f32 %v1344, %v1345
  %1347 = vst [vmem:[%s30] sm:$0x1] %v1346
  %s1348 = sadd.s32 0, 0
  %p1349 = scmp.lt.s32.totalorder %s1348, 0
  %s1350 = scalar_select %p1349, %s1348, 0
  %s1351 = scalar_lea.vmem %s3, %s1350
  %s1352 = sadd.s32 0, 0
  %p1353 = scmp.lt.s32.totalorder %s1352, 0
  %s1354 = scalar_select %p1353, %s1352, 0
  %s1355 = scalar_lea.vmem %s4, %s1354
  // Predicated region
  $region10: #{conv_cell_forward.4} parent=0 // pred_check
    _
  $region11: #{conv_cell_forward.4} parent=0 // pred_check_branch
    %1357 = sbr.rel (0) target = $region13
  $region12: #{conv_cell_forward.4} parent=0 // pred_region
    _
  $region13: #{conv_cell_forward.4} parent=0 // pred_fallthru
    _
  // Predicated region
  $region14: #{conv_cell_forward.4} parent=0 // pred_check
    _
  $region15: #{conv_cell_forward.4} parent=0 // pred_check_branch
    %1359 = sbr.rel (0) target = $region17
  $region16: #{conv_cell_forward.4} parent=0 // pred_region
    %s1360 = sadd.s32 0, 0
  $region17: #{conv_cell_forward.4} parent=0 // pred_fallthru
    _
  // Predicated region
  $region18: #{conv_cell_forward.4} parent=0 // pred_check
    _
  $region19: #{conv_cell_forward.4} parent=0 // pred_check_branch
    %1362 = sbr.rel (0) target = $region21
  $region20: #{conv_cell_forward.4} parent=0 // pred_region
    %s1363 = sadd.s32 0, 0
  $region21: #{conv_cell_forward.4} parent=0 // pred_fallthru
    _
  // Predicated region
  $region22: #{conv_cell_forward.4} parent=0 // pred_check
    _
  $region23: #{conv_cell_forward.4} parent=0 // pred_check_branch
    %1365 = sbr.rel (0) target = $region25
  $region24: #{conv_cell_forward.4} parent=0 // pred_region
    _
  $region25: #{conv_cell_forward.4} parent=0 // pred_fallthru
    _
  // Predicated region
  $region26: #{conv_cell_forward.4} parent=0 // pred_check
    _
  $region27: #{conv_cell_forward.4} parent=0 // pred_check_branch
    %1367 = sbr.rel (0) target = $region29
  $region28: #{conv_cell_forward.4} parent=0 // pred_region
    %s1368 = sadd.s32 0, 0
    %p1369 = scmp.lt.s32.totalorder %s1368, 0
    %s1370 = scalar_select %p1369, %s1368, 0
    %s1371 = scalar_lea.vmem %s3, %s1370
  $region29: #{conv_cell_forward.4} parent=0 // pred_fallthru
    _
  // Predicated region
  $region30: #{conv_cell_forward.4} parent=0 // pred_check
    _
  $region31: #{conv_cell_forward.4} parent=0 // pred_check_branch
    %1373 = sbr.rel (0) target = $region33
  $region32: #{conv_cell_forward.4} parent=0 // pred_region
    %s1374 = sadd.s32 0, 0
    %p1375 = scmp.lt.s32.totalorder %s1374, 0
    %s1376 = scalar_select %p1375, %s1374, 0
    %s1377 = scalar_lea.vmem %s4, %s1376
  $region33: #{conv_cell_forward.4} parent=0 // pred_fallthru
    _

// kernel: conv_cell_forward.7
$region0: #{conv_cell_forward.7}
  #allocation0 [shape = 'u32[]', space=smem, size = 0x4, offset = 0x4, fixed_abs, tag = 'smem constant byte address 0x4 - core index']
  #allocation1 [shape = 'u32[72,128]{1,0:T(1,128)}', space=vmem, size = 0x9000, scoped, tag = 'internal scratch']
  %s0 = inlined_call_operand.vmem [shape: bf16[128,128], index: 0, kind: input, shape index: {}]
  %s1 = inlined_call_operand.vmem [shape: f32[1,128], index: 1, kind: input, shape index: {}]
  %s2 = inlined_call_operand.vmem [shape: f32[1,128], index: 2, kind: input, shape index: {}]
  %s3 = inlined_call_operand.vmem [shape: f32[128,128], index: 3, kind: output, shape index: {}]
  %s4 = sld [smem:[#allocation0]]
  $region22: #{conv_cell_forward.7} parent=0
    _
  %s6 = ssub.s32 1, %s4
  %s7 = scalar_select 0, %s6, %s4
  // Predicated region
  $region2: #{conv_cell_forward.7} parent=0 // pred_check
    _
  $region3: #{conv_cell_forward.7} parent=0 // pred_check_branch
    %9 = sbr.rel (0) target = $region5
  $region4: #{conv_cell_forward.7} parent=0 // pred_region
    _
  $region5: #{conv_cell_forward.7} parent=0 // pred_fallthru
    _
  // Predicated region
  $region6: #{conv_cell_forward.7} parent=0 // pred_check
    _
  $region7: #{conv_cell_forward.7} parent=0 // pred_check_branch
    %11 = sbr.rel (0) target = $region9
  $region8: #{conv_cell_forward.7} parent=0 // pred_region
    _
  $region9: #{conv_cell_forward.7} parent=0 // pred_fallthru
    _
  // Predicated region
  $region10: #{conv_cell_forward.7} parent=0 // pred_check
    _
  $region11: #{conv_cell_forward.7} parent=0 // pred_check_branch
    %13 = sbr.rel (0) target = $region13
  $region12: #{conv_cell_forward.7} parent=0 // pred_region
    _
  $region13: #{conv_cell_forward.7} parent=0 // pred_fallthru
    _
  %v14 = vld [vmem:[%s0] sm:$0xf]
  %v15 = vld [vmem:[%s0 + $0x4] sm:$0xf]
  %v16 = vld [vmem:[%s0 + $0x8] sm:$0xf]
  %v17 = vld [vmem:[%s0 + $0xc] sm:$0xf]
  %v18 = vld [vmem:[%s0 + $0x10] sm:$0xf]
  %v19 = vld [vmem:[%s0 + $0x14] sm:$0xf]
  %v20 = vld [vmem:[%s0 + $0x18] sm:$0xf]
  %v21 = vld [vmem:[%s0 + $0x1c] sm:$0xf]
  %v22 = vld [vmem:[%s0 + $0x20] sm:$0xf]
  %v23 = vld [vmem:[%s0 + $0x24] sm:$0xf]
  %v24 = vld [vmem:[%s0 + $0x28] sm:$0xf]
  %v25 = vld [vmem:[%s0 + $0x2c] sm:$0xf]
  %v26 = vld [vmem:[%s0 + $0x30] sm:$0xf]
  %v27 = vld [vmem:[%s0 + $0x34] sm:$0xf]
  %v28 = vld [vmem:[%s0 + $0x38] sm:$0xf]
  %v29 = vld [vmem:[%s0 + $0x3c] sm:$0xf]
  %v30 = vunpack.c.l.bf16 %v14
  %v31 = vunpack.c.l.bf16 %v15
  %v32 = vunpack.c.l.bf16 %v16
  %v33 = vunpack.c.l.bf16 %v17
  %v34 = vunpack.c.l.bf16 %v18
  %v35 = vunpack.c.l.bf16 %v19
  %v36 = vunpack.c.l.bf16 %v20
  %v37 = vunpack.c.l.bf16 %v21
  %v38 = vunpack.c.l.bf16 %v22
  %v39 = vunpack.c.l.bf16 %v23
  %v40 = vunpack.c.l.bf16 %v24
  %v41 = vunpack.c.l.bf16 %v25
  %v42 = vunpack.c.l.bf16 %v26
  %v43 = vunpack.c.l.bf16 %v27
  %v44 = vunpack.c.l.bf16 %v28
  %v45 = vunpack.c.l.bf16 %v29
  %v46 = vld [vmem:[%s1] sm:$0x1]
  %v48 = vperm.slane %v46, 0
  %v50 = vmul.f32 %v30, %v48
  %v51 = vmul.f32 %v31, %v48
  %v52 = vmul.f32 %v32, %v48
  %v53 = vmul.f32 %v33, %v48
  %v54 = vmul.f32 %v34, %v48
  %v55 = vmul.f32 %v35, %v48
  %v56 = vmul.f32 %v36, %v48
  %v57 = vmul.f32 %v37, %v48
  %v58 = vmul.f32 %v38, %v48
  %v59 = vmul.f32 %v39, %v48
  %v60 = vmul.f32 %v40, %v48
  %v61 = vmul.f32 %v41, %v48
  %v62 = vmul.f32 %v42, %v48
  %v63 = vmul.f32 %v43, %v48
  %v64 = vmul.f32 %v44, %v48
  %v65 = vmul.f32 %v45, %v48
  %v66 = vld [vmem:[%s2] sm:$0x1]
  %v68 = vperm.slane %v66, 0
  %v70 = vadd.f32 %v50, %v68
  %v71 = vadd.f32 %v51, %v68
  %v72 = vadd.f32 %v52, %v68
  %v73 = vadd.f32 %v53, %v68
  %v74 = vadd.f32 %v54, %v68
  %v75 = vadd.f32 %v55, %v68
  %v76 = vadd.f32 %v56, %v68
  %v77 = vadd.f32 %v57, %v68
  %v78 = vadd.f32 %v58, %v68
  %v79 = vadd.f32 %v59, %v68
  %v80 = vadd.f32 %v60, %v68
  %v81 = vadd.f32 %v61, %v68
  %v82 = vadd.f32 %v62, %v68
  %v83 = vadd.f32 %v63, %v68
  %v84 = vadd.f32 %v64, %v68
  %v85 = vadd.f32 %v65, %v68
  %vm86 = vcmp.ge.f32.partialorder %v70, 0.0
  %vm87 = vcmp.ge.f32.partialorder %v71, 0.0
  %vm88 = vcmp.ge.f32.partialorder %v72, 0.0
  %vm89 = vcmp.ge.f32.partialorder %v73, 0.0
  %vm90 = vcmp.ge.f32.partialorder %v74, 0.0
  %vm91 = vcmp.ge.f32.partialorder %v75, 0.0
  %vm92 = vcmp.ge.f32.partialorder %v76, 0.0
  %vm93 = vcmp.ge.f32.partialorder %v77, 0.0
  %vm94 = vcmp.ge.f32.partialorder %v78, 0.0
  %vm95 = vcmp.ge.f32.partialorder %v79, 0.0
  %vm96 = vcmp.ge.f32.partialorder %v80, 0.0
  %vm97 = vcmp.ge.f32.partialorder %v81, 0.0
  %vm98 = vcmp.ge.f32.partialorder %v82, 0.0
  %vm99 = vcmp.ge.f32.partialorder %v83, 0.0
  %vm100 = vcmp.ge.f32.partialorder %v84, 0.0
  %vm101 = vcmp.ge.f32.partialorder %v85, 0.0
  %v102 = vmul.f32 %v70, 0.01
  %v103 = vmul.f32 %v71, 0.01
  %v104 = vmul.f32 %v72, 0.01
  %v105 = vmul.f32 %v73, 0.01
  %v106 = vmul.f32 %v74, 0.01
  %v107 = vmul.f32 %v75, 0.01
  %v108 = vmul.f32 %v76, 0.01
  %v109 = vmul.f32 %v77, 0.01
  %v110 = vmul.f32 %v78, 0.01
  %v111 = vmul.f32 %v79, 0.01
  %v112 = vmul.f32 %v80, 0.01
  %v113 = vmul.f32 %v81, 0.01
  %v114 = vmul.f32 %v82, 0.01
  %v115 = vmul.f32 %v83, 0.01
  %v116 = vmul.f32 %v84, 0.01
  %v117 = vmul.f32 %v85, 0.01
  %v118 = vsel %vm86, %v70, %v102
  %v119 = vsel %vm87, %v71, %v103
  %v120 = vsel %vm88, %v72, %v104
  %v121 = vsel %vm89, %v73, %v105
  %v122 = vsel %vm90, %v74, %v106
  %v123 = vsel %vm91, %v75, %v107
  %v124 = vsel %vm92, %v76, %v108
  %v125 = vsel %vm93, %v77, %v109
  %v126 = vsel %vm94, %v78, %v110
  %v127 = vsel %vm95, %v79, %v111
  %v128 = vsel %vm96, %v80, %v112
  %v129 = vsel %vm97, %v81, %v113
  %v130 = vsel %vm98, %v82, %v114
  %v131 = vsel %vm99, %v83, %v115
  %v132 = vsel %vm100, %v84, %v116
  %v133 = vsel %vm101, %v85, %v117
  %134 = vst [vmem:[%s3] sm:$0xff] %v118
  %135 = vst [vmem:[%s3 + $0x8] sm:$0xff] %v119
  %136 = vst [vmem:[%s3 + $0x10] sm:$0xff] %v120
  %137 = vst [vmem:[%s3 + $0x18] sm:$0xff] %v121
  %138 = vst [vmem:[%s3 + $0x20] sm:$0xff] %v122
  %139 = vst [vmem:[%s3 + $0x28] sm:$0xff] %v123
  %140 = vst [vmem:[%s3 + $0x30] sm:$0xff] %v124
  %141 = vst [vmem:[%s3 + $0x38] sm:$0xff] %v125
  %142 = vst [vmem:[%s3 + $0x40] sm:$0xff] %v126
  %143 = vst [vmem:[%s3 + $0x48] sm:$0xff] %v127
  %144 = vst [vmem:[%s3 + $0x50] sm:$0xff] %v128
  %145 = vst [vmem:[%s3 + $0x58] sm:$0xff] %v129
  %146 = vst [vmem:[%s3 + $0x60] sm:$0xff] %v130
  %147 = vst [vmem:[%s3 + $0x68] sm:$0xff] %v131
  %148 = vst [vmem:[%s3 + $0x70] sm:$0xff] %v132
  %149 = vst [vmem:[%s3 + $0x78] sm:$0xff] %v133
  // Predicated region
  $region14: #{conv_cell_forward.7} parent=0 // pred_check
    _
  $region15: #{conv_cell_forward.7} parent=0 // pred_check_branch
    %151 = sbr.rel (0) target = $region17
  $region16: #{conv_cell_forward.7} parent=0 // pred_region
    _
  $region17: #{conv_cell_forward.7} parent=0 // pred_fallthru
    _
  // Predicated region
  $region18: #{conv_cell_forward.7} parent=0 // pred_check
    _
  $region19: #{conv_cell_forward.7} parent=0 // pred_check_branch
    %153 = sbr.rel (0) target = $region21
  $region20: #{conv_cell_forward.7} parent=0 // pred_region
    _
  $region21: #{conv_cell_forward.7} parent=0 // pred_fallthru
    _

// kernel: conv_cell_forward.6
$region0: #{conv_cell_forward.6}
  #allocation0 [shape = 'u32[]', space=smem, size = 0x4, offset = 0x4, fixed_abs, tag = 'smem constant byte address 0x4 - core index']
  #allocation1 [shape = 'u32[72,128]{1,0:T(1,128)}', space=vmem, size = 0x9000, scoped, tag = 'internal scratch']
  %s0 = inlined_call_operand.vmem [shape: bf16[2,1,10,10,128], index: 0, kind: input, shape index: {}]
  %s1 = inlined_call_operand.vmem [shape: bf16[1152,128], index: 1, kind: input, shape index: {}]
  %s2 = inlined_call_operand.vmem [shape: bf16[2,8,8,128], index: 2, kind: output, shape index: {0}]
  %s3 = inlined_call_operand.vmem [shape: f32[1,1,128], index: 3, kind: output, shape index: {1}]
  %s4 = inlined_call_operand.vmem [shape: f32[1,1,128], index: 4, kind: output, shape index: {2}]
  %5 = xla_tuple %s2, %s3, %s4
  %s6 = sld [smem:[#allocation0]]
  $region34: #{conv_cell_forward.6} parent=0
    _
  %s8 = ssub.s32 1, %s6
  %s9 = scalar_select 0, %s8, %s6
  // Predicated region
  $region2: #{conv_cell_forward.6} parent=0 // pred_check
    _
  $region3: #{conv_cell_forward.6} parent=0 // pred_check_branch
    %11 = sbr.rel (0) target = $region5
  $region4: #{conv_cell_forward.6} parent=0 // pred_region
    _
  $region5: #{conv_cell_forward.6} parent=0 // pred_fallthru
    _
  // Predicated region
  $region6: #{conv_cell_forward.6} parent=0 // pred_check
    _
  $region7: #{conv_cell_forward.6} parent=0 // pred_check_branch
    %13 = sbr.rel (0) target = $region9
  $region8: #{conv_cell_forward.6} parent=0 // pred_region
    _
  $region9: #{conv_cell_forward.6} parent=0 // pred_fallthru
    _
  %s14 = sadd.s32 0, 0
  %p15 = scmp.lt.s32.totalorder %s14, 0
  %s16 = scalar_select %p15, %s14, 0
  %s17 = scalar_lea.vmem %s3, %s16
  %s18 = sadd.s32 0, 0
  %p19 = scmp.lt.s32.totalorder %s18, 0
  %s20 = scalar_select %p19, %s18, 0
  %s21 = scalar_lea.vmem %s4, %s20
  %s22 = sadd.s32 0, 0
  %p23 = scmp.lt.s32.totalorder %s22, 0
  %s24 = scalar_select %p23, %s22, 0
  %s25 = scalar_lea.vmem %s3, %s24
  %s26 = sadd.s32 0, 0
  %s27 = sadd.s32 0, 0
  %p28 = scmp.lt.s32.totalorder %s27, 0
  %s29 = scalar_select %p28, %s27, 0
  %s30 = scalar_lea.vmem %s4, %s29
  %s31 = sadd.s32 0, 0
  %s32 = smul.u32 0, 8
  %s33 = smul.u32 %s32, 2
  %s34 = smul.addr %s33, 4
  %s35 = scalar_lea.vmem %s0, %s34
  %v36 = vld [vmem:[%s35] sm:$0xf]
  %v37 = vld [vmem:[%s35 + $0x8] sm:$0xf]
  %v38 = vld [vmem:[%s35 + $0x10] sm:$0xf]
  %v39 = vld [vmem:[%s35 + $0x18] sm:$0xf]
  %v40 = vld [vmem:[%s35 + $0x20] sm:$0xf]
  %v41 = vld [vmem:[%s35 + $0x28] sm:$0xf]
  %v42 = vld [vmem:[%s35 + $0x30] sm:$0xf]
  %v43 = vld [vmem:[%s35 + $0x38] sm:$0xf]
  %v44 = vld [vmem:[%s35 + $0x50] sm:$0xf]
  %v45 = vld [vmem:[%s35 + $0x58] sm:$0xf]
  %v46 = vld [vmem:[%s35 + $0x60] sm:$0xf]
  %v47 = vld [vmem:[%s35 + $0x68] sm:$0xf]
  %v48 = vld [vmem:[%s35 + $0x70] sm:$0xf]
  %v49 = vld [vmem:[%s35 + $0x78] sm:$0xf]
  %v50 = vld [vmem:[%s35 + $0x80] sm:$0xf]
  %v51 = vld [vmem:[%s35 + $0x88] sm:$0xf]
  %v52 = vld [vmem:[%s35 + $0x4] sm:$0x1]
  %v53 = vld [vmem:[%s35 + $0xc] sm:$0x1]
  %v54 = vld [vmem:[%s35 + $0x14] sm:$0x1]
  %v55 = vld [vmem:[%s35 + $0x1c] sm:$0x1]
  %v56 = vld [vmem:[%s35 + $0x24] sm:$0x1]
  %v57 = vld [vmem:[%s35 + $0x2c] sm:$0x1]
  %v58 = vld [vmem:[%s35 + $0x34] sm:$0x1]
  %v59 = vld [vmem:[%s35 + $0x3c] sm:$0x1]
  %v60 = vld [vmem:[%s35 + $0x54] sm:$0x1]
  %v61 = vld [vmem:[%s35 + $0x5c] sm:$0x1]
  %v62 = vld [vmem:[%s35 + $0x64] sm:$0x1]
  %v63 = vld [vmem:[%s35 + $0x6c] sm:$0x1]
  %v64 = vld [vmem:[%s35 + $0x74] sm:$0x1]
  %v65 = vld [vmem:[%s35 + $0x7c] sm:$0x1]
  %v66 = vld [vmem:[%s35 + $0x84] sm:$0x1]
  %v67 = vld [vmem:[%s35 + $0x8c] sm:$0x1]
  %v68 = vld [vmem:[%s35] sm:$0xe]
  %v69 = vld [vmem:[%s35 + $0x8] sm:$0xe]
  %v70 = vld [vmem:[%s35 + $0x10] sm:$0xe]
  %v71 = vld [vmem:[%s35 + $0x18] sm:$0xe]
  %v72 = vld [vmem:[%s35 + $0x20] sm:$0xe]
  %v73 = vld [vmem:[%s35 + $0x28] sm:$0xe]
  %v74 = vld [vmem:[%s35 + $0x30] sm:$0xe]
  %v75 = vld [vmem:[%s35 + $0x38] sm:$0xe]
  %v76 = vld [vmem:[%s35 + $0x50] sm:$0xe]
  %v77 = vld [vmem:[%s35 + $0x58] sm:$0xe]
  %v78 = vld [vmem:[%s35 + $0x60] sm:$0xe]
  %v79 = vld [vmem:[%s35 + $0x68] sm:$0xe]
  %v80 = vld [vmem:[%s35 + $0x70] sm:$0xe]
  %v81 = vld [vmem:[%s35 + $0x78] sm:$0xe]
  %v82 = vld [vmem:[%s35 + $0x80] sm:$0xe]
  %v83 = vld [vmem:[%s35 + $0x88] sm:$0xe]
  %s84 = sadd.s32 %s32, 1
  %s85 = smul.u32 %s84, 2
  %s86 = smul.addr %s85, 4
  %s87 = scalar_lea.vmem %s0, %s86
  %v88 = vld [vmem:[%s87] sm:$0xf]
  %v89 = vld [vmem:[%s87 + $0x8] sm:$0xf]
  %v90 = vld [vmem:[%s87 + $0x10] sm:$0xf]
  %v91 = vld [vmem:[%s87 + $0x18] sm:$0xf]
  %v92 = vld [vmem:[%s87 + $0x20] sm:$0xf]
  %v93 = vld [vmem:[%s87 + $0x28] sm:$0xf]
  %v94 = vld [vmem:[%s87 + $0x30] sm:$0xf]
  %v95 = vld [vmem:[%s87 + $0x38] sm:$0xf]
  %v96 = vld [vmem:[%s87 + $0x50] sm:$0xf]
  %v97 = vld [vmem:[%s87 + $0x58] sm:$0xf]
  %v98 = vld [vmem:[%s87 + $0x60] sm:$0xf]
  %v99 = vld [vmem:[%s87 + $0x68] sm:$0xf]
  %v100 = vld [vmem:[%s87 + $0x70] sm:$0xf]
  %v101 = vld [vmem:[%s87 + $0x78] sm:$0xf]
  %v102 = vld [vmem:[%s87 + $0x80] sm:$0xf]
  %v103 = vld [vmem:[%s87 + $0x88] sm:$0xf]
  %v104 = vld [vmem:[%s87 + $0x4] sm:$0x1]
  %v105 = vld [vmem:[%s87 + $0xc] sm:$0x1]
  %v106 = vld [vmem:[%s87 + $0x14] sm:$0x1]
  %v107 = vld [vmem:[%s87 + $0x1c] sm:$0x1]
  %v108 = vld [vmem:[%s87 + $0x24] sm:$0x1]
  %v109 = vld [vmem:[%s87 + $0x2c] sm:$0x1]
  %v110 = vld [vmem:[%s87 + $0x34] sm:$0x1]
  %v111 = vld [vmem:[%s87 + $0x3c] sm:$0x1]
  %v112 = vld [vmem:[%s87 + $0x54] sm:$0x1]
  %v113 = vld [vmem:[%s87 + $0x5c] sm:$0x1]
  %v114 = vld [vmem:[%s87 + $0x64] sm:$0x1]
  %v115 = vld [vmem:[%s87 + $0x6c] sm:$0x1]
  %v116 = vld [vmem:[%s87 + $0x74] sm:$0x1]
  %v117 = vld [vmem:[%s87 + $0x7c] sm:$0x1]
  %v118 = vld [vmem:[%s87 + $0x84] sm:$0x1]
  %v119 = vld [vmem:[%s87 + $0x8c] sm:$0x1]
  %v120 = vld [vmem:[%s87] sm:$0xe]
  %v121 = vld [vmem:[%s87 + $0x8] sm:$0xe]
  %v122 = vld [vmem:[%s87 + $0x10] sm:$0xe]
  %v123 = vld [vmem:[%s87 + $0x18] sm:$0xe]
  %v124 = vld [vmem:[%s87 + $0x20] sm:$0xe]
  %v125 = vld [vmem:[%s87 + $0x28] sm:$0xe]
  %v126 = vld [vmem:[%s87 + $0x30] sm:$0xe]
  %v127 = vld [vmem:[%s87 + $0x38] sm:$0xe]
  %v128 = vld [vmem:[%s87 + $0x50] sm:$0xe]
  %v129 = vld [vmem:[%s87 + $0x58] sm:$0xe]
  %v130 = vld [vmem:[%s87 + $0x60] sm:$0xe]
  %v131 = vld [vmem:[%s87 + $0x68] sm:$0xe]
  %v132 = vld [vmem:[%s87 + $0x70] sm:$0xe]
  %v133 = vld [vmem:[%s87 + $0x78] sm:$0xe]
  %v134 = vld [vmem:[%s87 + $0x80] sm:$0xe]
  %v135 = vld [vmem:[%s87 + $0x88] sm:$0xe]
  %s136 = sadd.s32 %s32, 2
  %s137 = smul.u32 %s136, 2
  %s138 = smul.addr %s137, 4
  %s139 = scalar_lea.vmem %s0, %s138
  %v140 = vld [vmem:[%s139] sm:$0xf]
  %v141 = vld [vmem:[%s139 + $0x8] sm:$0xf]
  %v142 = vld [vmem:[%s139 + $0x10] sm:$0xf]
  %v143 = vld [vmem:[%s139 + $0x18] sm:$0xf]
  %v144 = vld [vmem:[%s139 + $0x20] sm:$0xf]
  %v145 = vld [vmem:[%s139 + $0x28] sm:$0xf]
  %v146 = vld [vmem:[%s139 + $0x30] sm:$0xf]
  %v147 = vld [vmem:[%s139 + $0x38] sm:$0xf]
  %v148 = vld [vmem:[%s139 + $0x50] sm:$0xf]
  %v149 = vld [vmem:[%s139 + $0x58] sm:$0xf]
  %v150 = vld [vmem:[%s139 + $0x60] sm:$0xf]
  %v151 = vld [vmem:[%s139 + $0x68] sm:$0xf]
  %v152 = vld [vmem:[%s139 + $0x70] sm:$0xf]
  %v153 = vld [vmem:[%s139 + $0x78] sm:$0xf]
  %v154 = vld [vmem:[%s139 + $0x80] sm:$0xf]
  %v155 = vld [vmem:[%s139 + $0x88] sm:$0xf]
  %v156 = vld [vmem:[%s139 + $0x4] sm:$0x1]
  %v157 = vld [vmem:[%s139 + $0xc] sm:$0x1]
  %v158 = vld [vmem:[%s139 + $0x14] sm:$0x1]
  %v159 = vld [vmem:[%s139 + $0x1c] sm:$0x1]
  %v160 = vld [vmem:[%s139 + $0x24] sm:$0x1]
  %v161 = vld [vmem:[%s139 + $0x2c] sm:$0x1]
  %v162 = vld [vmem:[%s139 + $0x34] sm:$0x1]
  %v163 = vld [vmem:[%s139 + $0x3c] sm:$0x1]
  %v164 = vld [vmem:[%s139 + $0x54] sm:$0x1]
  %v165 = vld [vmem:[%s139 + $0x5c] sm:$0x1]
  %v166 = vld [vmem:[%s139 + $0x64] sm:$0x1]
  %v167 = vld [vmem:[%s139 + $0x6c] sm:$0x1]
  %v168 = vld [vmem:[%s139 + $0x74] sm:$0x1]
  %v169 = vld [vmem:[%s139 + $0x7c] sm:$0x1]
  %v170 = vld [vmem:[%s139 + $0x84] sm:$0x1]
  %v171 = vld [vmem:[%s139 + $0x8c] sm:$0x1]
  %v172 = vld [vmem:[%s139] sm:$0xe]
  %v173 = vld [vmem:[%s139 + $0x8] sm:$0xe]
  %v174 = vld [vmem:[%s139 + $0x10] sm:$0xe]
  %v175 = vld [vmem:[%s139 + $0x18] sm:$0xe]
  %v176 = vld [vmem:[%s139 + $0x20] sm:$0xe]
  %v177 = vld [vmem:[%s139 + $0x28] sm:$0xe]
  %v178 = vld [vmem:[%s139 + $0x30] sm:$0xe]
  %v179 = vld [vmem:[%s139 + $0x38] sm:$0xe]
  %v180 = vld [vmem:[%s139 + $0x50] sm:$0xe]
  %v181 = vld [vmem:[%s139 + $0x58] sm:$0xe]
  %v182 = vld [vmem:[%s139 + $0x60] sm:$0xe]
  %v183 = vld [vmem:[%s139 + $0x68] sm:$0xe]
  %v184 = vld [vmem:[%s139 + $0x70] sm:$0xe]
  %v185 = vld [vmem:[%s139 + $0x78] sm:$0xe]
  %v186 = vld [vmem:[%s139 + $0x80] sm:$0xe]
  %v187 = vld [vmem:[%s139 + $0x88] sm:$0xe]
  %v220 = vunpack.c.l.b16 %v36
  %v221 = vunpack.c.l.b16 %v52
  %v222 = vunpack.c.l.b16 %v37
  %v223 = vunpack.c.l.b16 %v53
  %v224 = vunpack.c.l.b16 %v38
  %v225 = vunpack.c.l.b16 %v54
  %v226 = vunpack.c.l.b16 %v39
  %v227 = vunpack.c.l.b16 %v55
  %v228 = vunpack.c.l.b16 %v40
  %v229 = vunpack.c.l.b16 %v56
  %v230 = vunpack.c.l.b16 %v41
  %v231 = vunpack.c.l.b16 %v57
  %v232 = vunpack.c.l.b16 %v42
  %v233 = vunpack.c.l.b16 %v58
  %v234 = vunpack.c.l.b16 %v43
  %v235 = vunpack.c.l.b16 %v59
  %v236 = vunpack.c.l.b16 %v44
  %v237 = vunpack.c.l.b16 %v60
  %v238 = vunpack.c.l.b16 %v45
  %v239 = vunpack.c.l.b16 %v61
  %v240 = vunpack.c.l.b16 %v46
  %v241 = vunpack.c.l.b16 %v62
  %v242 = vunpack.c.l.b16 %v47
  %v243 = vunpack.c.l.b16 %v63
  %v244 = vunpack.c.l.b16 %v48
  %v245 = vunpack.c.l.b16 %v64
  %v246 = vunpack.c.l.b16 %v49
  %v247 = vunpack.c.l.b16 %v65
  %v248 = vunpack.c.l.b16 %v50
  %v249 = vunpack.c.l.b16 %v66
  %v250 = vunpack.c.l.b16 %v51
  %v251 = vunpack.c.l.b16 %v67
  %v252 = vpack.c.b16 %v221, %v220
  %v253 = vpack.c.b16 %v223, %v222
  %v254 = vpack.c.b16 %v225, %v224
  %v255 = vpack.c.b16 %v227, %v226
  %v256 = vpack.c.b16 %v229, %v228
  %v257 = vpack.c.b16 %v231, %v230
  %v258 = vpack.c.b16 %v233, %v232
  %v259 = vpack.c.b16 %v235, %v234
  %v260 = vpack.c.b16 %v237, %v236
  %v261 = vpack.c.b16 %v239, %v238
  %v262 = vpack.c.b16 %v241, %v240
  %v263 = vpack.c.b16 %v243, %v242
  %v264 = vpack.c.b16 %v245, %v244
  %v265 = vpack.c.b16 %v247, %v246
  %v266 = vpack.c.b16 %v249, %v248
  %v267 = vpack.c.b16 %v251, %v250
  %v269 = vshrl.u32 %v252, 16
  %v271 = vshll.u32 %v252, 16
  %v273 = vrot.slane %v271, 1
  %v274 = vor.u32 %v269, %v273
  %v276 = vshrl.u32 %v253, 16
  %v278 = vshll.u32 %v253, 16
  %v280 = vrot.slane %v278, 1
  %v281 = vor.u32 %v276, %v280
  %v283 = vshrl.u32 %v254, 16
  %v285 = vshll.u32 %v254, 16
  %v287 = vrot.slane %v285, 1
  %v288 = vor.u32 %v283, %v287
  %v290 = vshrl.u32 %v255, 16
  %v292 = vshll.u32 %v255, 16
  %v294 = vrot.slane %v292, 1
  %v295 = vor.u32 %v290, %v294
  %v297 = vshrl.u32 %v256, 16
  %v299 = vshll.u32 %v256, 16
  %v301 = vrot.slane %v299, 1
  %v302 = vor.u32 %v297, %v301
  %v304 = vshrl.u32 %v257, 16
  %v306 = vshll.u32 %v257, 16
  %v308 = vrot.slane %v306, 1
  %v309 = vor.u32 %v304, %v308
  %v311 = vshrl.u32 %v258, 16
  %v313 = vshll.u32 %v258, 16
  %v315 = vrot.slane %v313, 1
  %v316 = vor.u32 %v311, %v315
  %v318 = vshrl.u32 %v259, 16
  %v320 = vshll.u32 %v259, 16
  %v322 = vrot.slane %v320, 1
  %v323 = vor.u32 %v318, %v322
  %v325 = vshrl.u32 %v260, 16
  %v327 = vshll.u32 %v260, 16
  %v329 = vrot.slane %v327, 1
  %v330 = vor.u32 %v325, %v329
  %v332 = vshrl.u32 %v261, 16
  %v334 = vshll.u32 %v261, 16
  %v336 = vrot.slane %v334, 1
  %v337 = vor.u32 %v332, %v336
  %v339 = vshrl.u32 %v262, 16
  %v341 = vshll.u32 %v262, 16
  %v343 = vrot.slane %v341, 1
  %v344 = vor.u32 %v339, %v343
  %v346 = vshrl.u32 %v263, 16
  %v348 = vshll.u32 %v263, 16
  %v350 = vrot.slane %v348, 1
  %v351 = vor.u32 %v346, %v350
  %v353 = vshrl.u32 %v264, 16
  %v355 = vshll.u32 %v264, 16
  %v357 = vrot.slane %v355, 1
  %v358 = vor.u32 %v353, %v357
  %v360 = vshrl.u32 %v265, 16
  %v362 = vshll.u32 %v265, 16
  %v364 = vrot.slane %v362, 1
  %v365 = vor.u32 %v360, %v364
  %v367 = vshrl.u32 %v266, 16
  %v369 = vshll.u32 %v266, 16
  %v371 = vrot.slane %v369, 1
  %v372 = vor.u32 %v367, %v371
  %v374 = vshrl.u32 %v267, 16
  %v376 = vshll.u32 %v267, 16
  %v378 = vrot.slane %v376, 1
  %v379 = vor.u32 %v374, %v378
  %v412 = vunpack.c.l.b16 %v68
  %v413 = vunpack.c.l.b16 %v69
  %v414 = vunpack.c.l.b16 %v70
  %v415 = vunpack.c.l.b16 %v71
  %v416 = vunpack.c.l.b16 %v72
  %v417 = vunpack.c.l.b16 %v73
  %v418 = vunpack.c.l.b16 %v74
  %v419 = vunpack.c.l.b16 %v75
  %v420 = vunpack.c.l.b16 %v76
  %v421 = vunpack.c.l.b16 %v77
  %v422 = vunpack.c.l.b16 %v78
  %v423 = vunpack.c.l.b16 %v79
  %v424 = vunpack.c.l.b16 %v80
  %v425 = vunpack.c.l.b16 %v81
  %v426 = vunpack.c.l.b16 %v82
  %v427 = vunpack.c.l.b16 %v83
  %v428 = vpack.c.b16 %v221, %v412
  %v429 = vpack.c.b16 %v223, %v413
  %v430 = vpack.c.b16 %v225, %v414
  %v431 = vpack.c.b16 %v227, %v415
  %v432 = vpack.c.b16 %v229, %v416
  %v433 = vpack.c.b16 %v231, %v417
  %v434 = vpack.c.b16 %v233, %v418
  %v435 = vpack.c.b16 %v235, %v419
  %v436 = vpack.c.b16 %v237, %v420
  %v437 = vpack.c.b16 %v239, %v421
  %v438 = vpack.c.b16 %v241, %v422
  %v439 = vpack.c.b16 %v243, %v423
  %v440 = vpack.c.b16 %v245, %v424
  %v441 = vpack.c.b16 %v247, %v425
  %v442 = vpack.c.b16 %v249, %v426
  %v443 = vpack.c.b16 %v251, %v427
  %v444 = vrot.slane %v428, 1
  %v445 = vrot.slane %v429, 1
  %v446 = vrot.slane %v430, 1
  %v447 = vrot.slane %v431, 1
  %v448 = vrot.slane %v432, 1
  %v449 = vrot.slane %v433, 1
  %v450 = vrot.slane %v434, 1
  %v451 = vrot.slane %v435, 1
  %v452 = vrot.slane %v436, 1
  %v453 = vrot.slane %v437, 1
  %v454 = vrot.slane %v438, 1
  %v455 = vrot.slane %v439, 1
  %v456 = vrot.slane %v440, 1
  %v457 = vrot.slane %v441, 1
  %v458 = vrot.slane %v442, 1
  %v459 = vrot.slane %v443, 1
  %v508 = vunpack.c.l.b16 %v88
  %v509 = vunpack.c.l.b16 %v104
  %v510 = vunpack.c.l.b16 %v89
  %v511 = vunpack.c.l.b16 %v105
  %v512 = vunpack.c.l.b16 %v90
  %v513 = vunpack.c.l.b16 %v106
  %v514 = vunpack.c.l.b16 %v91
  %v515 = vunpack.c.l.b16 %v107
  %v516 = vunpack.c.l.b16 %v92
  %v517 = vunpack.c.l.b16 %v108
  %v518 = vunpack.c.l.b16 %v93
  %v519 = vunpack.c.l.b16 %v109
  %v520 = vunpack.c.l.b16 %v94
  %v521 = vunpack.c.l.b16 %v110
  %v522 = vunpack.c.l.b16 %v95
  %v523 = vunpack.c.l.b16 %v111
  %v524 = vunpack.c.l.b16 %v96
  %v525 = vunpack.c.l.b16 %v112
  %v526 = vunpack.c.l.b16 %v97
  %v527 = vunpack.c.l.b16 %v113
  %v528 = vunpack.c.l.b16 %v98
  %v529 = vunpack.c.l.b16 %v114
  %v530 = vunpack.c.l.b16 %v99
  %v531 = vunpack.c.l.b16 %v115
  %v532 = vunpack.c.l.b16 %v100
  %v533 = vunpack.c.l.b16 %v116
  %v534 = vunpack.c.l.b16 %v101
  %v535 = vunpack.c.l.b16 %v117
  %v536 = vunpack.c.l.b16 %v102
  %v537 = vunpack.c.l.b16 %v118
  %v538 = vunpack.c.l.b16 %v103
  %v539 = vunpack.c.l.b16 %v119
  %v540 = vpack.c.b16 %v509, %v508
  %v541 = vpack.c.b16 %v511, %v510
  %v542 = vpack.c.b16 %v513, %v512
  %v543 = vpack.c.b16 %v515, %v514
  %v544 = vpack.c.b16 %v517, %v516
  %v545 = vpack.c.b16 %v519, %v518
  %v546 = vpack.c.b16 %v521, %v520
  %v547 = vpack.c.b16 %v523, %v522
  %v548 = vpack.c.b16 %v525, %v524
  %v549 = vpack.c.b16 %v527, %v526
  %v550 = vpack.c.b16 %v529, %v528
  %v551 = vpack.c.b16 %v531, %v530
  %v552 = vpack.c.b16 %v533, %v532
  %v553 = vpack.c.b16 %v535, %v534
  %v554 = vpack.c.b16 %v537, %v536
  %v555 = vpack.c.b16 %v539, %v538
  %v557 = vshrl.u32 %v540, 16
  %v559 = vshll.u32 %v540, 16
  %v561 = vrot.slane %v559, 1
  %v562 = vor.u32 %v557, %v561
  %v564 = vshrl.u32 %v541, 16
  %v566 = vshll.u32 %v541, 16
  %v568 = vrot.slane %v566, 1
  %v569 = vor.u32 %v564, %v568
  %v571 = vshrl.u32 %v542, 16
  %v573 = vshll.u32 %v542, 16
  %v575 = vrot.slane %v573, 1
  %v576 = vor.u32 %v571, %v575
  %v578 = vshrl.u32 %v543, 16
  %v580 = vshll.u32 %v543, 16
  %v582 = vrot.slane %v580, 1
  %v583 = vor.u32 %v578, %v582
  %v585 = vshrl.u32 %v544, 16
  %v587 = vshll.u32 %v544, 16
  %v589 = vrot.slane %v587, 1
  %v590 = vor.u32 %v585, %v589
  %v592 = vshrl.u32 %v545, 16
  %v594 = vshll.u32 %v545, 16
  %v596 = vrot.slane %v594, 1
  %v597 = vor.u32 %v592, %v596
  %v599 = vshrl.u32 %v546, 16
  %v601 = vshll.u32 %v546, 16
  %v603 = vrot.slane %v601, 1
  %v604 = vor.u32 %v599, %v603
  %v606 = vshrl.u32 %v547, 16
  %v608 = vshll.u32 %v547, 16
  %v610 = vrot.slane %v608, 1
  %v611 = vor.u32 %v606, %v610
  %v613 = vshrl.u32 %v548, 16
  %v615 = vshll.u32 %v548, 16
  %v617 = vrot.slane %v615, 1
  %v618 = vor.u32 %v613, %v617
  %v620 = vshrl.u32 %v549, 16
  %v622 = vshll.u32 %v549, 16
  %v624 = vrot.slane %v622, 1
  %v625 = vor.u32 %v620, %v624
  %v627 = vshrl.u32 %v550, 16
  %v629 = vshll.u32 %v550, 16
  %v631 = vrot.slane %v629, 1
  %v632 = vor.u32 %v627, %v631
  %v634 = vshrl.u32 %v551, 16
  %v636 = vshll.u32 %v551, 16
  %v638 = vrot.slane %v636, 1
  %v639 = vor.u32 %v634, %v638
  %v641 = vshrl.u32 %v552, 16
  %v643 = vshll.u32 %v552, 16
  %v645 = vrot.slane %v643, 1
  %v646 = vor.u32 %v641, %v645
  %v648 = vshrl.u32 %v553, 16
  %v650 = vshll.u32 %v553, 16
  %v652 = vrot.slane %v650, 1
  %v653 = vor.u32 %v648, %v652
  %v655 = vshrl.u32 %v554, 16
  %v657 = vshll.u32 %v554, 16
  %v659 = vrot.slane %v657, 1
  %v660 = vor.u32 %v655, %v659
  %v662 = vshrl.u32 %v555, 16
  %v664 = vshll.u32 %v555, 16
  %v666 = vrot.slane %v664, 1
  %v667 = vor.u32 %v662, %v666
  %v700 = vunpack.c.l.b16 %v120
  %v701 = vunpack.c.l.b16 %v121
  %v702 = vunpack.c.l.b16 %v122
  %v703 = vunpack.c.l.b16 %v123
  %v704 = vunpack.c.l.b16 %v124
  %v705 = vunpack.c.l.b16 %v125
  %v706 = vunpack.c.l.b16 %v126
  %v707 = vunpack.c.l.b16 %v127
  %v708 = vunpack.c.l.b16 %v128
  %v709 = vunpack.c.l.b16 %v129
  %v710 = vunpack.c.l.b16 %v130
  %v711 = vunpack.c.l.b16 %v131
  %v712 = vunpack.c.l.b16 %v132
  %v713 = vunpack.c.l.b16 %v133
  %v714 = vunpack.c.l.b16 %v134
  %v715 = vunpack.c.l.b16 %v135
  %v716 = vpack.c.b16 %v509, %v700
  %v717 = vpack.c.b16 %v511, %v701
  %v718 = vpack.c.b16 %v513, %v702
  %v719 = vpack.c.b16 %v515, %v703
  %v720 = vpack.c.b16 %v517, %v704
  %v721 = vpack.c.b16 %v519, %v705
  %v722 = vpack.c.b16 %v521, %v706
  %v723 = vpack.c.b16 %v523, %v707
  %v724 = vpack.c.b16 %v525, %v708
  %v725 = vpack.c.b16 %v527, %v709
  %v726 = vpack.c.b16 %v529, %v710
  %v727 = vpack.c.b16 %v531, %v711
  %v728 = vpack.c.b16 %v533, %v712
  %v729 = vpack.c.b16 %v535, %v713
  %v730 = vpack.c.b16 %v537, %v714
  %v731 = vpack.c.b16 %v539, %v715
  %v732 = vrot.slane %v716, 1
  %v733 = vrot.slane %v717, 1
  %v734 = vrot.slane %v718, 1
  %v735 = vrot.slane %v719, 1
  %v736 = vrot.slane %v720, 1
  %v737 = vrot.slane %v721, 1
  %v738 = vrot.slane %v722, 1
  %v739 = vrot.slane %v723, 1
  %v740 = vrot.slane %v724, 1
  %v741 = vrot.slane %v725, 1
  %v742 = vrot.slane %v726, 1
  %v743 = vrot.slane %v727, 1
  %v744 = vrot.slane %v728, 1
  %v745 = vrot.slane %v729, 1
  %v746 = vrot.slane %v730, 1
  %v747 = vrot.slane %v731, 1
  %v796 = vunpack.c.l.b16 %v140
  %v797 = vunpack.c.l.b16 %v156
  %v798 = vunpack.c.l.b16 %v141
  %v799 = vunpack.c.l.b16 %v157
  %v800 = vunpack.c.l.b16 %v142
  %v801 = vunpack.c.l.b16 %v158
  %v802 = vunpack.c.l.b16 %v143
  %v803 = vunpack.c.l.b16 %v159
  %v804 = vunpack.c.l.b16 %v144
  %v805 = vunpack.c.l.b16 %v160
  %v806 = vunpack.c.l.b16 %v145
  %v807 = vunpack.c.l.b16 %v161
  %v808 = vunpack.c.l.b16 %v146
  %v809 = vunpack.c.l.b16 %v162
  %v810 = vunpack.c.l.b16 %v147
  %v811 = vunpack.c.l.b16 %v163
  %v812 = vunpack.c.l.b16 %v148
  %v813 = vunpack.c.l.b16 %v164
  %v814 = vunpack.c.l.b16 %v149
  %v815 = vunpack.c.l.b16 %v165
  %v816 = vunpack.c.l.b16 %v150
  %v817 = vunpack.c.l.b16 %v166
  %v818 = vunpack.c.l.b16 %v151
  %v819 = vunpack.c.l.b16 %v167
  %v820 = vunpack.c.l.b16 %v152
  %v821 = vunpack.c.l.b16 %v168
  %v822 = vunpack.c.l.b16 %v153
  %v823 = vunpack.c.l.b16 %v169
  %v824 = vunpack.c.l.b16 %v154
  %v825 = vunpack.c.l.b16 %v170
  %v826 = vunpack.c.l.b16 %v155
  %v827 = vunpack.c.l.b16 %v171
  %v828 = vpack.c.b16 %v797, %v796
  %v829 = vpack.c.b16 %v799, %v798
  %v830 = vpack.c.b16 %v801, %v800
  %v831 = vpack.c.b16 %v803, %v802
  %v832 = vpack.c.b16 %v805, %v804
  %v833 = vpack.c.b16 %v807, %v806
  %v834 = vpack.c.b16 %v809, %v808
  %v835 = vpack.c.b16 %v811, %v810
  %v836 = vpack.c.b16 %v813, %v812
  %v837 = vpack.c.b16 %v815, %v814
  %v838 = vpack.c.b16 %v817, %v816
  %v839 = vpack.c.b16 %v819, %v818
  %v840 = vpack.c.b16 %v821, %v820
  %v841 = vpack.c.b16 %v823, %v822
  %v842 = vpack.c.b16 %v825, %v824
  %v843 = vpack.c.b16 %v827, %v826
  %v845 = vshrl.u32 %v828, 16
  %v847 = vshll.u32 %v828, 16
  %v849 = vrot.slane %v847, 1
  %v850 = vor.u32 %v845, %v849
  %v852 = vshrl.u32 %v829, 16
  %v854 = vshll.u32 %v829, 16
  %v856 = vrot.slane %v854, 1
  %v857 = vor.u32 %v852, %v856
  %v859 = vshrl.u32 %v830, 16
  %v861 = vshll.u32 %v830, 16
  %v863 = vrot.slane %v861, 1
  %v864 = vor.u32 %v859, %v863
  %v866 = vshrl.u32 %v831, 16
  %v868 = vshll.u32 %v831, 16
  %v870 = vrot.slane %v868, 1
  %v871 = vor.u32 %v866, %v870
  %v873 = vshrl.u32 %v832, 16
  %v875 = vshll.u32 %v832, 16
  %v877 = vrot.slane %v875, 1
  %v878 = vor.u32 %v873, %v877
  %v880 = vshrl.u32 %v833, 16
  %v882 = vshll.u32 %v833, 16
  %v884 = vrot.slane %v882, 1
  %v885 = vor.u32 %v880, %v884
  %v887 = vshrl.u32 %v834, 16
  %v889 = vshll.u32 %v834, 16
  %v891 = vrot.slane %v889, 1
  %v892 = vor.u32 %v887, %v891
  %v894 = vshrl.u32 %v835, 16
  %v896 = vshll.u32 %v835, 16
  %v898 = vrot.slane %v896, 1
  %v899 = vor.u32 %v894, %v898
  %v901 = vshrl.u32 %v836, 16
  %v903 = vshll.u32 %v836, 16
  %v905 = vrot.slane %v903, 1
  %v906 = vor.u32 %v901, %v905
  %v908 = vshrl.u32 %v837, 16
  %v910 = vshll.u32 %v837, 16
  %v912 = vrot.slane %v910, 1
  %v913 = vor.u32 %v908, %v912
  %v915 = vshrl.u32 %v838, 16
  %v917 = vshll.u32 %v838, 16
  %v919 = vrot.slane %v917, 1
  %v920 = vor.u32 %v915, %v919
  %v922 = vshrl.u32 %v839, 16
  %v924 = vshll.u32 %v839, 16
  %v926 = vrot.slane %v924, 1
  %v927 = vor.u32 %v922, %v926
  %v929 = vshrl.u32 %v840, 16
  %v931 = vshll.u32 %v840, 16
  %v933 = vrot.slane %v931, 1
  %v934 = vor.u32 %v929, %v933
  %v936 = vshrl.u32 %v841, 16
  %v938 = vshll.u32 %v841, 16
  %v940 = vrot.slane %v938, 1
  %v941 = vor.u32 %v936, %v940
  %v943 = vshrl.u32 %v842, 16
  %v945 = vshll.u32 %v842, 16
  %v947 = vrot.slane %v945, 1
  %v948 = vor.u32 %v943, %v947
  %v950 = vshrl.u32 %v843, 16
  %v952 = vshll.u32 %v843, 16
  %v954 = vrot.slane %v952, 1
  %v955 = vor.u32 %v950, %v954
  %v988 = vunpack.c.l.b16 %v172
  %v989 = vunpack.c.l.b16 %v173
  %v990 = vunpack.c.l.b16 %v174
  %v991 = vunpack.c.l.b16 %v175
  %v992 = vunpack.c.l.b16 %v176
  %v993 = vunpack.c.l.b16 %v177
  %v994 = vunpack.c.l.b16 %v178
  %v995 = vunpack.c.l.b16 %v179
  %v996 = vunpack.c.l.b16 %v180
  %v997 = vunpack.c.l.b16 %v181
  %v998 = vunpack.c.l.b16 %v182
  %v999 = vunpack.c.l.b16 %v183
  %v1000 = vunpack.c.l.b16 %v184
  %v1001 = vunpack.c.l.b16 %v185
  %v1002 = vunpack.c.l.b16 %v186
  %v1003 = vunpack.c.l.b16 %v187
  %v1004 = vpack.c.b16 %v797, %v988
  %v1005 = vpack.c.b16 %v799, %v989
  %v1006 = vpack.c.b16 %v801, %v990
  %v1007 = vpack.c.b16 %v803, %v991
  %v1008 = vpack.c.b16 %v805, %v992
  %v1009 = vpack.c.b16 %v807, %v993
  %v1010 = vpack.c.b16 %v809, %v994
  %v1011 = vpack.c.b16 %v811, %v995
  %v1012 = vpack.c.b16 %v813, %v996
  %v1013 = vpack.c.b16 %v815, %v997
  %v1014 = vpack.c.b16 %v817, %v998
  %v1015 = vpack.c.b16 %v819, %v999
  %v1016 = vpack.c.b16 %v821, %v1000
  %v1017 = vpack.c.b16 %v823, %v1001
  %v1018 = vpack.c.b16 %v825, %v1002
  %v1019 = vpack.c.b16 %v827, %v1003
  %v1020 = vrot.slane %v1004, 1
  %v1021 = vrot.slane %v1005, 1
  %v1022 = vrot.slane %v1006, 1
  %v1023 = vrot.slane %v1007, 1
  %v1024 = vrot.slane %v1008, 1
  %v1025 = vrot.slane %v1009, 1
  %v1026 = vrot.slane %v1010, 1
  %v1027 = vrot.slane %v1011, 1
  %v1028 = vrot.slane %v1012, 1
  %v1029 = vrot.slane %v1013, 1
  %v1030 = vrot.slane %v1014, 1
  %v1031 = vrot.slane %v1015, 1
  %v1032 = vrot.slane %v1016, 1
  %v1033 = vrot.slane %v1017, 1
  %v1034 = vrot.slane %v1018, 1
  %v1035 = vrot.slane %v1019, 1
  %v1052 = vunpack.c.l.bf16 %v36
  %v1053 = vunpack.c.l.bf16 %v274
  %v1054 = vunpack.c.l.bf16 %v444
  %v1055 = vunpack.c.l.bf16 %v88
  %v1056 = vunpack.c.l.bf16 %v562
  %v1057 = vunpack.c.l.bf16 %v732
  %v1058 = vunpack.c.l.bf16 %v140
  %v1059 = vunpack.c.l.bf16 %v850
  %v1060 = vunpack.c.l.bf16 %v1020
  %v1061 = vunpack.c.l.bf16 %v37
  %v1062 = vunpack.c.l.bf16 %v281
  %v1063 = vunpack.c.l.bf16 %v445
  %v1064 = vunpack.c.l.bf16 %v89
  %v1065 = vunpack.c.l.bf16 %v569
  %v1066 = vunpack.c.l.bf16 %v733
  %v1067 = vunpack.c.l.bf16 %v141
  %v1068 = vunpack.c.l.bf16 %v857
  %v1069 = vunpack.c.l.bf16 %v1021
  %v1070 = vunpack.c.l.bf16 %v38
  %v1071 = vunpack.c.l.bf16 %v288
  %v1072 = vunpack.c.l.bf16 %v446
  %v1073 = vunpack.c.l.bf16 %v90
  %v1074 = vunpack.c.l.bf16 %v576
  %v1075 = vunpack.c.l.bf16 %v734
  %v1076 = vunpack.c.l.bf16 %v142
  %v1077 = vunpack.c.l.bf16 %v864
  %v1078 = vunpack.c.l.bf16 %v1022
  %v1079 = vunpack.c.l.bf16 %v39
  %v1080 = vunpack.c.l.bf16 %v295
  %v1081 = vunpack.c.l.bf16 %v447
  %v1082 = vunpack.c.l.bf16 %v91
  %v1083 = vunpack.c.l.bf16 %v583
  %v1084 = vunpack.c.l.bf16 %v735
  %v1085 = vunpack.c.l.bf16 %v143
  %v1086 = vunpack.c.l.bf16 %v871
  %v1087 = vunpack.c.l.bf16 %v1023
  %v1088 = vunpack.c.l.bf16 %v40
  %v1089 = vunpack.c.l.bf16 %v302
  %v1090 = vunpack.c.l.bf16 %v448
  %v1091 = vunpack.c.l.bf16 %v92
  %v1092 = vunpack.c.l.bf16 %v590
  %v1093 = vunpack.c.l.bf16 %v736
  %v1094 = vunpack.c.l.bf16 %v144
  %v1095 = vunpack.c.l.bf16 %v878
  %v1096 = vunpack.c.l.bf16 %v1024
  %v1097 = vunpack.c.l.bf16 %v41
  %v1098 = vunpack.c.l.bf16 %v309
  %v1099 = vunpack.c.l.bf16 %v449
  %v1100 = vunpack.c.l.bf16 %v93
  %v1101 = vunpack.c.l.bf16 %v597
  %v1102 = vunpack.c.l.bf16 %v737
  %v1103 = vunpack.c.l.bf16 %v145
  %v1104 = vunpack.c.l.bf16 %v885
  %v1105 = vunpack.c.l.bf16 %v1025
  %v1106 = vunpack.c.l.bf16 %v42
  %v1107 = vunpack.c.l.bf16 %v316
  %v1108 = vunpack.c.l.bf16 %v450
  %v1109 = vunpack.c.l.bf16 %v94
  %v1110 = vunpack.c.l.bf16 %v604
  %v1111 = vunpack.c.l.bf16 %v738
  %v1112 = vunpack.c.l.bf16 %v146
  %v1113 = vunpack.c.l.bf16 %v892
  %v1114 = vunpack.c.l.bf16 %v1026
  %v1115 = vunpack.c.l.bf16 %v43
  %v1116 = vunpack.c.l.bf16 %v323
  %v1117 = vunpack.c.l.bf16 %v451
  %v1118 = vunpack.c.l.bf16 %v95
  %v1119 = vunpack.c.l.bf16 %v611
  %v1120 = vunpack.c.l.bf16 %v739
  %v1121 = vunpack.c.l.bf16 %v147
  %v1122 = vunpack.c.l.bf16 %v899
  %v1123 = vunpack.c.l.bf16 %v1027
  %v1124 = vunpack.c.l.bf16 %v44
  %v1125 = vunpack.c.l.bf16 %v330
  %v1126 = vunpack.c.l.bf16 %v452
  %v1127 = vunpack.c.l.bf16 %v96
  %v1128 = vunpack.c.l.bf16 %v618
  %v1129 = vunpack.c.l.bf16 %v740
  %v1130 = vunpack.c.l.bf16 %v148
  %v1131 = vunpack.c.l.bf16 %v906
  %v1132 = vunpack.c.l.bf16 %v1028
  %v1133 = vunpack.c.l.bf16 %v45
  %v1134 = vunpack.c.l.bf16 %v337
  %v1135 = vunpack.c.l.bf16 %v453
  %v1136 = vunpack.c.l.bf16 %v97
  %v1137 = vunpack.c.l.bf16 %v625
  %v1138 = vunpack.c.l.bf16 %v741
  %v1139 = vunpack.c.l.bf16 %v149
  %v1140 = vunpack.c.l.bf16 %v913
  %v1141 = vunpack.c.l.bf16 %v1029
  %v1142 = vunpack.c.l.bf16 %v46
  %v1143 = vunpack.c.l.bf16 %v344
  %v1144 = vunpack.c.l.bf16 %v454
  %v1145 = vunpack.c.l.bf16 %v98
  %v1146 = vunpack.c.l.bf16 %v632
  %v1147 = vunpack.c.l.bf16 %v742
  %v1148 = vunpack.c.l.bf16 %v150
  %v1149 = vunpack.c.l.bf16 %v920
  %v1150 = vunpack.c.l.bf16 %v1030
  %v1151 = vunpack.c.l.bf16 %v47
  %v1152 = vunpack.c.l.bf16 %v351
  %v1153 = vunpack.c.l.bf16 %v455
  %v1154 = vunpack.c.l.bf16 %v99
  %v1155 = vunpack.c.l.bf16 %v639
  %v1156 = vunpack.c.l.bf16 %v743
  %v1157 = vunpack.c.l.bf16 %v151
  %v1158 = vunpack.c.l.bf16 %v927
  %v1159 = vunpack.c.l.bf16 %v1031
  %v1160 = vunpack.c.l.bf16 %v48
  %v1161 = vunpack.c.l.bf16 %v358
  %v1162 = vunpack.c.l.bf16 %v456
  %v1163 = vunpack.c.l.bf16 %v100
  %v1164 = vunpack.c.l.bf16 %v646
  %v1165 = vunpack.c.l.bf16 %v744
  %v1166 = vunpack.c.l.bf16 %v152
  %v1167 = vunpack.c.l.bf16 %v934
  %v1168 = vunpack.c.l.bf16 %v1032
  %v1169 = vunpack.c.l.bf16 %v49
  %v1170 = vunpack.c.l.bf16 %v365
  %v1171 = vunpack.c.l.bf16 %v457
  %v1172 = vunpack.c.l.bf16 %v101
  %v1173 = vunpack.c.l.bf16 %v653
  %v1174 = vunpack.c.l.bf16 %v745
  %v1175 = vunpack.c.l.bf16 %v153
  %v1176 = vunpack.c.l.bf16 %v941
  %v1177 = vunpack.c.l.bf16 %v1033
  %v1178 = vunpack.c.l.bf16 %v50
  %v1179 = vunpack.c.l.bf16 %v372
  %v1180 = vunpack.c.l.bf16 %v458
  %v1181 = vunpack.c.l.bf16 %v102
  %v1182 = vunpack.c.l.bf16 %v660
  %v1183 = vunpack.c.l.bf16 %v746
  %v1184 = vunpack.c.l.bf16 %v154
  %v1185 = vunpack.c.l.bf16 %v948
  %v1186 = vunpack.c.l.bf16 %v1034
  %v1187 = vunpack.c.l.bf16 %v51
  %v1188 = vunpack.c.l.bf16 %v379
  %v1189 = vunpack.c.l.bf16 %v459
  %v1190 = vunpack.c.l.bf16 %v103
  %v1191 = vunpack.c.l.bf16 %v667
  %v1192 = vunpack.c.l.bf16 %v747
  %v1193 = vunpack.c.l.bf16 %v155
  %v1194 = vunpack.c.l.bf16 %v955
  %v1195 = vunpack.c.l.bf16 %v1035
  %v1196 = vpack.c.bf16 %v1061, %v1052
  %v1197 = vpack.c.bf16 %v1062, %v1053
  %v1198 = vpack.c.bf16 %v1063, %v1054
  %v1199 = vpack.c.bf16 %v1064, %v1055
  %v1200 = vpack.c.bf16 %v1065, %v1056
  %v1201 = vpack.c.bf16 %v1066, %v1057
  %v1202 = vpack.c.bf16 %v1067, %v1058
  %v1203 = vpack.c.bf16 %v1068, %v1059
  %v1204 = vpack.c.bf16 %v1069, %v1060
  %v1205 = vpack.c.bf16 %v1079, %v1070
  %v1206 = vpack.c.bf16 %v1080, %v1071
  %v1207 = vpack.c.bf16 %v1081, %v1072
  %v1208 = vpack.c.bf16 %v1082, %v1073
  %v1209 = vpack.c.bf16 %v1083, %v1074
  %v1210 = vpack.c.bf16 %v1084, %v1075
  %v1211 = vpack.c.bf16 %v1085, %v1076
  %v1212 = vpack.c.bf16 %v1086, %v1077
  %v1213 = vpack.c.bf16 %v1087, %v1078
  %v1214 = vpack.c.bf16 %v1097, %v1088
  %v1215 = vpack.c.bf16 %v1098, %v1089
  %v1216 = vpack.c.bf16 %v1099, %v1090
  %v1217 = vpack.c.bf16 %v1100, %v1091
  %v1218 = vpack.c.bf16 %v1101, %v1092
  %v1219 = vpack.c.bf16 %v1102, %v1093
  %v1220 = vpack.c.bf16 %v1103, %v1094
  %v1221 = vpack.c.bf16 %v1104, %v1095
  %v1222 = vpack.c.bf16 %v1105, %v1096
  %v1223 = vpack.c.bf16 %v1115, %v1106
  %v1224 = vpack.c.bf16 %v1116, %v1107
  %v1225 = vpack.c.bf16 %v1117, %v1108
  %v1226 = vpack.c.bf16 %v1118, %v1109
  %v1227 = vpack.c.bf16 %v1119, %v1110
  %v1228 = vpack.c.bf16 %v1120, %v1111
  %v1229 = vpack.c.bf16 %v1121, %v1112
  %v1230 = vpack.c.bf16 %v1122, %v1113
  %v1231 = vpack.c.bf16 %v1123, %v1114
  %v1232 = vpack.c.bf16 %v1133, %v1124
  %v1233 = vpack.c.bf16 %v1134, %v1125
  %v1234 = vpack.c.bf16 %v1135, %v1126
  %v1235 = vpack.c.bf16 %v1136, %v1127
  %v1236 = vpack.c.bf16 %v1137, %v1128
  %v1237 = vpack.c.bf16 %v1138, %v1129
  %v1238 = vpack.c.bf16 %v1139, %v1130
  %v1239 = vpack.c.bf16 %v1140, %v1131
  %v1240 = vpack.c.bf16 %v1141, %v1132
  %v1241 = vpack.c.bf16 %v1151, %v1142
  %v1242 = vpack.c.bf16 %v1152, %v1143
  %v1243 = vpack.c.bf16 %v1153, %v1144
  %v1244 = vpack.c.bf16 %v1154, %v1145
  %v1245 = vpack.c.bf16 %v1155, %v1146
  %v1246 = vpack.c.bf16 %v1156, %v1147
  %v1247 = vpack.c.bf16 %v1157, %v1148
  %v1248 = vpack.c.bf16 %v1158, %v1149
  %v1249 = vpack.c.bf16 %v1159, %v1150
  %v1250 = vpack.c.bf16 %v1169, %v1160
  %v1251 = vpack.c.bf16 %v1170, %v1161
  %v1252 = vpack.c.bf16 %v1171, %v1162
  %v1253 = vpack.c.bf16 %v1172, %v1163
  %v1254 = vpack.c.bf16 %v1173, %v1164
  %v1255 = vpack.c.bf16 %v1174, %v1165
  %v1256 = vpack.c.bf16 %v1175, %v1166
  %v1257 = vpack.c.bf16 %v1176, %v1167
  %v1258 = vpack.c.bf16 %v1177, %v1168
  %v1259 = vpack.c.bf16 %v1187, %v1178
  %v1260 = vpack.c.bf16 %v1188, %v1179
  %v1261 = vpack.c.bf16 %v1189, %v1180
  %v1262 = vpack.c.bf16 %v1190, %v1181
  %v1263 = vpack.c.bf16 %v1191, %v1182
  %v1264 = vpack.c.bf16 %v1192, %v1183
  %v1265 = vpack.c.bf16 %v1193, %v1184
  %v1266 = vpack.c.bf16 %v1194, %v1185
  %v1267 = vpack.c.bf16 %v1195, %v1186
  %v1268 = vld [vmem:[%s1] sm:$0xf]
  %v1269 = vld [vmem:[%s1 + $0x4] sm:$0xf]
  %v1270 = vld [vmem:[%s1 + $0x8] sm:$0xf]
  %v1271 = vld [vmem:[%s1 + $0xc] sm:$0xf]
  %v1272 = vld [vmem:[%s1 + $0x10] sm:$0xf]
  %v1273 = vld [vmem:[%s1 + $0x14] sm:$0xf]
  %v1274 = vld [vmem:[%s1 + $0x18] sm:$0xf]
  %v1275 = vld [vmem:[%s1 + $0x1c] sm:$0xf]
  %v1276 = vld [vmem:[%s1 + $0x20] sm:$0xf]
  %v1277 = vld [vmem:[%s1 + $0x24] sm:$0xf]
  %v1278 = vld [vmem:[%s1 + $0x28] sm:$0xf]
  %v1279 = vld [vmem:[%s1 + $0x2c] sm:$0xf]
  %v1280 = vld [vmem:[%s1 + $0x30] sm:$0xf]
  %v1281 = vld [vmem:[%s1 + $0x34] sm:$0xf]
  %v1282 = vld [vmem:[%s1 + $0x38] sm:$0xf]
  %v1283 = vld [vmem:[%s1 + $0x3c] sm:$0xf]
  %v1284 = vld [vmem:[%s1 + $0x40] sm:$0xf]
  %v1285 = vld [vmem:[%s1 + $0x44] sm:$0xf]
  %v1286 = vld [vmem:[%s1 + $0x48] sm:$0xf]
  %v1287 = vld [vmem:[%s1 + $0x4c] sm:$0xf]
  %v1288 = vld [vmem:[%s1 + $0x50] sm:$0xf]
  %v1289 = vld [vmem:[%s1 + $0x54] sm:$0xf]
  %v1290 = vld [vmem:[%s1 + $0x58] sm:$0xf]
  %v1291 = vld [vmem:[%s1 + $0x5c] sm:$0xf]
  %v1292 = vld [vmem:[%s1 + $0x60] sm:$0xf]
  %v1293 = vld [vmem:[%s1 + $0x64] sm:$0xf]
  %v1294 = vld [vmem:[%s1 + $0x68] sm:$0xf]
  %v1295 = vld [vmem:[%s1 + $0x6c] sm:$0xf]
  %v1296 = vld [vmem:[%s1 + $0x70] sm:$0xf]
  %v1297 = vld [vmem:[%s1 + $0x74] sm:$0xf]
  %v1298 = vld [vmem:[%s1 + $0x78] sm:$0xf]
  %v1299 = vld [vmem:[%s1 + $0x7c] sm:$0xf]
  %v1300 = vld [vmem:[%s1 + $0x80] sm:$0xf]
  %v1301 = vld [vmem:[%s1 + $0x84] sm:$0xf]
  %v1302 = vld [vmem:[%s1 + $0x88] sm:$0xf]
  %v1303 = vld [vmem:[%s1 + $0x8c] sm:$0xf]
  %v1304 = vld [vmem:[%s1 + $0x90] sm:$0xf]
  %v1305 = vld [vmem:[%s1 + $0x94] sm:$0xf]
  %v1306 = vld [vmem:[%s1 + $0x98] sm:$0xf]
  %v1307 = vld [vmem:[%s1 + $0x9c] sm:$0xf]
  %v1308 = vld [vmem:[%s1 + $0xa0] sm:$0xf]
  %v1309 = vld [vmem:[%s1 + $0xa4] sm:$0xf]
  %v1310 = vld [vmem:[%s1 + $0xa8] sm:$0xf]
  %v1311 = vld [vmem:[%s1 + $0xac] sm:$0xf]
  %v1312 = vld [vmem:[%s1 + $0xb0] sm:$0xf]
  %v1313 = vld [vmem:[%s1 + $0xb4] sm:$0xf]
  %v1314 = vld [vmem:[%s1 + $0xb8] sm:$0xf]
  %v1315 = vld [vmem:[%s1 + $0xbc] sm:$0xf]
  %v1316 = vld [vmem:[%s1 + $0xc0] sm:$0xf]
  %v1317 = vld [vmem:[%s1 + $0xc4] sm:$0xf]
  %v1318 = vld [vmem:[%s1 + $0xc8] sm:$0xf]
  %v1319 = vld [vmem:[%s1 + $0xcc] sm:$0xf]
  %v1320 = vld [vmem:[%s1 + $0xd0] sm:$0xf]
  %v1321 = vld [vmem:[%s1 + $0xd4] sm:$0xf]
  %v1322 = vld [vmem:[%s1 + $0xd8] sm:$0xf]
  %v1323 = vld [vmem:[%s1 + $0xdc] sm:$0xf]
  %v1324 = vld [vmem:[%s1 + $0xe0] sm:$0xf]
  %v1325 = vld [vmem:[%s1 + $0xe4] sm:$0xf]
  %v1326 = vld [vmem:[%s1 + $0xe8] sm:$0xf]
  %v1327 = vld [vmem:[%s1 + $0xec] sm:$0xf]
  %v1328 = vld [vmem:[%s1 + $0xf0] sm:$0xf]
  %v1329 = vld [vmem:[%s1 + $0xf4] sm:$0xf]
  %v1330 = vld [vmem:[%s1 + $0xf8] sm:$0xf]
  %v1331 = vld [vmem:[%s1 + $0xfc] sm:$0xf]
  %v1332 = vld [vmem:[%s1 + $0x100] sm:$0xf]
  %v1333 = vld [vmem:[%s1 + $0x104] sm:$0xf]
  %v1334 = vld [vmem:[%s1 + $0x108] sm:$0xf]
  %v1335 = vld [vmem:[%s1 + $0x10c] sm:$0xf]
  %v1336 = vld [vmem:[%s1 + $0x110] sm:$0xf]
  %v1337 = vld [vmem:[%s1 + $0x114] sm:$0xf]
  %v1338 = vld [vmem:[%s1 + $0x118] sm:$0xf]
  %v1339 = vld [vmem:[%s1 + $0x11c] sm:$0xf]
  %v1340 = vld [vmem:[%s1 + $0x120] sm:$0xf]
  %v1341 = vld [vmem:[%s1 + $0x124] sm:$0xf]
  %v1342 = vld [vmem:[%s1 + $0x128] sm:$0xf]
  %v1343 = vld [vmem:[%s1 + $0x12c] sm:$0xf]
  %v1344 = vld [vmem:[%s1 + $0x130] sm:$0xf]
  %v1345 = vld [vmem:[%s1 + $0x134] sm:$0xf]
  %v1346 = vld [vmem:[%s1 + $0x138] sm:$0xf]
  %v1347 = vld [vmem:[%s1 + $0x13c] sm:$0xf]
  %v1348 = vld [vmem:[%s1 + $0x140] sm:$0xf]
  %v1349 = vld [vmem:[%s1 + $0x144] sm:$0xf]
  %v1350 = vld [vmem:[%s1 + $0x148] sm:$0xf]
  %v1351 = vld [vmem:[%s1 + $0x14c] sm:$0xf]
  %v1352 = vld [vmem:[%s1 + $0x150] sm:$0xf]
  %v1353 = vld [vmem:[%s1 + $0x154] sm:$0xf]
  %v1354 = vld [vmem:[%s1 + $0x158] sm:$0xf]
  %v1355 = vld [vmem:[%s1 + $0x15c] sm:$0xf]
  %v1356 = vld [vmem:[%s1 + $0x160] sm:$0xf]
  %v1357 = vld [vmem:[%s1 + $0x164] sm:$0xf]
  %v1358 = vld [vmem:[%s1 + $0x168] sm:$0xf]
  %v1359 = vld [vmem:[%s1 + $0x16c] sm:$0xf]
  %v1360 = vld [vmem:[%s1 + $0x170] sm:$0xf]
  %v1361 = vld [vmem:[%s1 + $0x174] sm:$0xf]
  %v1362 = vld [vmem:[%s1 + $0x178] sm:$0xf]
  %v1363 = vld [vmem:[%s1 + $0x17c] sm:$0xf]
  %v1364 = vld [vmem:[%s1 + $0x180] sm:$0xf]
  %v1365 = vld [vmem:[%s1 + $0x184] sm:$0xf]
  %v1366 = vld [vmem:[%s1 + $0x188] sm:$0xf]
  %v1367 = vld [vmem:[%s1 + $0x18c] sm:$0xf]
  %v1368 = vld [vmem:[%s1 + $0x190] sm:$0xf]
  %v1369 = vld [vmem:[%s1 + $0x194] sm:$0xf]
  %v1370 = vld [vmem:[%s1 + $0x198] sm:$0xf]
  %v1371 = vld [vmem:[%s1 + $0x19c] sm:$0xf]
  %v1372 = vld [vmem:[%s1 + $0x1a0] sm:$0xf]
  %v1373 = vld [vmem:[%s1 + $0x1a4] sm:$0xf]
  %v1374 = vld [vmem:[%s1 + $0x1a8] sm:$0xf]
  %v1375 = vld [vmem:[%s1 + $0x1ac] sm:$0xf]
  %v1376 = vld [vmem:[%s1 + $0x1b0] sm:$0xf]
  %v1377 = vld [vmem:[%s1 + $0x1b4] sm:$0xf]
  %v1378 = vld [vmem:[%s1 + $0x1b8] sm:$0xf]
  %v1379 = vld [vmem:[%s1 + $0x1bc] sm:$0xf]
  %v1380 = vld [vmem:[%s1 + $0x1c0] sm:$0xf]
  %v1381 = vld [vmem:[%s1 + $0x1c4] sm:$0xf]
  %v1382 = vld [vmem:[%s1 + $0x1c8] sm:$0xf]
  %v1383 = vld [vmem:[%s1 + $0x1cc] sm:$0xf]
  %v1384 = vld [vmem:[%s1 + $0x1d0] sm:$0xf]
  %v1385 = vld [vmem:[%s1 + $0x1d4] sm:$0xf]
  %v1386 = vld [vmem:[%s1 + $0x1d8] sm:$0xf]
  %v1387 = vld [vmem:[%s1 + $0x1dc] sm:$0xf]
  %v1388 = vld [vmem:[%s1 + $0x1e0] sm:$0xf]
  %v1389 = vld [vmem:[%s1 + $0x1e4] sm:$0xf]
  %v1390 = vld [vmem:[%s1 + $0x1e8] sm:$0xf]
  %v1391 = vld [vmem:[%s1 + $0x1ec] sm:$0xf]
  %v1392 = vld [vmem:[%s1 + $0x1f0] sm:$0xf]
  %v1393 = vld [vmem:[%s1 + $0x1f4] sm:$0xf]
  %v1394 = vld [vmem:[%s1 + $0x1f8] sm:$0xf]
  %v1395 = vld [vmem:[%s1 + $0x1fc] sm:$0xf]
  %v1396 = vld [vmem:[%s1 + $0x200] sm:$0xf]
  %v1397 = vld [vmem:[%s1 + $0x204] sm:$0xf]
  %v1398 = vld [vmem:[%s1 + $0x208] sm:$0xf]
  %v1399 = vld [vmem:[%s1 + $0x20c] sm:$0xf]
  %v1400 = vld [vmem:[%s1 + $0x210] sm:$0xf]
  %v1401 = vld [vmem:[%s1 + $0x214] sm:$0xf]
  %v1402 = vld [vmem:[%s1 + $0x218] sm:$0xf]
  %v1403 = vld [vmem:[%s1 + $0x21c] sm:$0xf]
  %v1404 = vld [vmem:[%s1 + $0x220] sm:$0xf]
  %v1405 = vld [vmem:[%s1 + $0x224] sm:$0xf]
  %v1406 = vld [vmem:[%s1 + $0x228] sm:$0xf]
  %v1407 = vld [vmem:[%s1 + $0x22c] sm:$0xf]
  %v1408 = vld [vmem:[%s1 + $0x230] sm:$0xf]
  %v1409 = vld [vmem:[%s1 + $0x234] sm:$0xf]
  %v1410 = vld [vmem:[%s1 + $0x238] sm:$0xf]
  %v1411 = vld [vmem:[%s1 + $0x23c] sm:$0xf]
  %v1556 = vunpack.c.l.b16 %v1268
  %v1557 = vunpack.c.l.b16 %v1269
  %v1558 = vunpack.c.l.b16 %v1270
  %v1559 = vunpack.c.l.b16 %v1271
  %v1560 = vunpack.c.l.b16 %v1272
  %v1561 = vunpack.c.l.b16 %v1273
  %v1562 = vunpack.c.l.b16 %v1274
  %v1563 = vunpack.c.l.b16 %v1275
  %v1564 = vunpack.c.l.b16 %v1276
  %v1565 = vunpack.c.l.b16 %v1277
  %v1566 = vunpack.c.l.b16 %v1278
  %v1567 = vunpack.c.l.b16 %v1279
  %v1568 = vunpack.c.l.b16 %v1280
  %v1569 = vunpack.c.l.b16 %v1281
  %v1570 = vunpack.c.l.b16 %v1282
  %v1571 = vunpack.c.l.b16 %v1283
  %v1572 = vunpack.c.l.b16 %v1284
  %v1573 = vunpack.c.l.b16 %v1285
  %v1574 = vunpack.c.l.b16 %v1286
  %v1575 = vunpack.c.l.b16 %v1287
  %v1576 = vunpack.c.l.b16 %v1288
  %v1577 = vunpack.c.l.b16 %v1289
  %v1578 = vunpack.c.l.b16 %v1290
  %v1579 = vunpack.c.l.b16 %v1291
  %v1580 = vunpack.c.l.b16 %v1292
  %v1581 = vunpack.c.l.b16 %v1293
  %v1582 = vunpack.c.l.b16 %v1294
  %v1583 = vunpack.c.l.b16 %v1295
  %v1584 = vunpack.c.l.b16 %v1296
  %v1585 = vunpack.c.l.b16 %v1297
  %v1586 = vunpack.c.l.b16 %v1298
  %v1587 = vunpack.c.l.b16 %v1299
  %v1588 = vunpack.c.l.b16 %v1300
  %v1589 = vunpack.c.l.b16 %v1301
  %v1590 = vunpack.c.l.b16 %v1302
  %v1591 = vunpack.c.l.b16 %v1303
  %v1592 = vunpack.c.l.b16 %v1304
  %v1593 = vunpack.c.l.b16 %v1305
  %v1594 = vunpack.c.l.b16 %v1306
  %v1595 = vunpack.c.l.b16 %v1307
  %v1596 = vunpack.c.l.b16 %v1308
  %v1597 = vunpack.c.l.b16 %v1309
  %v1598 = vunpack.c.l.b16 %v1310
  %v1599 = vunpack.c.l.b16 %v1311
  %v1600 = vunpack.c.l.b16 %v1312
  %v1601 = vunpack.c.l.b16 %v1313
  %v1602 = vunpack.c.l.b16 %v1314
  %v1603 = vunpack.c.l.b16 %v1315
  %v1604 = vunpack.c.l.b16 %v1316
  %v1605 = vunpack.c.l.b16 %v1317
  %v1606 = vunpack.c.l.b16 %v1318
  %v1607 = vunpack.c.l.b16 %v1319
  %v1608 = vunpack.c.l.b16 %v1320
  %v1609 = vunpack.c.l.b16 %v1321
  %v1610 = vunpack.c.l.b16 %v1322
  %v1611 = vunpack.c.l.b16 %v1323
  %v1612 = vunpack.c.l.b16 %v1324
  %v1613 = vunpack.c.l.b16 %v1325
  %v1614 = vunpack.c.l.b16 %v1326
  %v1615 = vunpack.c.l.b16 %v1327
  %v1616 = vunpack.c.l.b16 %v1328
  %v1617 = vunpack.c.l.b16 %v1329
  %v1618 = vunpack.c.l.b16 %v1330
  %v1619 = vunpack.c.l.b16 %v1331
  %v1620 = vunpack.c.l.b16 %v1332
  %v1621 = vunpack.c.l.b16 %v1333
  %v1622 = vunpack.c.l.b16 %v1334
  %v1623 = vunpack.c.l.b16 %v1335
  %v1624 = vunpack.c.l.b16 %v1336
  %v1625 = vunpack.c.l.b16 %v1337
  %v1626 = vunpack.c.l.b16 %v1338
  %v1627 = vunpack.c.l.b16 %v1339
  %v1628 = vunpack.c.l.b16 %v1340
  %v1629 = vunpack.c.l.b16 %v1341
  %v1630 = vunpack.c.l.b16 %v1342
  %v1631 = vunpack.c.l.b16 %v1343
  %v1632 = vunpack.c.l.b16 %v1344
  %v1633 = vunpack.c.l.b16 %v1345
  %v1634 = vunpack.c.l.b16 %v1346
  %v1635 = vunpack.c.l.b16 %v1347
  %v1636 = vunpack.c.l.b16 %v1348
  %v1637 = vunpack.c.l.b16 %v1349
  %v1638 = vunpack.c.l.b16 %v1350
  %v1639 = vunpack.c.l.b16 %v1351
  %v1640 = vunpack.c.l.b16 %v1352
  %v1641 = vunpack.c.l.b16 %v1353
  %v1642 = vunpack.c.l.b16 %v1354
  %v1643 = vunpack.c.l.b16 %v1355
  %v1644 = vunpack.c.l.b16 %v1356
  %v1645 = vunpack.c.l.b16 %v1357
  %v1646 = vunpack.c.l.b16 %v1358
  %v1647 = vunpack.c.l.b16 %v1359
  %v1648 = vunpack.c.l.b16 %v1360
  %v1649 = vunpack.c.l.b16 %v1361
  %v1650 = vunpack.c.l.b16 %v1362
  %v1651 = vunpack.c.l.b16 %v1363
  %v1652 = vunpack.c.l.b16 %v1364
  %v1653 = vunpack.c.l.b16 %v1365
  %v1654 = vunpack.c.l.b16 %v1366
  %v1655 = vunpack.c.l.b16 %v1367
  %v1656 = vunpack.c.l.b16 %v1368
  %v1657 = vunpack.c.l.b16 %v1369
  %v1658 = vunpack.c.l.b16 %v1370
  %v1659 = vunpack.c.l.b16 %v1371
  %v1660 = vunpack.c.l.b16 %v1372
  %v1661 = vunpack.c.l.b16 %v1373
  %v1662 = vunpack.c.l.b16 %v1374
  %v1663 = vunpack.c.l.b16 %v1375
  %v1664 = vunpack.c.l.b16 %v1376
  %v1665 = vunpack.c.l.b16 %v1377
  %v1666 = vunpack.c.l.b16 %v1378
  %v1667 = vunpack.c.l.b16 %v1379
  %v1668 = vunpack.c.l.b16 %v1380
  %v1669 = vunpack.c.l.b16 %v1381
  %v1670 = vunpack.c.l.b16 %v1382
  %v1671 = vunpack.c.l.b16 %v1383
  %v1672 = vunpack.c.l.b16 %v1384
  %v1673 = vunpack.c.l.b16 %v1385
  %v1674 = vunpack.c.l.b16 %v1386
  %v1675 = vunpack.c.l.b16 %v1387
  %v1676 = vunpack.c.l.b16 %v1388
  %v1677 = vunpack.c.l.b16 %v1389
  %v1678 = vunpack.c.l.b16 %v1390
  %v1679 = vunpack.c.l.b16 %v1391
  %v1680 = vunpack.c.l.b16 %v1392
  %v1681 = vunpack.c.l.b16 %v1393
  %v1682 = vunpack.c.l.b16 %v1394
  %v1683 = vunpack.c.l.b16 %v1395
  %v1684 = vunpack.c.l.b16 %v1396
  %v1685 = vunpack.c.l.b16 %v1397
  %v1686 = vunpack.c.l.b16 %v1398
  %v1687 = vunpack.c.l.b16 %v1399
  %v1688 = vunpack.c.l.b16 %v1400
  %v1689 = vunpack.c.l.b16 %v1401
  %v1690 = vunpack.c.l.b16 %v1402
  %v1691 = vunpack.c.l.b16 %v1403
  %v1692 = vunpack.c.l.b16 %v1404
  %v1693 = vunpack.c.l.b16 %v1405
  %v1694 = vunpack.c.l.b16 %v1406
  %v1695 = vunpack.c.l.b16 %v1407
  %v1696 = vunpack.c.l.b16 %v1408
  %v1697 = vunpack.c.l.b16 %v1409
  %v1698 = vunpack.c.l.b16 %v1410
  %v1699 = vunpack.c.l.b16 %v1411
  %v1700 = vpack.c.b16 %v1557, %v1556
  %v1701 = vpack.c.b16 %v1559, %v1558
  %v1702 = vpack.c.b16 %v1561, %v1560
  %v1703 = vpack.c.b16 %v1563, %v1562
  %v1704 = vpack.c.b16 %v1565, %v1564
  %v1705 = vpack.c.b16 %v1567, %v1566
  %v1706 = vpack.c.b16 %v1569, %v1568
  %v1707 = vpack.c.b16 %v1571, %v1570
  %v1708 = vpack.c.b16 %v1573, %v1572
  %v1709 = vpack.c.b16 %v1575, %v1574
  %v1710 = vpack.c.b16 %v1577, %v1576
  %v1711 = vpack.c.b16 %v1579, %v1578
  %v1712 = vpack.c.b16 %v1581, %v1580
  %v1713 = vpack.c.b16 %v1583, %v1582
  %v1714 = vpack.c.b16 %v1585, %v1584
  %v1715 = vpack.c.b16 %v1587, %v1586
  %v1716 = vpack.c.b16 %v1589, %v1588
  %v1717 = vpack.c.b16 %v1591, %v1590
  %v1718 = vpack.c.b16 %v1593, %v1592
  %v1719 = vpack.c.b16 %v1595, %v1594
  %v1720 = vpack.c.b16 %v1597, %v1596
  %v1721 = vpack.c.b16 %v1599, %v1598
  %v1722 = vpack.c.b16 %v1601, %v1600
  %v1723 = vpack.c.b16 %v1603, %v1602
  %v1724 = vpack.c.b16 %v1605, %v1604
  %v1725 = vpack.c.b16 %v1607, %v1606
  %v1726 = vpack.c.b16 %v1609, %v1608
  %v1727 = vpack.c.b16 %v1611, %v1610
  %v1728 = vpack.c.b16 %v1613, %v1612
  %v1729 = vpack.c.b16 %v1615, %v1614
  %v1730 = vpack.c.b16 %v1617, %v1616
  %v1731 = vpack.c.b16 %v1619, %v1618
  %v1732 = vpack.c.b16 %v1621, %v1620
  %v1733 = vpack.c.b16 %v1623, %v1622
  %v1734 = vpack.c.b16 %v1625, %v1624
  %v1735 = vpack.c.b16 %v1627, %v1626
  %v1736 = vpack.c.b16 %v1629, %v1628
  %v1737 = vpack.c.b16 %v1631, %v1630
  %v1738 = vpack.c.b16 %v1633, %v1632
  %v1739 = vpack.c.b16 %v1635, %v1634
  %v1740 = vpack.c.b16 %v1637, %v1636
  %v1741 = vpack.c.b16 %v1639, %v1638
  %v1742 = vpack.c.b16 %v1641, %v1640
  %v1743 = vpack.c.b16 %v1643, %v1642
  %v1744 = vpack.c.b16 %v1645, %v1644
  %v1745 = vpack.c.b16 %v1647, %v1646
  %v1746 = vpack.c.b16 %v1649, %v1648
  %v1747 = vpack.c.b16 %v1651, %v1650
  %v1748 = vpack.c.b16 %v1653, %v1652
  %v1749 = vpack.c.b16 %v1655, %v1654
  %v1750 = vpack.c.b16 %v1657, %v1656
  %v1751 = vpack.c.b16 %v1659, %v1658
  %v1752 = vpack.c.b16 %v1661, %v1660
  %v1753 = vpack.c.b16 %v1663, %v1662
  %v1754 = vpack.c.b16 %v1665, %v1664
  %v1755 = vpack.c.b16 %v1667, %v1666
  %v1756 = vpack.c.b16 %v1669, %v1668
  %v1757 = vpack.c.b16 %v1671, %v1670
  %v1758 = vpack.c.b16 %v1673, %v1672
  %v1759 = vpack.c.b16 %v1675, %v1674
  %v1760 = vpack.c.b16 %v1677, %v1676
  %v1761 = vpack.c.b16 %v1679, %v1678
  %v1762 = vpack.c.b16 %v1681, %v1680
  %v1763 = vpack.c.b16 %v1683, %v1682
  %v1764 = vpack.c.b16 %v1685, %v1684
  %v1765 = vpack.c.b16 %v1687, %v1686
  %v1766 = vpack.c.b16 %v1689, %v1688
  %v1767 = vpack.c.b16 %v1691, %v1690
  %v1768 = vpack.c.b16 %v1693, %v1692
  %v1769 = vpack.c.b16 %v1695, %v1694
  %v1770 = vpack.c.b16 %v1697, %v1696
  %v1771 = vpack.c.b16 %v1699, %v1698
  %1844 = vmatpush.bf16.msra.mxu0 %v1707
  %1845 = vmatpush.bf16.msra.mxu0 %v1706
  %1846 = vmatpush.bf16.msra.mxu0 %v1705
  %1847 = vmatpush.bf16.msra.mxu0 %v1704
  %1848 = vmatpush.bf16.msra.mxu0 %v1703
  %1849 = vmatpush.bf16.msra.mxu0 %v1702
  %1850 = vmatpush.bf16.msra.mxu0 %v1701
  %1851 = vmatpush.bf16.msra.mxu0 %v1700
  %1852 = vmatmul.bf16.gmra.mxu0 %v1196
  %v1853 = vpop.f32.mrf.mxu0
  %v1854 = vadd.f32 0.0, %v1853
  %v1855 = vpop.f32.mrf.mxu0
  %v1856 = vadd.f32 0.0, %v1855
  %1857 = vmatmul.bf16.gmra.mxu0 %v1205
  %v1858 = vpop.f32.mrf.mxu0
  %v1859 = vadd.f32 0.0, %v1858
  %v1860 = vpop.f32.mrf.mxu0
  %v1861 = vadd.f32 0.0, %v1860
  %1862 = vmatmul.bf16.gmra.mxu0 %v1214
  %v1863 = vpop.f32.mrf.mxu0
  %v1864 = vadd.f32 0.0, %v1863
  %v1865 = vpop.f32.mrf.mxu0
  %v1866 = vadd.f32 0.0, %v1865
  %1867 = vmatmul.bf16.gmra.mxu0 %v1223
  %v1868 = vpop.f32.mrf.mxu0
  %v1869 = vadd.f32 0.0, %v1868
  %v1870 = vpop.f32.mrf.mxu0
  %v1871 = vadd.f32 0.0, %v1870
  %1872 = vmatmul.bf16.gmra.mxu0 %v1232
  %v1873 = vpop.f32.mrf.mxu0
  %v1874 = vadd.f32 0.0, %v1873
  %v1875 = vpop.f32.mrf.mxu0
  %v1876 = vadd.f32 0.0, %v1875
  %1877 = vmatmul.bf16.gmra.mxu0 %v1241
  %v1878 = vpop.f32.mrf.mxu0
  %v1879 = vadd.f32 0.0, %v1878
  %v1880 = vpop.f32.mrf.mxu0
  %v1881 = vadd.f32 0.0, %v1880
  %1882 = vmatmul.bf16.gmra.mxu0 %v1250
  %v1883 = vpop.f32.mrf.mxu0
  %v1884 = vadd.f32 0.0, %v1883
  %v1885 = vpop.f32.mrf.mxu0
  %v1886 = vadd.f32 0.0, %v1885
  %1887 = vmatmul.bf16.gmra.mxu0 %v1259
  %v1888 = vpop.f32.mrf.mxu0
  %v1889 = vadd.f32 0.0, %v1888
  %v1890 = vpop.f32.mrf.mxu0
  %v1891 = vadd.f32 0.0, %v1890
  %1892 = vdwg.mxu0
  %1893 = vmatpush.bf16.msra.mxu0 %v1715
  %1894 = vmatpush.bf16.msra.mxu0 %v1714
  %1895 = vmatpush.bf16.msra.mxu0 %v1713
  %1896 = vmatpush.bf16.msra.mxu0 %v1712
  %1897 = vmatpush.bf16.msra.mxu0 %v1711
  %1898 = vmatpush.bf16.msra.mxu0 %v1710
  %1899 = vmatpush.bf16.msra.mxu0 %v1709
  %1900 = vmatpush.bf16.msra.mxu0 %v1708
  %1901 = vmatmul.bf16.gmra.mxu0 %v1197
  %v1902 = vpop.f32.mrf.mxu0
  %v1903 = vadd.f32 %v1854, %v1902
  %v1904 = vpop.f32.mrf.mxu0
  %v1905 = vadd.f32 %v1856, %v1904
  %1906 = vmatmul.bf16.gmra.mxu0 %v1206
  %v1907 = vpop.f32.mrf.mxu0
  %v1908 = vadd.f32 %v1859, %v1907
  %v1909 = vpop.f32.mrf.mxu0
  %v1910 = vadd.f32 %v1861, %v1909
  %1911 = vmatmul.bf16.gmra.mxu0 %v1215
  %v1912 = vpop.f32.mrf.mxu0
  %v1913 = vadd.f32 %v1864, %v1912
  %v1914 = vpop.f32.mrf.mxu0
  %v1915 = vadd.f32 %v1866, %v1914
  %1916 = vmatmul.bf16.gmra.mxu0 %v1224
  %v1917 = vpop.f32.mrf.mxu0
  %v1918 = vadd.f32 %v1869, %v1917
  %v1919 = vpop.f32.mrf.mxu0
  %v1920 = vadd.f32 %v1871, %v1919
  %1921 = vmatmul.bf16.gmra.mxu0 %v1233
  %v1922 = vpop.f32.mrf.mxu0
  %v1923 = vadd.f32 %v1874, %v1922
  %v1924 = vpop.f32.mrf.mxu0
  %v1925 = vadd.f32 %v1876, %v1924
  %1926 = vmatmul.bf16.gmra.mxu0 %v1242
  %v1927 = vpop.f32.mrf.mxu0
  %v1928 = vadd.f32 %v1879, %v1927
  %v1929 = vpop.f32.mrf.mxu0
  %v1930 = vadd.f32 %v1881, %v1929
  %1931 = vmatmul.bf16.gmra.mxu0 %v1251
  %v1932 = vpop.f32.mrf.mxu0
  %v1933 = vadd.f32 %v1884, %v1932
  %v1934 = vpop.f32.mrf.mxu0
  %v1935 = vadd.f32 %v1886, %v1934
  %1936 = vmatmul.bf16.gmra.mxu0 %v1260
  %v1937 = vpop.f32.mrf.mxu0
  %v1938 = vadd.f32 %v1889, %v1937
  %v1939 = vpop.f32.mrf.mxu0
  %v1940 = vadd.f32 %v1891, %v1939
  %1941 = vdwg.mxu0
  %1942 = vmatpush.bf16.msra.mxu0 %v1723
  %1943 = vmatpush.bf16.msra.mxu0 %v1722
  %1944 = vmatpush.bf16.msra.mxu0 %v1721
  %1945 = vmatpush.bf16.msra.mxu0 %v1720
  %1946 = vmatpush.bf16.msra.mxu0 %v1719
  %1947 = vmatpush.bf16.msra.mxu0 %v1718
  %1948 = vmatpush.bf16.msra.mxu0 %v1717
  %1949 = vmatpush.bf16.msra.mxu0 %v1716
  %1950 = vmatmul.bf16.gmra.mxu0 %v1198
  %v1951 = vpop.f32.mrf.mxu0
  %v1952 = vadd.f32 %v1903, %v1951
  %v1953 = vpop.f32.mrf.mxu0
  %v1954 = vadd.f32 %v1905, %v1953
  %1955 = vmatmul.bf16.gmra.mxu0 %v1207
  %v1956 = vpop.f32.mrf.mxu0
  %v1957 = vadd.f32 %v1908, %v1956
  %v1958 = vpop.f32.mrf.mxu0
  %v1959 = vadd.f32 %v1910, %v1958
  %1960 = vmatmul.bf16.gmra.mxu0 %v1216
  %v1961 = vpop.f32.mrf.mxu0
  %v1962 = vadd.f32 %v1913, %v1961
  %v1963 = vpop.f32.mrf.mxu0
  %v1964 = vadd.f32 %v1915, %v1963
  %1965 = vmatmul.bf16.gmra.mxu0 %v1225
  %v1966 = vpop.f32.mrf.mxu0
  %v1967 = vadd.f32 %v1918, %v1966
  %v1968 = vpop.f32.mrf.mxu0
  %v1969 = vadd.f32 %v1920, %v1968
  %1970 = vmatmul.bf16.gmra.mxu0 %v1234
  %v1971 = vpop.f32.mrf.mxu0
  %v1972 = vadd.f32 %v1923, %v1971
  %v1973 = vpop.f32.mrf.mxu0
  %v1974 = vadd.f32 %v1925, %v1973
  %1975 = vmatmul.bf16.gmra.mxu0 %v1243
  %v1976 = vpop.f32.mrf.mxu0
  %v1977 = vadd.f32 %v1928, %v1976
  %v1978 = vpop.f32.mrf.mxu0
  %v1979 = vadd.f32 %v1930, %v1978
  %1980 = vmatmul.bf16.gmra.mxu0 %v1252
  %v1981 = vpop.f32.mrf.mxu0
  %v1982 = vadd.f32 %v1933, %v1981
  %v1983 = vpop.f32.mrf.mxu0
  %v1984 = vadd.f32 %v1935, %v1983
  %1985 = vmatmul.bf16.gmra.mxu0 %v1261
  %v1986 = vpop.f32.mrf.mxu0
  %v1987 = vadd.f32 %v1938, %v1986
  %v1988 = vpop.f32.mrf.mxu0
  %v1989 = vadd.f32 %v1940, %v1988
  %1990 = vdwg.mxu0
  %1991 = vmatpush.bf16.msra.mxu0 %v1731
  %1992 = vmatpush.bf16.msra.mxu0 %v1730
  %1993 = vmatpush.bf16.msra.mxu0 %v1729
  %1994 = vmatpush.bf16.msra.mxu0 %v1728
  %1995 = vmatpush.bf16.msra.mxu0 %v1727
  %1996 = vmatpush.bf16.msra.mxu0 %v1726
  %1997 = vmatpush.bf16.msra.mxu0 %v1725
  %1998 = vmatpush.bf16.msra.mxu0 %v1724
  %1999 = vmatmul.bf16.gmra.mxu0 %v1199
  %v2000 = vpop.f32.mrf.mxu0
  %v2001 = vadd.f32 %v1952, %v2000
  %v2002 = vpop.f32.mrf.mxu0
  %v2003 = vadd.f32 %v1954, %v2002
  %2004 = vmatmul.bf16.gmra.mxu0 %v1208
  %v2005 = vpop.f32.mrf.mxu0
  %v2006 = vadd.f32 %v1957, %v2005
  %v2007 = vpop.f32.mrf.mxu0
  %v2008 = vadd.f32 %v1959, %v2007
  %2009 = vmatmul.bf16.gmra.mxu0 %v1217
  %v2010 = vpop.f32.mrf.mxu0
  %v2011 = vadd.f32 %v1962, %v2010
  %v2012 = vpop.f32.mrf.mxu0
  %v2013 = vadd.f32 %v1964, %v2012
  %2014 = vmatmul.bf16.gmra.mxu0 %v1226
  %v2015 = vpop.f32.mrf.mxu0
  %v2016 = vadd.f32 %v1967, %v2015
  %v2017 = vpop.f32.mrf.mxu0
  %v2018 = vadd.f32 %v1969, %v2017
  %2019 = vmatmul.bf16.gmra.mxu0 %v1235
  %v2020 = vpop.f32.mrf.mxu0
  %v2021 = vadd.f32 %v1972, %v2020
  %v2022 = vpop.f32.mrf.mxu0
  %v2023 = vadd.f32 %v1974, %v2022
  %2024 = vmatmul.bf16.gmra.mxu0 %v1244
  %v2025 = vpop.f32.mrf.mxu0
  %v2026 = vadd.f32 %v1977, %v2025
  %v2027 = vpop.f32.mrf.mxu0
  %v2028 = vadd.f32 %v1979, %v2027
  %2029 = vmatmul.bf16.gmra.mxu0 %v1253
  %v2030 = vpop.f32.mrf.mxu0
  %v2031 = vadd.f32 %v1982, %v2030
  %v2032 = vpop.f32.mrf.mxu0
  %v2033 = vadd.f32 %v1984, %v2032
  %2034 = vmatmul.bf16.gmra.mxu0 %v1262
  %v2035 = vpop.f32.mrf.mxu0
  %v2036 = vadd.f32 %v1987, %v2035
  %v2037 = vpop.f32.mrf.mxu0
  %v2038 = vadd.f32 %v1989, %v2037
  %2039 = vdwg.mxu0
  %2040 = vmatpush.bf16.msra.mxu0 %v1739
  %2041 = vmatpush.bf16.msra.mxu0 %v1738
  %2042 = vmatpush.bf16.msra.mxu0 %v1737
  %2043 = vmatpush.bf16.msra.mxu0 %v1736
  %2044 = vmatpush.bf16.msra.mxu0 %v1735
  %2045 = vmatpush.bf16.msra.mxu0 %v1734
  %2046 = vmatpush.bf16.msra.mxu0 %v1733
  %2047 = vmatpush.bf16.msra.mxu0 %v1732
  %2048 = vmatmul.bf16.gmra.mxu0 %v1200
  %v2049 = vpop.f32.mrf.mxu0
  %v2050 = vadd.f32 %v2001, %v2049
  %v2051 = vpop.f32.mrf.mxu0
  %v2052 = vadd.f32 %v2003, %v2051
  %2053 = vmatmul.bf16.gmra.mxu0 %v1209
  %v2054 = vpop.f32.mrf.mxu0
  %v2055 = vadd.f32 %v2006, %v2054
  %v2056 = vpop.f32.mrf.mxu0
  %v2057 = vadd.f32 %v2008, %v2056
  %2058 = vmatmul.bf16.gmra.mxu0 %v1218
  %v2059 = vpop.f32.mrf.mxu0
  %v2060 = vadd.f32 %v2011, %v2059
  %v2061 = vpop.f32.mrf.mxu0
  %v2062 = vadd.f32 %v2013, %v2061
  %2063 = vmatmul.bf16.gmra.mxu0 %v1227
  %v2064 = vpop.f32.mrf.mxu0
  %v2065 = vadd.f32 %v2016, %v2064
  %v2066 = vpop.f32.mrf.mxu0
  %v2067 = vadd.f32 %v2018, %v2066
  %2068 = vmatmul.bf16.gmra.mxu0 %v1236
  %v2069 = vpop.f32.mrf.mxu0
  %v2070 = vadd.f32 %v2021, %v2069
  %v2071 = vpop.f32.mrf.mxu0
  %v2072 = vadd.f32 %v2023, %v2071
  %2073 = vmatmul.bf16.gmra.mxu0 %v1245
  %v2074 = vpop.f32.mrf.mxu0
  %v2075 = vadd.f32 %v2026, %v2074
  %v2076 = vpop.f32.mrf.mxu0
  %v2077 = vadd.f32 %v2028, %v2076
  %2078 = vmatmul.bf16.gmra.mxu0 %v1254
  %v2079 = vpop.f32.mrf.mxu0
  %v2080 = vadd.f32 %v2031, %v2079
  %v2081 = vpop.f32.mrf.mxu0
  %v2082 = vadd.f32 %v2033, %v2081
  %2083 = vmatmul.bf16.gmra.mxu0 %v1263
  %v2084 = vpop.f32.mrf.mxu0
  %v2085 = vadd.f32 %v2036, %v2084
  %v2086 = vpop.f32.mrf.mxu0
  %v2087 = vadd.f32 %v2038, %v2086
  %2088 = vdwg.mxu0
  %2089 = vmatpush.bf16.msra.mxu0 %v1747
  %2090 = vmatpush.bf16.msra.mxu0 %v1746
  %2091 = vmatpush.bf16.msra.mxu0 %v1745
  %2092 = vmatpush.bf16.msra.mxu0 %v1744
  %2093 = vmatpush.bf16.msra.mxu0 %v1743
  %2094 = vmatpush.bf16.msra.mxu0 %v1742
  %2095 = vmatpush.bf16.msra.mxu0 %v1741
  %2096 = vmatpush.bf16.msra.mxu0 %v1740
  %2097 = vmatmul.bf16.gmra.mxu0 %v1201
  %v2098 = vpop.f32.mrf.mxu0
  %v2099 = vadd.f32 %v2050, %v2098
  %v2100 = vpop.f32.mrf.mxu0
  %v2101 = vadd.f32 %v2052, %v2100
  %2102 = vmatmul.bf16.gmra.mxu0 %v1210
  %v2103 = vpop.f32.mrf.mxu0
  %v2104 = vadd.f32 %v2055, %v2103
  %v2105 = vpop.f32.mrf.mxu0
  %v2106 = vadd.f32 %v2057, %v2105
  %2107 = vmatmul.bf16.gmra.mxu0 %v1219
  %v2108 = vpop.f32.mrf.mxu0
  %v2109 = vadd.f32 %v2060, %v2108
  %v2110 = vpop.f32.mrf.mxu0
  %v2111 = vadd.f32 %v2062, %v2110
  %2112 = vmatmul.bf16.gmra.mxu0 %v1228
  %v2113 = vpop.f32.mrf.mxu0
  %v2114 = vadd.f32 %v2065, %v2113
  %v2115 = vpop.f32.mrf.mxu0
  %v2116 = vadd.f32 %v2067, %v2115
  %2117 = vmatmul.bf16.gmra.mxu0 %v1237
  %v2118 = vpop.f32.mrf.mxu0
  %v2119 = vadd.f32 %v2070, %v2118
  %v2120 = vpop.f32.mrf.mxu0
  %v2121 = vadd.f32 %v2072, %v2120
  %2122 = vmatmul.bf16.gmra.mxu0 %v1246
  %v2123 = vpop.f32.mrf.mxu0
  %v2124 = vadd.f32 %v2075, %v2123
  %v2125 = vpop.f32.mrf.mxu0
  %v2126 = vadd.f32 %v2077, %v2125
  %2127 = vmatmul.bf16.gmra.mxu0 %v1255
  %v2128 = vpop.f32.mrf.mxu0
  %v2129 = vadd.f32 %v2080, %v2128
  %v2130 = vpop.f32.mrf.mxu0
  %v2131 = vadd.f32 %v2082, %v2130
  %2132 = vmatmul.bf16.gmra.mxu0 %v1264
  %v2133 = vpop.f32.mrf.mxu0
  %v2134 = vadd.f32 %v2085, %v2133
  %v2135 = vpop.f32.mrf.mxu0
  %v2136 = vadd.f32 %v2087, %v2135
  %2137 = vdwg.mxu0
  %2138 = vmatpush.bf16.msra.mxu0 %v1755
  %2139 = vmatpush.bf16.msra.mxu0 %v1754
  %2140 = vmatpush.bf16.msra.mxu0 %v1753
  %2141 = vmatpush.bf16.msra.mxu0 %v1752
  %2142 = vmatpush.bf16.msra.mxu0 %v1751
  %2143 = vmatpush.bf16.msra.mxu0 %v1750
  %2144 = vmatpush.bf16.msra.mxu0 %v1749
  %2145 = vmatpush.bf16.msra.mxu0 %v1748
  %2146 = vmatmul.bf16.gmra.mxu0 %v1202
  %v2147 = vpop.f32.mrf.mxu0
  %v2148 = vadd.f32 %v2099, %v2147
  %v2149 = vpop.f32.mrf.mxu0
  %v2150 = vadd.f32 %v2101, %v2149
  %2151 = vmatmul.bf16.gmra.mxu0 %v1211
  %v2152 = vpop.f32.mrf.mxu0
  %v2153 = vadd.f32 %v2104, %v2152
  %v2154 = vpop.f32.mrf.mxu0
  %v2155 = vadd.f32 %v2106, %v2154
  %2156 = vmatmul.bf16.gmra.mxu0 %v1220
  %v2157 = vpop.f32.mrf.mxu0
  %v2158 = vadd.f32 %v2109, %v2157
  %v2159 = vpop.f32.mrf.mxu0
  %v2160 = vadd.f32 %v2111, %v2159
  %2161 = vmatmul.bf16.gmra.mxu0 %v1229
  %v2162 = vpop.f32.mrf.mxu0
  %v2163 = vadd.f32 %v2114, %v2162
  %v2164 = vpop.f32.mrf.mxu0
  %v2165 = vadd.f32 %v2116, %v2164
  %2166 = vmatmul.bf16.gmra.mxu0 %v1238
  %v2167 = vpop.f32.mrf.mxu0
  %v2168 = vadd.f32 %v2119, %v2167
  %v2169 = vpop.f32.mrf.mxu0
  %v2170 = vadd.f32 %v2121, %v2169
  %2171 = vmatmul.bf16.gmra.mxu0 %v1247
  %v2172 = vpop.f32.mrf.mxu0
  %v2173 = vadd.f32 %v2124, %v2172
  %v2174 = vpop.f32.mrf.mxu0
  %v2175 = vadd.f32 %v2126, %v2174
  %2176 = vmatmul.bf16.gmra.mxu0 %v1256
  %v2177 = vpop.f32.mrf.mxu0
  %v2178 = vadd.f32 %v2129, %v2177
  %v2179 = vpop.f32.mrf.mxu0
  %v2180 = vadd.f32 %v2131, %v2179
  %2181 = vmatmul.bf16.gmra.mxu0 %v1265
  %v2182 = vpop.f32.mrf.mxu0
  %v2183 = vadd.f32 %v2134, %v2182
  %v2184 = vpop.f32.mrf.mxu0
  %v2185 = vadd.f32 %v2136, %v2184
  %2186 = vdwg.mxu0
  %2187 = vmatpush.bf16.msra.mxu0 %v1763
  %2188 = vmatpush.bf16.msra.mxu0 %v1762
  %2189 = vmatpush.bf16.msra.mxu0 %v1761
  %2190 = vmatpush.bf16.msra.mxu0 %v1760
  %2191 = vmatpush.bf16.msra.mxu0 %v1759
  %2192 = vmatpush.bf16.msra.mxu0 %v1758
  %2193 = vmatpush.bf16.msra.mxu0 %v1757
  %2194 = vmatpush.bf16.msra.mxu0 %v1756
  %2195 = vmatmul.bf16.gmra.mxu0 %v1203
  %v2196 = vpop.f32.mrf.mxu0
  %v2197 = vadd.f32 %v2148, %v2196
  %v2198 = vpop.f32.mrf.mxu0
  %v2199 = vadd.f32 %v2150, %v2198
  %2200 = vmatmul.bf16.gmra.mxu0 %v1212
  %v2201 = vpop.f32.mrf.mxu0
  %v2202 = vadd.f32 %v2153, %v2201
  %v2203 = vpop.f32.mrf.mxu0
  %v2204 = vadd.f32 %v2155, %v2203
  %2205 = vmatmul.bf16.gmra.mxu0 %v1221
  %v2206 = vpop.f32.mrf.mxu0
  %v2207 = vadd.f32 %v2158, %v2206
  %v2208 = vpop.f32.mrf.mxu0
  %v2209 = vadd.f32 %v2160, %v2208
  %2210 = vmatmul.bf16.gmra.mxu0 %v1230
  %v2211 = vpop.f32.mrf.mxu0
  %v2212 = vadd.f32 %v2163, %v2211
  %v2213 = vpop.f32.mrf.mxu0
  %v2214 = vadd.f32 %v2165, %v2213
  %2215 = vmatmul.bf16.gmra.mxu0 %v1239
  %v2216 = vpop.f32.mrf.mxu0
  %v2217 = vadd.f32 %v2168, %v2216
  %v2218 = vpop.f32.mrf.mxu0
  %v2219 = vadd.f32 %v2170, %v2218
  %2220 = vmatmul.bf16.gmra.mxu0 %v1248
  %v2221 = vpop.f32.mrf.mxu0
  %v2222 = vadd.f32 %v2173, %v2221
  %v2223 = vpop.f32.mrf.mxu0
  %v2224 = vadd.f32 %v2175, %v2223
  %2225 = vmatmul.bf16.gmra.mxu0 %v1257
  %v2226 = vpop.f32.mrf.mxu0
  %v2227 = vadd.f32 %v2178, %v2226
  %v2228 = vpop.f32.mrf.mxu0
  %v2229 = vadd.f32 %v2180, %v2228
  %2230 = vmatmul.bf16.gmra.mxu0 %v1266
  %v2231 = vpop.f32.mrf.mxu0
  %v2232 = vadd.f32 %v2183, %v2231
  %v2233 = vpop.f32.mrf.mxu0
  %v2234 = vadd.f32 %v2185, %v2233
  %2235 = vdwg.mxu0
  %2236 = vmatpush.bf16.msra.mxu0 %v1771
  %2237 = vmatpush.bf16.msra.mxu0 %v1770
  %2238 = vmatpush.bf16.msra.mxu0 %v1769
  %2239 = vmatpush.bf16.msra.mxu0 %v1768
  %2240 = vmatpush.bf16.msra.mxu0 %v1767
  %2241 = vmatpush.bf16.msra.mxu0 %v1766
  %2242 = vmatpush.bf16.msra.mxu0 %v1765
  %2243 = vmatpush.bf16.msra.mxu0 %v1764
  %2244 = vmatmul.bf16.gmra.mxu0 %v1204
  %v2245 = vpop.f32.mrf.mxu0
  %v2246 = vadd.f32 %v2197, %v2245
  %v2247 = vpop.f32.mrf.mxu0
  %v2248 = vadd.f32 %v2199, %v2247
  %2249 = vmatmul.bf16.gmra.mxu0 %v1213
  %v2250 = vpop.f32.mrf.mxu0
  %v2251 = vadd.f32 %v2202, %v2250
  %v2252 = vpop.f32.mrf.mxu0
  %v2253 = vadd.f32 %v2204, %v2252
  %2254 = vmatmul.bf16.gmra.mxu0 %v1222
  %v2255 = vpop.f32.mrf.mxu0
  %v2256 = vadd.f32 %v2207, %v2255
  %v2257 = vpop.f32.mrf.mxu0
  %v2258 = vadd.f32 %v2209, %v2257
  %2259 = vmatmul.bf16.gmra.mxu0 %v1231
  %v2260 = vpop.f32.mrf.mxu0
  %v2261 = vadd.f32 %v2212, %v2260
  %v2262 = vpop.f32.mrf.mxu0
  %v2263 = vadd.f32 %v2214, %v2262
  %2264 = vmatmul.bf16.gmra.mxu0 %v1240
  %v2265 = vpop.f32.mrf.mxu0
  %v2266 = vadd.f32 %v2217, %v2265
  %v2267 = vpop.f32.mrf.mxu0
  %v2268 = vadd.f32 %v2219, %v2267
  %2269 = vmatmul.bf16.gmra.mxu0 %v1249
  %v2270 = vpop.f32.mrf.mxu0
  %v2271 = vadd.f32 %v2222, %v2270
  %v2272 = vpop.f32.mrf.mxu0
  %v2273 = vadd.f32 %v2224, %v2272
  %2274 = vmatmul.bf16.gmra.mxu0 %v1258
  %v2275 = vpop.f32.mrf.mxu0
  %v2276 = vadd.f32 %v2227, %v2275
  %v2277 = vpop.f32.mrf.mxu0
  %v2278 = vadd.f32 %v2229, %v2277
  %2279 = vmatmul.bf16.gmra.mxu0 %v1267
  %v2280 = vpop.f32.mrf.mxu0
  %v2281 = vadd.f32 %v2232, %v2280
  %v2282 = vpop.f32.mrf.mxu0
  %v2283 = vadd.f32 %v2234, %v2282
  %2284 = vdwg.mxu0
  %v2285 = vpack.c.bf16 %v2246, %v2246
  %v2286 = vpack.c.bf16 %v2248, %v2248
  %v2287 = vpack.c.bf16 %v2251, %v2251
  %v2288 = vpack.c.bf16 %v2253, %v2253
  %v2289 = vpack.c.bf16 %v2256, %v2256
  %v2290 = vpack.c.bf16 %v2258, %v2258
  %v2291 = vpack.c.bf16 %v2261, %v2261
  %v2292 = vpack.c.bf16 %v2263, %v2263
  %v2293 = vpack.c.bf16 %v2266, %v2266
  %v2294 = vpack.c.bf16 %v2268, %v2268
  %v2295 = vpack.c.bf16 %v2271, %v2271
  %v2296 = vpack.c.bf16 %v2273, %v2273
  %v2297 = vpack.c.bf16 %v2276, %v2276
  %v2298 = vpack.c.bf16 %v2278, %v2278
  %v2299 = vpack.c.bf16 %v2281, %v2281
  %v2300 = vpack.c.bf16 %v2283, %v2283
  %2301 = vst [vmem:[%s2] sm:$0xf] %v2285
  %2302 = vst [vmem:[%s2 + $0x4] sm:$0xf] %v2286
  %2303 = vst [vmem:[%s2 + $0x8] sm:$0xf] %v2287
  %2304 = vst [vmem:[%s2 + $0xc] sm:$0xf] %v2288
  %2305 = vst [vmem:[%s2 + $0x10] sm:$0xf] %v2289
  %2306 = vst [vmem:[%s2 + $0x14] sm:$0xf] %v2290
  %2307 = vst [vmem:[%s2 + $0x18] sm:$0xf] %v2291
  %2308 = vst [vmem:[%s2 + $0x1c] sm:$0xf] %v2292
  %2309 = vst [vmem:[%s2 + $0x20] sm:$0xf] %v2293
  %2310 = vst [vmem:[%s2 + $0x24] sm:$0xf] %v2294
  %2311 = vst [vmem:[%s2 + $0x28] sm:$0xf] %v2295
  %2312 = vst [vmem:[%s2 + $0x2c] sm:$0xf] %v2296
  %2313 = vst [vmem:[%s2 + $0x30] sm:$0xf] %v2297
  %2314 = vst [vmem:[%s2 + $0x34] sm:$0xf] %v2298
  %2315 = vst [vmem:[%s2 + $0x38] sm:$0xf] %v2299
  %2316 = vst [vmem:[%s2 + $0x3c] sm:$0xf] %v2300
  %v2317 = vadd.f32 %v2246, %v2248
  %v2318 = vadd.f32 %v2317, %v2251
  %v2319 = vadd.f32 %v2318, %v2253
  %v2320 = vadd.f32 %v2319, %v2256
  %v2321 = vadd.f32 %v2320, %v2258
  %v2322 = vadd.f32 %v2321, %v2261
  %v2323 = vadd.f32 %v2322, %v2263
  %v2324 = vadd.f32 %v2323, %v2266
  %v2325 = vadd.f32 %v2324, %v2268
  %v2326 = vadd.f32 %v2325, %v2271
  %v2327 = vadd.f32 %v2326, %v2273
  %v2328 = vadd.f32 %v2327, %v2276
  %v2329 = vadd.f32 %v2328, %v2278
  %v2330 = vadd.f32 %v2329, %v2281
  %v2331 = vadd.f32 %v2330, %v2283
  %v2332 = vrot.slane %v2331, 4
  %v2333 = vadd.f32 %v2331, %v2332
  %v2334 = vrot.slane %v2333, 2
  %v2335 = vadd.f32 %v2333, %v2334
  %v2336 = vrot.slane %v2335, 1
  %v2337 = vadd.f32 %v2335, %v2336
  %2338 = vst [vmem:[%s25] sm:$0x1] %v2337
  %v2339 = vmul.f32 %v2246, %v2246
  %v2340 = vmul.f32 %v2248, %v2248
  %v2341 = vmul.f32 %v2251, %v2251
  %v2342 = vmul.f32 %v2253, %v2253
  %v2343 = vmul.f32 %v2256, %v2256
  %v2344 = vmul.f32 %v2258, %v2258
  %v2345 = vmul.f32 %v2261, %v2261
  %v2346 = vmul.f32 %v2263, %v2263
  %v2347 = vmul.f32 %v2266, %v2266
  %v2348 = vmul.f32 %v2268, %v2268
  %v2349 = vmul.f32 %v2271, %v2271
  %v2350 = vmul.f32 %v2273, %v2273
  %v2351 = vmul.f32 %v2276, %v2276
  %v2352 = vmul.f32 %v2278, %v2278
  %v2353 = vmul.f32 %v2281, %v2281
  %v2354 = vmul.f32 %v2283, %v2283
  %v2355 = vadd.f32 %v2339, %v2340
  %v2356 = vadd.f32 %v2355, %v2341
  %v2357 = vadd.f32 %v2356, %v2342
  %v2358 = vadd.f32 %v2357, %v2343
  %v2359 = vadd.f32 %v2358, %v2344
  %v2360 = vadd.f32 %v2359, %v2345
  %v2361 = vadd.f32 %v2360, %v2346
  %v2362 = vadd.f32 %v2361, %v2347
  %v2363 = vadd.f32 %v2362, %v2348
  %v2364 = vadd.f32 %v2363, %v2349
  %v2365 = vadd.f32 %v2364, %v2350
  %v2366 = vadd.f32 %v2365, %v2351
  %v2367 = vadd.f32 %v2366, %v2352
  %v2368 = vadd.f32 %v2367, %v2353
  %v2369 = vadd.f32 %v2368, %v2354
  %v2370 = vrot.slane %v2369, 4
  %v2371 = vadd.f32 %v2369, %v2370
  %v2372 = vrot.slane %v2371, 2
  %v2373 = vadd.f32 %v2371, %v2372
  %v2374 = vrot.slane %v2373, 1
  %v2375 = vadd.f32 %v2373, %v2374
  %2376 = vst [vmem:[%s30] sm:$0x1] %v2375
  %s2377 = sadd.s32 0, 0
  %p2378 = scmp.lt.s32.totalorder %s2377, 0
  %s2379 = scalar_select %p2378, %s2377, 0
  %s2380 = scalar_lea.vmem %s3, %s2379
  %s2381 = sadd.s32 0, 0
  %p2382 = scmp.lt.s32.totalorder %s2381, 0
  %s2383 = scalar_select %p2382, %s2381, 0
  %s2384 = scalar_lea.vmem %s4, %s2383
  // Predicated region
  $region10: #{conv_cell_forward.6} parent=0 // pred_check
    _
  $region11: #{conv_cell_forward.6} parent=0 // pred_check_branch
    %2386 = sbr.rel (0) target = $region13
  $region12: #{conv_cell_forward.6} parent=0 // pred_region
    _
  $region13: #{conv_cell_forward.6} parent=0 // pred_fallthru
    _
  // Predicated region
  $region14: #{conv_cell_forward.6} parent=0 // pred_check
    _
  $region15: #{conv_cell_forward.6} parent=0 // pred_check_branch
    %2388 = sbr.rel (0) target = $region17
  $region16: #{conv_cell_forward.6} parent=0 // pred_region
    %s2389 = sadd.s32 0, 0
  $region17: #{conv_cell_forward.6} parent=0 // pred_fallthru
    _
  // Predicated region
  $region18: #{conv_cell_forward.6} parent=0 // pred_check
    _
  $region19: #{conv_cell_forward.6} parent=0 // pred_check_branch
    %2391 = sbr.rel (0) target = $region21
  $region20: #{conv_cell_forward.6} parent=0 // pred_region
    %s2392 = sadd.s32 0, 0
  $region21: #{conv_cell_forward.6} parent=0 // pred_fallthru
    _
  // Predicated region
  $region22: #{conv_cell_forward.6} parent=0 // pred_check
    _
  $region23: #{conv_cell_forward.6} parent=0 // pred_check_branch
    %2394 = sbr.rel (0) target = $region25
  $region24: #{conv_cell_forward.6} parent=0 // pred_region
    _
  $region25: #{conv_cell_forward.6} parent=0 // pred_fallthru
    _
  // Predicated region
  $region26: #{conv_cell_forward.6} parent=0 // pred_check
    _
  $region27: #{conv_cell_forward.6} parent=0 // pred_check_branch
    %2396 = sbr.rel (0) target = $region29
  $region28: #{conv_cell_forward.6} parent=0 // pred_region
    %s2397 = sadd.s32 0, 0
    %p2398 = scmp.lt.s32.totalorder %s2397, 0
    %s2399 = scalar_select %p2398, %s2397, 0
    %s2400 = scalar_lea.vmem %s3, %s2399
  $region29: #{conv_cell_forward.6} parent=0 // pred_fallthru
    _
  // Predicated region
  $region30: #{conv_cell_forward.6} parent=0 // pred_check
    _
  $region31: #{conv_cell_forward.6} parent=0 // pred_check_branch
    %2402 = sbr.rel (0) target = $region33
  $region32: #{conv_cell_forward.6} parent=0 // pred_region
    %s2403 = sadd.s32 0, 0
    %p2404 = scmp.lt.s32.totalorder %s2403, 0
    %s2405 = scalar_select %p2404, %s2403, 0
    %s2406 = scalar_lea.vmem %s4, %s2405
  $region33: #{conv_cell_forward.6} parent=0 // pred_fallthru
    _

</llo_original>
